<compile_context>
chip_gen: v7x
topology: tpu7x:2x2x1
jax: 0.10.0
libtpu: 0.0.40
codegen_flags: <defaults>
</compile_context>

<pallas_src>
import functools
import math

import jax
import jax.numpy as jnp
from jax.experimental import pallas as pl
from jax.experimental.pallas import tpu as pltpu

N_CHANNELS = 3
BN_EPS = 1e-5
LEAKY_SLOPE = 0.2


# ----------------------------------------------------------------------------
# Hardware-adaptive VMEM / tiling budget
# ----------------------------------------------------------------------------
def _tpu_vmem_bytes():
    try:
        info = pltpu.get_tpu_info()
        cap = getattr(info, "vmem_capacity_bytes", None)
        if cap:
            return int(cap)
    except Exception:
        pass
    return 64 << 20  # conservative default (v7x per-TensorCore VMEM)


_VMEM_CAP = _tpu_vmem_bytes()
# Scoped-VMEM limit passed to Mosaic (generous on 128 MiB v5e/v6e parts).
VMEM_LIMIT = int(max(32 << 20, min(_VMEM_CAP * 3 // 4, 96 << 20)))
# Tile-selection budget: kept <= 40 MiB so tiles stay safe on v7x (64 MiB/TC)
# even if the capacity query reports per-chip numbers.
TILE_BUDGET = int(min(VMEM_LIMIT * 3 // 4, 40 << 20))
TM_MAX = 1024 if _VMEM_CAP >= (100 << 20) else 512


# ----------------------------------------------------------------------------
# Helpers
# ----------------------------------------------------------------------------
def _round_up(x, m):
    return (x + m - 1) // m * m


def _leaky(y):
    return jnp.maximum(y, LEAKY_SLOPE * y)


def _choose_tk(kp, ocp, budget):
    """Largest divisor of Kp (multiple of 128) whose double-buffered bf16
    weight panel fits `budget`.  Kp itself when it fits -> weight K-resident."""
    cands = [d for d in range(128, kp + 1, 128) if kp % d == 0]
    best = cands[0]
    for tk in cands:
        if 2 * tk * ocp * 2 <= budget:
            best = tk
    return best


def _choose_tm(mp, tk, ocp, out_bytes, budget):
    """TM from divisors of Mp (multiple of 8), preferring mt >= 2 (v7x
    megacore) and the largest tile whose pipeline footprint fits `budget`."""
    cands = [d for d in range(8, min(mp, TM_MAX) + 1, 8) if mp % d == 0]
    if not cands:
        cands = [mp]

    def footprint(tm):
        return (2 * tm * tk * 2            # patches (double-buffered, bf16)
                + 2 * tk * ocp * 2         # weight panel (bf16)
                + 2 * tm * ocp * out_bytes  # output tiles
                + tm * ocp * 4             # f32 accumulator scratch
                + 8 * ocp * 4)             # bias / per-tile stats blocks

    best = None
    for tm in cands:                       # ascending -> keep the largest
        if mp // tm >= 2 and footprint(tm) <= budget:
            best = tm
    if best is None:
        for tm in cands:
            if footprint(tm) <= budget:
                best = tm
    if best is None:
        best = cands[0]
    return best


# ----------------------------------------------------------------------------
# Pallas kernels
# ----------------------------------------------------------------------------
def _gemm_bias_act(patches, weight, bias, *, act=True, out_dtype=jnp.bfloat16):
    """(Mp,Kp)bf16 @ (Kp,OCp)bf16 + bias, optional LeakyReLU.  Grid (M, K)."""
    Mp, Kp = patches.shape
    OCp = weight.shape[1]
    ob = jnp.dtype(out_dtype).itemsize
    TK = _choose_tk(Kp, OCp, TILE_BUDGET // 2)
    TM = _choose_tm(Mp, TK, OCp, ob, TILE_BUDGET)
    mt, kt = Mp // TM, Kp // TK

    def kernel(p_ref, w_ref, b_ref, o_ref, acc_ref):
        k = pl.program_id(1)

        @pl.when(k == 0)
        def _():
            acc_ref[...] = jnp.zeros_like(acc_ref)

        acc_ref[...] += jnp.dot(p_ref[...], w_ref[...],
                                preferred_element_type=jnp.float32)

        @pl.when(k == pl.num_programs(1) - 1)
        def _():
            y = acc_ref[...] + b_ref[...]
            if act:
                y = _leaky(y)
            o_ref[...] = y.astype(o_ref.dtype)

    return pl.pallas_call(
        kernel,
        out_shape=jax.ShapeDtypeStruct((Mp, OCp), out_dtype),
        grid_spec=pltpu.PrefetchScalarGridSpec(
            num_scalar_prefetch=0,
            grid=(mt, kt),
            in_specs=[
                pl.BlockSpec((TM, TK), lambda m, k: (m, k)),
                pl.BlockSpec((TK, OCp), lambda m, k: (k, 0)),
                pl.BlockSpec((1, OCp), lambda m, k: (0, 0)),
            ],
            out_specs=pl.BlockSpec((TM, OCp), lambda m, k: (m, 0)),
            scratch_shapes=[pltpu.VMEM((TM, OCp), jnp.float32)],
        ),
        compiler_params=pltpu.CompilerParams(
            dimension_semantics=("parallel", "arbitrary"),
            vmem_limit_bytes=VMEM_LIMIT,
        ),
    )(patches, weight, bias)


def _gemm_bn_stats(patches, weight):
    """Tiled GEMM emitting bf16 pre-BN output + per-M-tile channel sum/sumsq
    (computed from the f32 VMEM accumulator before the bf16 cast)."""
    Mp, Kp = patches.shape
    OCp = weight.shape[1]
    TK = _choose_tk(Kp, OCp, TILE_BUDGET // 2)
    TM = _choose_tm(Mp, TK, OCp, 2, TILE_BUDGET)
    mt, kt = Mp // TM, Kp // TK

    def kernel(p_ref, w_ref, y_ref, ssum_ref, ssq_ref, acc_ref):
        k = pl.program_id(1)

        @pl.when(k == 0)
        def _():
            acc_ref[...] = jnp.zeros_like(acc_ref)

        acc_ref[...] += jnp.dot(p_ref[...], w_ref[...],
                                preferred_element_type=jnp.float32)

        @pl.when(k == pl.num_programs(1) - 1)
        def _():
            y = acc_ref[...]
            ssum_ref[0] = jnp.sum(y, axis=0, keepdims=True)
            ssq_ref[0] = jnp.sum(y * y, axis=0, keepdims=True)
            y_ref[...] = y.astype(y_ref.dtype)

    y, ssum, ssq = pl.pallas_call(
        kernel,
        out_shape=(
            jax.ShapeDtypeStruct((Mp, OCp), jnp.bfloat16),
            jax.ShapeDtypeStruct((mt, 1, OCp), jnp.float32),
            jax.ShapeDtypeStruct((mt, 1, OCp), jnp.float32),
        ),
        grid_spec=pltpu.PrefetchScalarGridSpec(
            num_scalar_prefetch=0,
            grid=(mt, kt),
            in_specs=[
                pl.BlockSpec((TM, TK), lambda m, k: (m, k)),
                pl.BlockSpec((TK, OCp), lambda m, k: (k, 0)),
            ],
            out_specs=[
                pl.BlockSpec((TM, OCp), lambda m, k: (m, 0)),
                pl.BlockSpec((1, 1, OCp), lambda m, k: (m, 0, 0)),
                pl.BlockSpec((1, 1, OCp), lambda m, k: (m, 0, 0)),
            ],
            scratch_shapes=[pltpu.VMEM((TM, OCp), jnp.float32)],
        ),
        compiler_params=pltpu.CompilerParams(
            dimension_semantics=("parallel", "arbitrary"),
            vmem_limit_bytes=VMEM_LIMIT,
        ),
    )(patches, weight)
    return y, ssum, ssq


def _head_matvec(patches, w_row, bias):
    """Single-output-channel conv head as a VPU matvec:
    y[m] = sum_k p[m,k] * w[k] + b.  Avoids a 128x zero-column padded GEMM."""
    Mp, Kp = patches.shape

    cands = [d for d in range(8, min(Mp, TM_MAX) + 1, 8) if Mp % d == 0]
    if not cands:
        cands = [Mp]

    def fits(tm):
        return 2 * tm * Kp * 2 + 2 * Kp * 4 + 2 * tm * 4 <= TILE_BUDGET

    TM = None
    for tm in cands:
        if Mp // tm >= 2 and fits(tm):
            TM = tm
    if TM is None:
        for tm in cands:
            if fits(tm):
                TM = tm
    if TM is None:
        TM = cands[0]
    mt = Mp // TM

    def kernel(p_ref, w_ref, b_ref, o_ref):
        prod = p_ref[...].astype(jnp.float32) * w_ref[...]
        o_ref[...] = jnp.sum(prod, axis=1, keepdims=True) + b_ref[...]

    return pl.pallas_call(
        kernel,
        out_shape=jax.ShapeDtypeStruct((Mp, 1), jnp.float32),
        grid_spec=pltpu.PrefetchScalarGridSpec(
            num_scalar_prefetch=0,
            grid=(mt,),
            in_specs=[
                pl.BlockSpec((TM, Kp), lambda m: (m, 0)),
                pl.BlockSpec((1, Kp), lambda m: (0, 0)),
                pl.BlockSpec((1, 1), lambda m: (0, 0)),
            ],
            out_specs=pl.BlockSpec((TM, 1), lambda m: (m, 0)),
        ),
        compiler_params=pltpu.CompilerParams(
            dimension_semantics=("parallel",),
            vmem_limit_bytes=VMEM_LIMIT,
        ),
    )(patches, w_row, bias)


# ----------------------------------------------------------------------------
# Plain-JAX glue: im2col patch extraction (bf16), with the previous layer's
# BN affine + LeakyReLU fused into the gather.
# ----------------------------------------------------------------------------
def _im2col(x_nhwc, kh, kw, stride, pad, kp, scale=None, shift=None):
    if scale is not None:
        # Previous layer's BatchNorm affine + LeakyReLU, applied BEFORE the
        # zero padding so the conv's padding is exactly zero (matches PyTorch
        # activation -> Conv2d(padding=1) ordering).
        x_nhwc = _leaky(x_nhwc.astype(jnp.float32) * scale + shift)
    x_nhwc = x_nhwc.astype(jnp.bfloat16)
    N, H, W, C = x_nhwc.shape
    xp = jnp.pad(x_nhwc, ((0, 0), (pad, pad), (pad, pad), (0, 0)))
    OH = (H + 2 * pad - kh) // stride + 1
    OW = (W + 2 * pad - kw) // stride + 1
    cols = []
    for i in range(kh):
        for j in range(kw):
            cols.append(xp[:, i:i + stride * OH:stride, j:j + stride * OW:stride, :])
    # patch feature ordering: (kh, kw, C) — matches the weight layout below
    patches = jnp.stack(cols, axis=3).reshape(N * OH * OW, kh * kw * C)
    M, K = patches.shape
    Mp = _round_up(M, 8)
    patches = jnp.pad(patches, ((0, Mp - M), (0, kp - K)))
    return patches, M, OH, OW


# ----------------------------------------------------------------------------
# Conv layer wrappers
# ----------------------------------------------------------------------------
def _conv_bias_act(x, w, b, oc, stride, pad):
    N = x.shape[0]
    patches, M, OH, OW = _im2col(x, 4, 4, stride, pad, w.shape[0])
    out = _gemm_bias_act(patches, w, b, act=True, out_dtype=jnp.bfloat16)
    return out[:M, :oc].reshape(N, OH, OW, oc)


def _conv_bn(x, w, gamma, beta, oc, stride, pad, scale=None, shift=None):
    """Conv (bias=False) + batch-stat BatchNorm.  Returns the PRE-affine bf16
    activation plus this layer's (scale, shift); the affine + LeakyReLU is
    applied by the next layer's im2col."""
    N = x.shape[0]
    patches, M, OH, OW = _im2col(x, 4, 4, stride, pad, w.shape[0], scale, shift)
    y, ssum, ssq = _gemm_bn_stats(patches, w)
    # Padded patch rows and padded weight columns are exact zeros, so they
    # contribute nothing to the partial sums; divide by the real element
    # count M (= N*OH*OW) -> biased variance, like PyTorch BN in train mode.
    s = jnp.sum(ssum, axis=0)[0, :oc]
    sq = jnp.sum(ssq, axis=0)[0, :oc]
    mean = s / M
    # TODO(synk): E[x^2]-E[x]^2 can cancel when |mean| >> std; fine for
    # init-scale activations here — use Chan's pairwise combine on the
    # per-tile partials if reused in a regime with large channel means.
    var = jnp.maximum(sq / M - mean * mean, 0.0)
    new_scale = gamma * jax.lax.rsqrt(var + BN_EPS)
    new_shift = beta - mean * new_scale
    y = y[:M, :oc].reshape(N, OH, OW, oc)
    return y, new_scale, new_shift


def _conv_head(x, w_row, b, stride, pad, scale, shift):
    N = x.shape[0]
    patches, M, OH, OW = _im2col(x, 4, 4, stride, pad, w_row.shape[1],
                                 scale, shift)
    out = _head_matvec(patches, w_row, b)
    return out[:M, :].reshape(N, OH, OW, 1)


# ----------------------------------------------------------------------------
# Parameter initialization (xavier_uniform like params_init); GEMM-layout /
# padded / bf16 weights prepared ONCE here (hoisted out of the forward pass).
# ----------------------------------------------------------------------------
def _xavier_uniform(key, shape):
    oc, ic, kh, kw = shape
    fan_in, fan_out = ic * kh * kw, oc * kh * kw
    bound = math.sqrt(6.0 / (fan_in + fan_out))
    return jax.random.uniform(key, shape, jnp.float32, -bound, bound)


def _prep_weight(w_oihw):
    # (OC, IC, KH, KW) -> (KH*KW*IC, OC), K and OC padded to 128-multiples.
    OC, IC, KH, KW = w_oihw.shape
    K = KH * KW * IC
    Kp, OCp = _round_up(K, 128), _round_up(OC, 128)
    w = jnp.transpose(w_oihw, (2, 3, 1, 0)).reshape(K, OC)
    w = jnp.pad(w, ((0, Kp - K), (0, OCp - OC)))
    return w.astype(jnp.bfloat16)


def _prep_head_weight(w_oihw):
    # (1, IC, KH, KW) -> (1, KH*KW*IC) f32 row for the VPU matvec head.
    _, IC, KH, KW = w_oihw.shape
    K = KH * KW * IC
    Kp = _round_up(K, 128)
    w = jnp.transpose(w_oihw, (2, 3, 1, 0)).reshape(K, 1).T
    return jnp.pad(w, ((0, 0), (0, Kp - K))).astype(jnp.float32)


def init_critic_params(key, dim=64, n_channels=N_CHANNELS):
    ks = jax.random.split(key, 5)
    shapes = [
        (dim * 1, n_channels, 4, 4),
        (dim * 2, dim * 1, 4, 4),
        (dim * 4, dim * 2, 4, 4),
        (dim * 8, dim * 4, 4, 4),
        (1, dim * 8, 4, 4),
    ]
    ws = [_xavier_uniform(k, s) for k, s in zip(ks, shapes)]
    oc1p = _round_up(dim, 128)
    return {
        "w1": _prep_weight(ws[0]),
        "b1": jnp.zeros((1, oc1p), jnp.float32),
        "w2": _prep_weight(ws[1]),
        "g2": jnp.ones((dim * 2,), jnp.float32),
        "be2": jnp.zeros((dim * 2,), jnp.float32),
        "w3": _prep_weight(ws[2]),
        "g3": jnp.ones((dim * 4,), jnp.float32),
        "be3": jnp.zeros((dim * 4,), jnp.float32),
        "w4": _prep_weight(ws[3]),
        "g4": jnp.ones((dim * 8,), jnp.float32),
        "be4": jnp.zeros((dim * 8,), jnp.float32),
        "w5": _prep_head_weight(ws[4]),
        "b5": jnp.zeros((1, 1), jnp.float32),
    }


# ----------------------------------------------------------------------------
# Critic forward: input/output in NCHW (PyTorch convention).
# ----------------------------------------------------------------------------
def critic_forward(params, x_nchw, *, dim):
    x = jnp.transpose(x_nchw, (0, 2, 3, 1))  # NHWC

    # Conv(IC, dim, 4, 2, 1) + bias + LeakyReLU(0.2)  (fused GEMM epilogue)
    x = _conv_bias_act(x, params["w1"], params["b1"], dim * 1, 2, 1)
    # Conv(..., bias=False) + BatchNorm + LeakyReLU(0.2); the affine+leaky of
    # each BN layer is fused into the NEXT layer's im2col gather.
    x, sc, sh = _conv_bn(x, params["w2"], params["g2"], params["be2"],
                         dim * 2, 2, 1)
    x, sc, sh = _conv_bn(x, params["w3"], params["g3"], params["be3"],
                         dim * 4, 2, 1, scale=sc, shift=sh)
    x, sc, sh = _conv_bn(x, params["w4"], params["g4"], params["be4"],
                         dim * 8, 1, 1, scale=sc, shift=sh)
    # Conv(8dim, 1, 4, 1, 1) + bias  (VPU matvec head)
    x = _conv_head(x, params["w5"], params["b5"], 1, 1, scale=sc, shift=sh)

    return jnp.transpose(x, (0, 3, 1, 2)).astype(jnp.float32)  # -> NCHW


if __name__ == "__main__":
    key = jax.random.PRNGKey(0)
    kp, kx = jax.random.split(key)

    dim = 16  # small instantiation of Critic(dim=...) for the test
    params = init_critic_params(kp, dim=dim, n_channels=N_CHANNELS)

    # NCHW input; 32x32 so the stride-2 / stride-1 conv stack stays valid:
    # 32 -> 16 -> 8 -> 4 -> 3 -> 2 spatial.
    x = jax.random.normal(kx, (2, N_CHANNELS, 32, 32), jnp.float32)

    fwd = jax.jit(functools.partial(critic_forward, dim=dim))
    out = fwd(params, x)
    out = jax.block_until_ready(out)

    assert out.shape == (2, 1, 2, 2), out.shape
    assert jnp.all(jnp.isfinite(out))
    print("KERNEL_OK")
</pallas_src>

<mosaic_0001>
module attributes {stable_mosaic.version = 11 : i64} {
  func.func @kernel(%arg0: i32, %arg1: i32, %arg2: memref<256x128xbf16, #tpu.memory_space<vmem>>, %arg3: memref<128x128xbf16, #tpu.memory_space<vmem>>, %arg4: memref<1x128xf32, #tpu.memory_space<vmem>>, %arg5: memref<256x128xbf16, #tpu.memory_space<vmem>>, %arg6: memref<256x128xf32, #tpu.memory_space<vmem>>) attributes {dimension_semantics = [#tpu.dimension_semantics<parallel>, #tpu.dimension_semantics<arbitrary>], iteration_bounds = array<i64: 2, 1>, scalar_prefetch = 0 : i64, scratch_operands = 1 : i64, tpu.core_type = #tpu.core_type<tc>, window_params = [{transform_indices = @transform_0, window_bounds = array<i64: 256, 128>}, {transform_indices = @transform_1, window_bounds = array<i64: 128, 128>}, {pipeline_mode = #tpu.pipeline_mode<synchronous>, transform_indices = @transform_2, window_bounds = array<i64: 1, 128>}, {transform_indices = @transform_3, window_bounds = array<i64: 256, 128>}]} {
    %c0_i32 = arith.constant 0 : i32
    %0 = arith.cmpi eq, %arg1, %c0_i32 : i32
    %1 = arith.extui %0 : i1 to i32
    %c0_i32_0 = arith.constant 0 : i32
    %2 = arith.cmpi ne, %1, %c0_i32_0 : i32
    scf.if %2 {
      %cst_10 = arith.constant 0.000000e+00 : f32
      %12 = vector.broadcast %cst_10 : f32 to vector<256x128xf32>
      %c0_11 = arith.constant 0 : index
      %c0_12 = arith.constant 0 : index
      %13 = vector.load %arg6[%c0_11, %c0_12] : memref<256x128xf32, #tpu.memory_space<vmem>>, vector<256x128xf32>
      tpu.vector_store %arg6[%c0_11, %c0_12], %12 {strides = array<i32>} : memref<256x128xf32, #tpu.memory_space<vmem>>, vector<256x128xf32>,
    } else {
    }
    %c0 = arith.constant 0 : index
    %c0_1 = arith.constant 0 : index
    %3 = vector.load %arg6[%c0, %c0_1] : memref<256x128xf32, #tpu.memory_space<vmem>>, vector<256x128xf32>
    %c0_2 = arith.constant 0 : index
    %c0_3 = arith.constant 0 : index
    %4 = vector.load %arg2[%c0_2, %c0_3] : memref<256x128xbf16, #tpu.memory_space<vmem>>, vector<256x128xbf16>
    %c0_4 = arith.constant 0 : index
    %c0_5 = arith.constant 0 : index
    %5 = vector.load %arg3[%c0_4, %c0_5] : memref<128x128xbf16, #tpu.memory_space<vmem>>, vector<128x128xbf16>
    %cst = arith.constant dense<0.000000e+00> : vector<256x128xf32>
    %6 = tpu.matmul %4, %5, %cst {dimension_numbers = #tpu.dot_dimension_numbers<[1], [0], [0], [1], [0, 0, 1, 1], [], []>} : vector<256x128xbf16>, vector<128x128xbf16>, vector<256x128xf32> -> vector<256x128xf32>
    %7 = arith.addf %3, %6 : vector<256x128xf32>
    %c0_6 = arith.constant 0 : index
    %c0_7 = arith.constant 0 : index
    %8 = vector.load %arg6[%c0_6, %c0_7] : memref<256x128xf32, #tpu.memory_space<vmem>>, vector<256x128xf32>
    tpu.vector_store %arg6[%c0_6, %c0_7], %7 {strides = array<i32>} : memref<256x128xf32, #tpu.memory_space<vmem>>, vector<256x128xf32>,
    %c0_i32_8 = arith.constant 0 : i32
    %9 = arith.cmpi eq, %arg1, %c0_i32_8 : i32
    %10 = arith.extui %9 : i1 to i32
    %c0_i32_9 = arith.constant 0 : i32
    %11 = arith.cmpi ne, %10, %c0_i32_9 : i32
    scf.if %11 {
      %c0_10 = arith.constant 0 : index
      %c0_11 = arith.constant 0 : index
      %12 = vector.load %arg6[%c0_10, %c0_11] : memref<256x128xf32, #tpu.memory_space<vmem>>, vector<256x128xf32>
      %c0_12 = arith.constant 0 : index
      %c0_13 = arith.constant 0 : index
      %13 = vector.load %arg4[%c0_12, %c0_13] : memref<1x128xf32, #tpu.memory_space<vmem>>, vector<1x128xf32>
      %14 = vector.broadcast %13 : vector<1x128xf32> to vector<256x128xf32>
      %15 = arith.addf %12, %14 : vector<256x128xf32>
      %cst_14 = arith.constant 2.000000e-01 : f32
      %16 = vector.broadcast %cst_14 : f32 to vector<256x128xf32>
      %17 = arith.mulf %16, %15 : vector<256x128xf32>
      %18 = arith.maximumf %15, %17 : vector<256x128xf32>
      %19 = arith.truncf %18 : vector<256x128xf32> to vector<256x128xbf16>
      %c0_15 = arith.constant 0 : index
      %c0_16 = arith.constant 0 : index
      %20 = vector.load %arg5[%c0_15, %c0_16] : memref<256x128xbf16, #tpu.memory_space<vmem>>, vector<256x128xbf16>
      tpu.vector_store %arg5[%c0_15, %c0_16], %19 {strides = array<i32>} : memref<256x128xbf16, #tpu.memory_space<vmem>>, vector<256x128xbf16>,
    } else {
    }
    return
  }
  func.func @transform_0(%arg0: i32, %arg1: i32) -> (i32, i32) {
    %c0_i32 = arith.constant 0 : i32
    return %arg0, %arg1 : i32, i32
  }
  func.func @transform_1(%arg0: i32, %arg1: i32) -> (i32, i32) {
    %c0_i32 = arith.constant 0 : i32
    %c0_i32_0 = arith.constant 0 : i32
    return %arg1, %c0_i32 : i32, i32
  }
  func.func @transform_2(%arg0: i32, %arg1: i32) -> (i32, i32) {
    %c0_i32 = arith.constant 0 : i32
    %c0_i32_0 = arith.constant 0 : i32
    %c0_i32_1 = arith.constant 0 : i32
    return %c0_i32, %c0_i32_0 : i32, i32
  }
  func.func @transform_3(%arg0: i32, %arg1: i32) -> (i32, i32) {
    %c0_i32 = arith.constant 0 : i32
    %c0_i32_0 = arith.constant 0 : i32
    return %arg0, %c0_i32 : i32, i32
  }
}

module attributes {stable_mosaic.version = 11 : i64} {
  func.func @kernel(%arg0: i32, %arg1: i32, %arg2: memref<64x256xbf16, #tpu.memory_space<vmem>>, %arg3: memref<256x128xbf16, #tpu.memory_space<vmem>>, %arg4: memref<64x128xbf16, #tpu.memory_space<vmem>>, %arg5: memref<1x1x128xf32, #tpu.memory_space<vmem>>, %arg6: memref<1x1x128xf32, #tpu.memory_space<vmem>>, %arg7: memref<64x128xf32, #tpu.memory_space<vmem>>) attributes {dimension_semantics = [#tpu.dimension_semantics<parallel>, #tpu.dimension_semantics<arbitrary>], iteration_bounds = array<i64: 2, 1>, scalar_prefetch = 0 : i64, scratch_operands = 1 : i64, tpu.core_type = #tpu.core_type<tc>, window_params = [{transform_indices = @transform_0, window_bounds = array<i64: 64, 256>}, {transform_indices = @transform_1, window_bounds = array<i64: 256, 128>}, {transform_indices = @transform_2, window_bounds = array<i64: 64, 128>}, {transform_indices = @transform_3, window_bounds = array<i64: 1, 1, 128>}, {transform_indices = @transform_4, window_bounds = array<i64: 1, 1, 128>}]} {
    %c0_i32 = arith.constant 0 : i32
    %0 = arith.cmpi eq, %arg1, %c0_i32 : i32
    %1 = arith.extui %0 : i1 to i32
    %c0_i32_0 = arith.constant 0 : i32
    %2 = arith.cmpi ne, %1, %c0_i32_0 : i32
    scf.if %2 {
      %cst_10 = arith.constant 0.000000e+00 : f32
      %12 = vector.broadcast %cst_10 : f32 to vector<64x128xf32>
      %c0_11 = arith.constant 0 : index
      %c0_12 = arith.constant 0 : index
      %13 = vector.load %arg7[%c0_11, %c0_12] : memref<64x128xf32, #tpu.memory_space<vmem>>, vector<64x128xf32>
      tpu.vector_store %arg7[%c0_11, %c0_12], %12 {strides = array<i32>} : memref<64x128xf32, #tpu.memory_space<vmem>>, vector<64x128xf32>,
    } else {
    }
    %c0 = arith.constant 0 : index
    %c0_1 = arith.constant 0 : index
    %3 = vector.load %arg7[%c0, %c0_1] : memref<64x128xf32, #tpu.memory_space<vmem>>, vector<64x128xf32>
    %c0_2 = arith.constant 0 : index
    %c0_3 = arith.constant 0 : index
    %4 = vector.load %arg2[%c0_2, %c0_3] : memref<64x256xbf16, #tpu.memory_space<vmem>>, vector<64x256xbf16>
    %c0_4 = arith.constant 0 : index
    %c0_5 = arith.constant 0 : index
    %5 = vector.load %arg3[%c0_4, %c0_5] : memref<256x128xbf16, #tpu.memory_space<vmem>>, vector<256x128xbf16>
    %cst = arith.constant dense<0.000000e+00> : vector<64x128xf32>
    %6 = tpu.matmul %4, %5, %cst {dimension_numbers = #tpu.dot_dimension_numbers<[1], [0], [0], [1], [0, 0, 1, 1], [], []>} : vector<64x256xbf16>, vector<256x128xbf16>, vector<64x128xf32> -> vector<64x128xf32>
    %7 = arith.addf %3, %6 : vector<64x128xf32>
    %c0_6 = arith.constant 0 : index
    %c0_7 = arith.constant 0 : index
    %8 = vector.load %arg7[%c0_6, %c0_7] : memref<64x128xf32, #tpu.memory_space<vmem>>, vector<64x128xf32>
    tpu.vector_store %arg7[%c0_6, %c0_7], %7 {strides = array<i32>} : memref<64x128xf32, #tpu.memory_space<vmem>>, vector<64x128xf32>,
    %c0_i32_8 = arith.constant 0 : i32
    %9 = arith.cmpi eq, %arg1, %c0_i32_8 : i32
    %10 = arith.extui %9 : i1 to i32
    %c0_i32_9 = arith.constant 0 : i32
    %11 = arith.cmpi ne, %10, %c0_i32_9 : i32
    scf.if %11 {
      %c0_10 = arith.constant 0 : index
      %c0_11 = arith.constant 0 : index
      %12 = vector.load %arg7[%c0_10, %c0_11] : memref<64x128xf32, #tpu.memory_space<vmem>>, vector<64x128xf32>
      %cst_12 = arith.constant dense<0.000000e+00> : vector<128xf32>
      %13 = vector.multi_reduction <add>, %12, %cst_12 [0] : vector<64x128xf32> to vector<128xf32>
      %14 = vector.shape_cast %13 : vector<128xf32> to vector<1x128xf32>
      %c0_13 = arith.constant 0 : index
      %c0_14 = arith.constant 0 : index
      %c0_15 = arith.constant 0 : index
      %15 = vector.load %arg5[%c0_13, %c0_14, %c0_15] : memref<1x1x128xf32, #tpu.memory_space<vmem>>, vector<1x1x128xf32>
      %16 = vector.shape_cast %15 : vector<1x1x128xf32> to vector<1x128xf32>
      %17 = vector.shape_cast %14 : vector<1x128xf32> to vector<1x1x128xf32>
      tpu.vector_store %arg5[%c0_13, %c0_14, %c0_15], %17 {strides = array<i32>} : memref<1x1x128xf32, #tpu.memory_space<vmem>>, vector<1x1x128xf32>,
      %18 = arith.mulf %12, %12 : vector<64x128xf32>
      %cst_16 = arith.constant dense<0.000000e+00> : vector<128xf32>
      %19 = vector.multi_reduction <add>, %18, %cst_16 [0] : vector<64x128xf32> to vector<128xf32>
      %20 = vector.shape_cast %19 : vector<128xf32> to vector<1x128xf32>
      %c0_17 = arith.constant 0 : index
      %c0_18 = arith.constant 0 : index
      %c0_19 = arith.constant 0 : index
      %21 = vector.load %arg6[%c0_17, %c0_18, %c0_19] : memref<1x1x128xf32, #tpu.memory_space<vmem>>, vector<1x1x128xf32>
      %22 = vector.shape_cast %21 : vector<1x1x128xf32> to vector<1x128xf32>
      %23 = vector.shape_cast %20 : vector<1x128xf32> to vector<1x1x128xf32>
      tpu.vector_store %arg6[%c0_17, %c0_18, %c0_19], %23 {strides = array<i32>} : memref<1x1x128xf32, #tpu.memory_space<vmem>>, vector<1x1x128xf32>,
      %24 = arith.truncf %12 : vector<64x128xf32> to vector<64x128xbf16>
      %c0_20 = arith.constant 0 : index
      %c0_21 = arith.constant 0 : index
      %25 = vector.load %arg4[%c0_20, %c0_21] : memref<64x128xbf16, #tpu.memory_space<vmem>>, vector<64x128xbf16>
      tpu.vector_store %arg4[%c0_20, %c0_21], %24 {strides = array<i32>} : memref<64x128xbf16, #tpu.memory_space<vmem>>, vector<64x128xbf16>,
    } else {
    }
    return
  }
  func.func @transform_0(%arg0: i32, %arg1: i32) -> (i32, i32) {
    %c0_i32 = arith.constant 0 : i32
    return %arg0, %arg1 : i32, i32
  }
  func.func @transform_1(%arg0: i32, %arg1: i32) -> (i32, i32) {
    %c0_i32 = arith.constant 0 : i32
    %c0_i32_0 = arith.constant 0 : i32
    return %arg1, %c0_i32 : i32, i32
  }
  func.func @transform_2(%arg0: i32, %arg1: i32) -> (i32, i32) {
    %c0_i32 = arith.constant 0 : i32
    %c0_i32_0 = arith.constant 0 : i32
    return %arg0, %c0_i32 : i32, i32
  }
  func.func @transform_3(%arg0: i32, %arg1: i32) -> (i32, i32, i32) {
    %c0_i32 = arith.constant 0 : i32
    %c0_i32_0 = arith.constant 0 : i32
    %c0_i32_1 = arith.constant 0 : i32
    return %arg0, %c0_i32, %c0_i32_0 : i32, i32, i32
  }
  func.func @transform_4(%arg0: i32, %arg1: i32) -> (i32, i32, i32) {
    %c0_i32 = arith.constant 0 : i32
    %c0_i32_0 = arith.constant 0 : i32
    %c0_i32_1 = arith.constant 0 : i32
    return %arg0, %c0_i32, %c0_i32_0 : i32, i32, i32
  }
}

module attributes {stable_mosaic.version = 11 : i64} {
  func.func @kernel(%arg0: i32, %arg1: i32, %arg2: memref<16x512xbf16, #tpu.memory_space<vmem>>, %arg3: memref<512x128xbf16, #tpu.memory_space<vmem>>, %arg4: memref<16x128xbf16, #tpu.memory_space<vmem>>, %arg5: memref<1x1x128xf32, #tpu.memory_space<vmem>>, %arg6: memref<1x1x128xf32, #tpu.memory_space<vmem>>, %arg7: memref<16x128xf32, #tpu.memory_space<vmem>>) attributes {dimension_semantics = [#tpu.dimension_semantics<parallel>, #tpu.dimension_semantics<arbitrary>], iteration_bounds = array<i64: 2, 1>, scalar_prefetch = 0 : i64, scratch_operands = 1 : i64, tpu.core_type = #tpu.core_type<tc>, window_params = [{transform_indices = @transform_0, window_bounds = array<i64: 16, 512>}, {transform_indices = @transform_1, window_bounds = array<i64: 512, 128>}, {transform_indices = @transform_2, window_bounds = array<i64: 16, 128>}, {transform_indices = @transform_3, window_bounds = array<i64: 1, 1, 128>}, {transform_indices = @transform_4, window_bounds = array<i64: 1, 1, 128>}]} {
    %c0_i32 = arith.constant 0 : i32
    %0 = arith.cmpi eq, %arg1, %c0_i32 : i32
    %1 = arith.extui %0 : i1 to i32
    %c0_i32_0 = arith.constant 0 : i32
    %2 = arith.cmpi ne, %1, %c0_i32_0 : i32
    scf.if %2 {
      %cst_10 = arith.constant 0.000000e+00 : f32
      %12 = vector.broadcast %cst_10 : f32 to vector<16x128xf32>
      %c0_11 = arith.constant 0 : index
      %c0_12 = arith.constant 0 : index
      %13 = vector.load %arg7[%c0_11, %c0_12] : memref<16x128xf32, #tpu.memory_space<vmem>>, vector<16x128xf32>
      tpu.vector_store %arg7[%c0_11, %c0_12], %12 {strides = array<i32>} : memref<16x128xf32, #tpu.memory_space<vmem>>, vector<16x128xf32>,
    } else {
    }
    %c0 = arith.constant 0 : index
    %c0_1 = arith.constant 0 : index
    %3 = vector.load %arg7[%c0, %c0_1] : memref<16x128xf32, #tpu.memory_space<vmem>>, vector<16x128xf32>
    %c0_2 = arith.constant 0 : index
    %c0_3 = arith.constant 0 : index
    %4 = vector.load %arg2[%c0_2, %c0_3] : memref<16x512xbf16, #tpu.memory_space<vmem>>, vector<16x512xbf16>
    %c0_4 = arith.constant 0 : index
    %c0_5 = arith.constant 0 : index
    %5 = vector.load %arg3[%c0_4, %c0_5] : memref<512x128xbf16, #tpu.memory_space<vmem>>, vector<512x128xbf16>
    %cst = arith.constant dense<0.000000e+00> : vector<16x128xf32>
    %6 = tpu.matmul %4, %5, %cst {dimension_numbers = #tpu.dot_dimension_numbers<[1], [0], [0], [1], [0, 0, 1, 1], [], []>} : vector<16x512xbf16>, vector<512x128xbf16>, vector<16x128xf32> -> vector<16x128xf32>
    %7 = arith.addf %3, %6 : vector<16x128xf32>
    %c0_6 = arith.constant 0 : index
    %c0_7 = arith.constant 0 : index
    %8 = vector.load %arg7[%c0_6, %c0_7] : memref<16x128xf32, #tpu.memory_space<vmem>>, vector<16x128xf32>
    tpu.vector_store %arg7[%c0_6, %c0_7], %7 {strides = array<i32>} : memref<16x128xf32, #tpu.memory_space<vmem>>, vector<16x128xf32>,
    %c0_i32_8 = arith.constant 0 : i32
    %9 = arith.cmpi eq, %arg1, %c0_i32_8 : i32
    %10 = arith.extui %9 : i1 to i32
    %c0_i32_9 = arith.constant 0 : i32
    %11 = arith.cmpi ne, %10, %c0_i32_9 : i32
    scf.if %11 {
      %c0_10 = arith.constant 0 : index
      %c0_11 = arith.constant 0 : index
      %12 = vector.load %arg7[%c0_10, %c0_11] : memref<16x128xf32, #tpu.memory_space<vmem>>, vector<16x128xf32>
      %cst_12 = arith.constant dense<0.000000e+00> : vector<128xf32>
      %13 = vector.multi_reduction <add>, %12, %cst_12 [0] : vector<16x128xf32> to vector<128xf32>
      %14 = vector.shape_cast %13 : vector<128xf32> to vector<1x128xf32>
      %c0_13 = arith.constant 0 : index
      %c0_14 = arith.constant 0 : index
      %c0_15 = arith.constant 0 : index
      %15 = vector.load %arg5[%c0_13, %c0_14, %c0_15] : memref<1x1x128xf32, #tpu.memory_space<vmem>>, vector<1x1x128xf32>
      %16 = vector.shape_cast %15 : vector<1x1x128xf32> to vector<1x128xf32>
      %17 = vector.shape_cast %14 : vector<1x128xf32> to vector<1x1x128xf32>
      tpu.vector_store %arg5[%c0_13, %c0_14, %c0_15], %17 {strides = array<i32>} : memref<1x1x128xf32, #tpu.memory_space<vmem>>, vector<1x1x128xf32>,
      %18 = arith.mulf %12, %12 : vector<16x128xf32>
      %cst_16 = arith.constant dense<0.000000e+00> : vector<128xf32>
      %19 = vector.multi_reduction <add>, %18, %cst_16 [0] : vector<16x128xf32> to vector<128xf32>
      %20 = vector.shape_cast %19 : vector<128xf32> to vector<1x128xf32>
      %c0_17 = arith.constant 0 : index
      %c0_18 = arith.constant 0 : index
      %c0_19 = arith.constant 0 : index
      %21 = vector.load %arg6[%c0_17, %c0_18, %c0_19] : memref<1x1x128xf32, #tpu.memory_space<vmem>>, vector<1x1x128xf32>
      %22 = vector.shape_cast %21 : vector<1x1x128xf32> to vector<1x128xf32>
      %23 = vector.shape_cast %20 : vector<1x128xf32> to vector<1x1x128xf32>
      tpu.vector_store %arg6[%c0_17, %c0_18, %c0_19], %23 {strides = array<i32>} : memref<1x1x128xf32, #tpu.memory_space<vmem>>, vector<1x1x128xf32>,
      %24 = arith.truncf %12 : vector<16x128xf32> to vector<16x128xbf16>
      %c0_20 = arith.constant 0 : index
      %c0_21 = arith.constant 0 : index
      %25 = vector.load %arg4[%c0_20, %c0_21] : memref<16x128xbf16, #tpu.memory_space<vmem>>, vector<16x128xbf16>
      tpu.vector_store %arg4[%c0_20, %c0_21], %24 {strides = array<i32>} : memref<16x128xbf16, #tpu.memory_space<vmem>>, vector<16x128xbf16>,
    } else {
    }
    return
  }
  func.func @transform_0(%arg0: i32, %arg1: i32) -> (i32, i32) {
    %c0_i32 = arith.constant 0 : i32
    return %arg0, %arg1 : i32, i32
  }
  func.func @transform_1(%arg0: i32, %arg1: i32) -> (i32, i32) {
    %c0_i32 = arith.constant 0 : i32
    %c0_i32_0 = arith.constant 0 : i32
    return %arg1, %c0_i32 : i32, i32
  }
  func.func @transform_2(%arg0: i32, %arg1: i32) -> (i32, i32) {
    %c0_i32 = arith.constant 0 : i32
    %c0_i32_0 = arith.constant 0 : i32
    return %arg0, %c0_i32 : i32, i32
  }
  func.func @transform_3(%arg0: i32, %arg1: i32) -> (i32, i32, i32) {
    %c0_i32 = arith.constant 0 : i32
    %c0_i32_0 = arith.constant 0 : i32
    %c0_i32_1 = arith.constant 0 : i32
    return %arg0, %c0_i32, %c0_i32_0 : i32, i32, i32
  }
  func.func @transform_4(%arg0: i32, %arg1: i32) -> (i32, i32, i32) {
    %c0_i32 = arith.constant 0 : i32
    %c0_i32_0 = arith.constant 0 : i32
    %c0_i32_1 = arith.constant 0 : i32
    return %arg0, %c0_i32, %c0_i32_0 : i32, i32, i32
  }
}

module attributes {stable_mosaic.version = 11 : i64} {
  func.func @kernel(%arg0: i32, %arg1: i32, %arg2: memref<8x1024xbf16, #tpu.memory_space<vmem>>, %arg3: memref<1024x128xbf16, #tpu.memory_space<vmem>>, %arg4: memref<8x128xbf16, #tpu.memory_space<vmem>>, %arg5: memref<1x1x128xf32, #tpu.memory_space<vmem>>, %arg6: memref<1x1x128xf32, #tpu.memory_space<vmem>>, %arg7: memref<8x128xf32, #tpu.memory_space<vmem>>) attributes {dimension_semantics = [#tpu.dimension_semantics<parallel>, #tpu.dimension_semantics<arbitrary>], iteration_bounds = array<i64: 3, 1>, scalar_prefetch = 0 : i64, scratch_operands = 1 : i64, tpu.core_type = #tpu.core_type<tc>, window_params = [{transform_indices = @transform_0, window_bounds = array<i64: 8, 1024>}, {transform_indices = @transform_1, window_bounds = array<i64: 1024, 128>}, {transform_indices = @transform_2, window_bounds = array<i64: 8, 128>}, {transform_indices = @transform_3, window_bounds = array<i64: 1, 1, 128>}, {transform_indices = @transform_4, window_bounds = array<i64: 1, 1, 128>}]} {
    %c0_i32 = arith.constant 0 : i32
    %0 = arith.cmpi eq, %arg1, %c0_i32 : i32
    %1 = arith.extui %0 : i1 to i32
    %c0_i32_0 = arith.constant 0 : i32
    %2 = arith.cmpi ne, %1, %c0_i32_0 : i32
    scf.if %2 {
      %cst_10 = arith.constant 0.000000e+00 : f32
      %12 = vector.broadcast %cst_10 : f32 to vector<8x128xf32>
      %c0_11 = arith.constant 0 : index
      %c0_12 = arith.constant 0 : index
      %13 = vector.load %arg7[%c0_11, %c0_12] : memref<8x128xf32, #tpu.memory_space<vmem>>, vector<8x128xf32>
      tpu.vector_store %arg7[%c0_11, %c0_12], %12 {strides = array<i32>} : memref<8x128xf32, #tpu.memory_space<vmem>>, vector<8x128xf32>,
    } else {
    }
    %c0 = arith.constant 0 : index
    %c0_1 = arith.constant 0 : index
    %3 = vector.load %arg7[%c0, %c0_1] : memref<8x128xf32, #tpu.memory_space<vmem>>, vector<8x128xf32>
    %c0_2 = arith.constant 0 : index
    %c0_3 = arith.constant 0 : index
    %4 = vector.load %arg2[%c0_2, %c0_3] : memref<8x1024xbf16, #tpu.memory_space<vmem>>, vector<8x1024xbf16>
    %c0_4 = arith.constant 0 : index
    %c0_5 = arith.constant 0 : index
    %5 = vector.load %arg3[%c0_4, %c0_5] : memref<1024x128xbf16, #tpu.memory_space<vmem>>, vector<1024x128xbf16>
    %cst = arith.constant dense<0.000000e+00> : vector<8x128xf32>
    %6 = tpu.matmul %4, %5, %cst {dimension_numbers = #tpu.dot_dimension_numbers<[1], [0], [0], [1], [0, 0, 1, 1], [], []>} : vector<8x1024xbf16>, vector<1024x128xbf16>, vector<8x128xf32> -> vector<8x128xf32>
    %7 = arith.addf %3, %6 : vector<8x128xf32>
    %c0_6 = arith.constant 0 : index
    %c0_7 = arith.constant 0 : index
    %8 = vector.load %arg7[%c0_6, %c0_7] : memref<8x128xf32, #tpu.memory_space<vmem>>, vector<8x128xf32>
    tpu.vector_store %arg7[%c0_6, %c0_7], %7 {strides = array<i32>} : memref<8x128xf32, #tpu.memory_space<vmem>>, vector<8x128xf32>,
    %c0_i32_8 = arith.constant 0 : i32
    %9 = arith.cmpi eq, %arg1, %c0_i32_8 : i32
    %10 = arith.extui %9 : i1 to i32
    %c0_i32_9 = arith.constant 0 : i32
    %11 = arith.cmpi ne, %10, %c0_i32_9 : i32
    scf.if %11 {
      %c0_10 = arith.constant 0 : index
      %c0_11 = arith.constant 0 : index
      %12 = vector.load %arg7[%c0_10, %c0_11] : memref<8x128xf32, #tpu.memory_space<vmem>>, vector<8x128xf32>
      %cst_12 = arith.constant dense<0.000000e+00> : vector<128xf32>
      %13 = vector.multi_reduction <add>, %12, %cst_12 [0] : vector<8x128xf32> to vector<128xf32>
      %14 = vector.shape_cast %13 : vector<128xf32> to vector<1x128xf32>
      %c0_13 = arith.constant 0 : index
      %c0_14 = arith.constant 0 : index
      %c0_15 = arith.constant 0 : index
      %15 = vector.load %arg5[%c0_13, %c0_14, %c0_15] : memref<1x1x128xf32, #tpu.memory_space<vmem>>, vector<1x1x128xf32>
      %16 = vector.shape_cast %15 : vector<1x1x128xf32> to vector<1x128xf32>
      %17 = vector.shape_cast %14 : vector<1x128xf32> to vector<1x1x128xf32>
      tpu.vector_store %arg5[%c0_13, %c0_14, %c0_15], %17 {strides = array<i32>} : memref<1x1x128xf32, #tpu.memory_space<vmem>>, vector<1x1x128xf32>,
      %18 = arith.mulf %12, %12 : vector<8x128xf32>
      %cst_16 = arith.constant dense<0.000000e+00> : vector<128xf32>
      %19 = vector.multi_reduction <add>, %18, %cst_16 [0] : vector<8x128xf32> to vector<128xf32>
      %20 = vector.shape_cast %19 : vector<128xf32> to vector<1x128xf32>
      %c0_17 = arith.constant 0 : index
      %c0_18 = arith.constant 0 : index
      %c0_19 = arith.constant 0 : index
      %21 = vector.load %arg6[%c0_17, %c0_18, %c0_19] : memref<1x1x128xf32, #tpu.memory_space<vmem>>, vector<1x1x128xf32>
      %22 = vector.shape_cast %21 : vector<1x1x128xf32> to vector<1x128xf32>
      %23 = vector.shape_cast %20 : vector<1x128xf32> to vector<1x1x128xf32>
      tpu.vector_store %arg6[%c0_17, %c0_18, %c0_19], %23 {strides = array<i32>} : memref<1x1x128xf32, #tpu.memory_space<vmem>>, vector<1x1x128xf32>,
      %24 = arith.truncf %12 : vector<8x128xf32> to vector<8x128xbf16>
      %c0_20 = arith.constant 0 : index
      %c0_21 = arith.constant 0 : index
      %25 = vector.load %arg4[%c0_20, %c0_21] : memref<8x128xbf16, #tpu.memory_space<vmem>>, vector<8x128xbf16>
      tpu.vector_store %arg4[%c0_20, %c0_21], %24 {strides = array<i32>} : memref<8x128xbf16, #tpu.memory_space<vmem>>, vector<8x128xbf16>,
    } else {
    }
    return
  }
  func.func @transform_0(%arg0: i32, %arg1: i32) -> (i32, i32) {
    %c0_i32 = arith.constant 0 : i32
    return %arg0, %arg1 : i32, i32
  }
  func.func @transform_1(%arg0: i32, %arg1: i32) -> (i32, i32) {
    %c0_i32 = arith.constant 0 : i32
    %c0_i32_0 = arith.constant 0 : i32
    return %arg1, %c0_i32 : i32, i32
  }
  func.func @transform_2(%arg0: i32, %arg1: i32) -> (i32, i32) {
    %c0_i32 = arith.constant 0 : i32
    %c0_i32_0 = arith.constant 0 : i32
    return %arg0, %c0_i32 : i32, i32
  }
  func.func @transform_3(%arg0: i32, %arg1: i32) -> (i32, i32, i32) {
    %c0_i32 = arith.constant 0 : i32
    %c0_i32_0 = arith.constant 0 : i32
    %c0_i32_1 = arith.constant 0 : i32
    return %arg0, %c0_i32, %c0_i32_0 : i32, i32, i32
  }
  func.func @transform_4(%arg0: i32, %arg1: i32) -> (i32, i32, i32) {
    %c0_i32 = arith.constant 0 : i32
    %c0_i32_0 = arith.constant 0 : i32
    %c0_i32_1 = arith.constant 0 : i32
    return %arg0, %c0_i32, %c0_i32_0 : i32, i32, i32
  }
}

module attributes {stable_mosaic.version = 11 : i64} {
  func.func @kernel(%arg0: i32, %arg1: memref<8x2048xbf16, #tpu.memory_space<vmem>>, %arg2: memref<1x2048xf32, #tpu.memory_space<vmem>>, %arg3: memref<1x1xf32, #tpu.memory_space<vmem>>, %arg4: memref<8x1xf32, #tpu.memory_space<vmem>>) attributes {dimension_semantics = [#tpu.dimension_semantics<parallel>], iteration_bounds = array<i64: 1>, scalar_prefetch = 0 : i64, scratch_operands = 0 : i64, tpu.core_type = #tpu.core_type<tc>, window_params = [{transform_indices = @transform_0, window_bounds = array<i64: 8, 2048>}, {pipeline_mode = #tpu.pipeline_mode<synchronous>, transform_indices = @transform_1, window_bounds = array<i64: 1, 2048>}, {pipeline_mode = #tpu.pipeline_mode<synchronous>, transform_indices = @transform_2, window_bounds = array<i64: 1, 1>}, {transform_indices = @transform_3, window_bounds = array<i64: 8, 1>}]} {
    %c0 = arith.constant 0 : index
    %c0_0 = arith.constant 0 : index
    %0 = vector.load %arg1[%c0, %c0_0] : memref<8x2048xbf16, #tpu.memory_space<vmem>>, vector<8x2048xbf16>
    %1 = arith.extf %0 : vector<8x2048xbf16> to vector<8x2048xf32>
    %c0_1 = arith.constant 0 : index
    %c0_2 = arith.constant 0 : index
    %2 = vector.load %arg2[%c0_1, %c0_2] : memref<1x2048xf32, #tpu.memory_space<vmem>>, vector<1x2048xf32>
    %3 = vector.broadcast %2 : vector<1x2048xf32> to vector<8x2048xf32>
    %4 = arith.mulf %1, %3 : vector<8x2048xf32>
    %cst = arith.constant dense<0.000000e+00> : vector<8xf32>
    %5 = vector.multi_reduction <add>, %4, %cst [1] : vector<8x2048xf32> to vector<8xf32>
    %6 = vector.shape_cast %5 : vector<8xf32> to vector<8x1xf32>
    %c0_3 = arith.constant 0 : index
    %c0_4 = arith.constant 0 : index
    %7 = vector.load %arg3[%c0_3, %c0_4] : memref<1x1xf32, #tpu.memory_space<vmem>>, vector<1x1xf32>
    %8 = vector.broadcast %7 : vector<1x1xf32> to vector<8x1xf32>
    %9 = arith.addf %6, %8 : vector<8x1xf32>
    %c0_5 = arith.constant 0 : index
    %c0_6 = arith.constant 0 : index
    %10 = vector.load %arg4[%c0_5, %c0_6] : memref<8x1xf32, #tpu.memory_space<vmem>>, vector<8x1xf32>
    tpu.vector_store %arg4[%c0_5, %c0_6], %9 {strides = array<i32>} : memref<8x1xf32, #tpu.memory_space<vmem>>, vector<8x1xf32>,
    return
  }
  func.func @transform_0(%arg0: i32) -> (i32, i32) {
    %c0_i32 = arith.constant 0 : i32
    %c0_i32_0 = arith.constant 0 : i32
    return %arg0, %c0_i32 : i32, i32
  }
  func.func @transform_1(%arg0: i32) -> (i32, i32) {
    %c0_i32 = arith.constant 0 : i32
    %c0_i32_0 = arith.constant 0 : i32
    %c0_i32_1 = arith.constant 0 : i32
    return %c0_i32, %c0_i32_0 : i32, i32
  }
  func.func @transform_2(%arg0: i32) -> (i32, i32) {
    %c0_i32 = arith.constant 0 : i32
    %c0_i32_0 = arith.constant 0 : i32
    %c0_i32_1 = arith.constant 0 : i32
    return %c0_i32, %c0_i32_0 : i32, i32
  }
  func.func @transform_3(%arg0: i32) -> (i32, i32) {
    %c0_i32 = arith.constant 0 : i32
    %c0_i32_0 = arith.constant 0 : i32
    return %arg0, %c0_i32 : i32, i32
  }
}

</mosaic_0001>

<llo_original>
// kernel: critic_forward.5
$region0: #{critic_forward.5}
  #allocation0 [shape = 'u32[]', space=smem, size = 0x4, offset = 0x4, fixed_abs, tag = 'smem constant byte address 0x4 - core index']
  #allocation1 [shape = 'u32[144,128]{1,0:T(1,128)}', space=vmem, size = 0x12000, scoped, tag = 'internal scratch']
  #allocation2 [shape = 'f32[256,128]{1,0:T(8,128)}', space=vmem, size = 0x20000, scoped, tag = 'scratch operand']
  %s0 = inlined_call_operand.vmem [shape: bf16[512,128], index: 0, kind: input, shape index: {}]
  %s1 = inlined_call_operand.vmem [shape: bf16[128,128], index: 1, kind: input, shape index: {}]
  %s2 = inlined_call_operand.vmem [shape: f32[1,128], index: 2, kind: input, shape index: {}]
  %s3 = inlined_call_operand.vmem [shape: bf16[512,128], index: 3, kind: output, shape index: {}]
  %s4 = sld [smem:[#allocation0]]
  $region53: #{critic_forward.5} parent=0
    _
  %s6 = ssub.s32 1, %s4
  %s7 = scalar_select 0, %s6, %s4
  loop: start=0, step=1, limit=4
  $region2: #{critic_forward.5} parent=0 // loop_pre_header
    _
  $region3: #{critic_forward.5} parent=0 // loop_header
    %s9 = sphi 0, %s13
    %p10 = scmp.ge.s32.totalorder %s9, 4
    %s16 = sphi 0, %s28
    %s17 = sphi 0, %s24
    %s18 = sphi 0, %s16
    %s19 = sphi 0, %s17
    %s20 = sphi 0, %s18
    %s21 = sphi 0, %s19
    %s33 = sphi 0, %s35
    %s36 = sphi 0, %s33
    %s37 = sphi 0, %s36
    %s53 = sphi 0, %s37
    %s59 = sphi 0, %s61
    %s62 = sphi 0, %s59
    %s63 = sphi 0, %s62
    %s79 = sphi 0, %s63
    %s83 = sphi 0, %s83
    %s85 = sphi 0, %s83
    %s86 = sphi 0, %s85
    %s100 = sphi 0, %s86
    %s106 = sphi 0, %s108
    %s109 = sphi 0, %s106
    %s110 = sphi 0, %s109
    %s126 = sphi 0, %s110
  $region4: #{critic_forward.5} parent=0 // loop_header_branch
    %12 = sbr.rel (%p10) target = $region8
  $region5: #{critic_forward.5} parent=0 // loop_body
    %s14 = ssub.s32 %s9, 1
    %s15 = ssub.s32 %s9, 2
    %s22 = sadd.s32 1, %s17
    %p23 = scmp.ge.s32.totalorder %s22, 1
    %s24 = scalar_select %p23, 0, %s22
    %s25 = sadd.s32 1, %s16
    %s26 = scalar_select %p23, %s25, %s16
    %p27 = scmp.ge.s32.totalorder %s26, 2
    %s28 = scalar_select %p27, 0, %s26
    %s29 = ssub.s32 %s16, %s28
    %s30 = ssub.s32 %s17, %s24
    %s31 = sor.u32 %s29, %s30
    %p32 = scmp.eq.s32.totalorder %s31, 0
    %s34 = sadd.s32 %s33, 1
    %s35 = scalar_select %p32, %s33, %s34
    %p38 = pneg %p32
    %p39 = scmp.eq.s32.totalorder %s9, 1
    %p40 = por %p38, %p39
    %p41 = scmp.ne.s32.totalorder %s33, %s36
    %p42 = scmp.eq.s32.totalorder %s9, 0
    %p43 = por %p41, %p42
    %p44 = scmp.ne.s32.totalorder %s33, %s36
    %p45 = scmp.eq.s32.totalorder %s14, 1
    %p46 = por %p44, %p45
    %p47 = scmp.ne.s32.totalorder %s36, %s37
    %p48 = scmp.eq.s32.totalorder %s14, 0
    %p49 = por %p47, %p48
    %p50 = scmp.ne.s32.totalorder %s36, %s37
    %p51 = scmp.eq.s32.totalorder %s15, 1
    %p52 = por %p50, %p51
    %p54 = scmp.ne.s32.totalorder %s37, %s53
    %p55 = scmp.eq.s32.totalorder %s15, 0
    %p56 = por %p54, %p55
    %s57 = ssub.s32 %s17, %s24
    %p58 = scmp.eq.s32.totalorder %s57, 0
    %s60 = sadd.s32 %s59, 1
    %s61 = scalar_select %p58, %s59, %s60
    %p64 = pneg %p58
    %p65 = scmp.eq.s32.totalorder %s9, 1
    %p66 = por %p64, %p65
    %p67 = scmp.ne.s32.totalorder %s59, %s62
    %p68 = scmp.eq.s32.totalorder %s9, 0
    %p69 = por %p67, %p68
    %p70 = scmp.ne.s32.totalorder %s59, %s62
    %p71 = scmp.eq.s32.totalorder %s14, 1
    %p72 = por %p70, %p71
    %p73 = scmp.ne.s32.totalorder %s62, %s63
    %p74 = scmp.eq.s32.totalorder %s14, 0
    %p75 = por %p73, %p74
    %p76 = scmp.ne.s32.totalorder %s62, %s63
    %p77 = scmp.eq.s32.totalorder %s15, 1
    %p78 = por %p76, %p77
    %p80 = scmp.ne.s32.totalorder %s63, %s79
    %p81 = scmp.eq.s32.totalorder %s15, 0
    %p82 = por %p80, %p81
    %s84 = sadd.s32 %s83, 1
    %p87 = scmp.eq.s32.totalorder %s9, 1
    %p88 = scmp.ne.s32.totalorder %s83, %s85
    %p89 = scmp.eq.s32.totalorder %s9, 0
    %p90 = por %p88, %p89
    %p91 = scmp.ne.s32.totalorder %s83, %s85
    %p92 = scmp.eq.s32.totalorder %s14, 1
    %p93 = por %p91, %p92
    %p94 = scmp.ne.s32.totalorder %s85, %s86
    %p95 = scmp.eq.s32.totalorder %s14, 0
    %p96 = por %p94, %p95
    %p97 = scmp.ne.s32.totalorder %s85, %s86
    %p98 = scmp.eq.s32.totalorder %s15, 1
    %p99 = por %p97, %p98
    %p101 = scmp.ne.s32.totalorder %s86, %s100
    %p102 = scmp.eq.s32.totalorder %s15, 0
    %p103 = por %p101, %p102
    %s104 = ssub.s32 %s16, %s28
    %p105 = scmp.eq.s32.totalorder %s104, 0
    %s107 = sadd.s32 %s106, 1
    %s108 = scalar_select %p105, %s106, %s107
    %p111 = pneg %p105
    %p112 = scmp.eq.s32.totalorder %s9, 1
    %p113 = por %p111, %p112
    %p114 = scmp.ne.s32.totalorder %s106, %s109
    %p115 = scmp.eq.s32.totalorder %s9, 0
    %p116 = por %p114, %p115
    %p117 = scmp.ne.s32.totalorder %s106, %s109
    %p118 = scmp.eq.s32.totalorder %s14, 1
    %p119 = por %p117, %p118
    %p120 = scmp.ne.s32.totalorder %s109, %s110
    %p121 = scmp.eq.s32.totalorder %s14, 0
    %p122 = por %p120, %p121
    %p123 = scmp.ne.s32.totalorder %s109, %s110
    %p124 = scmp.eq.s32.totalorder %s15, 1
    %p125 = por %p123, %p124
    %p127 = scmp.ne.s32.totalorder %s110, %s126
    %p128 = scmp.eq.s32.totalorder %s15, 0
    %p129 = por %p127, %p128
    %p130 = scmp.le.s32.totalorder 1, %s9
    %p131 = scmp.lt.s32.totalorder %s9, 3
    %p132 = pnand %p130, %p131
    %p133 = pneg %p132
    // Predicated region
    $region9: #{critic_forward.5} parent=5 // pred_check
      _
    $region10: #{critic_forward.5} parent=5 // pred_check_branch
      %135 = sbr.rel (%p132) target = $region12
    $region11: #{critic_forward.5} parent=5 // pred_region
      %s136 = ssub.s32 %s9, 1
      // Predicated region
      $region13: #{critic_forward.5} parent=11 // pred_check
        %p137 = pneg %p75
      $region14: #{critic_forward.5} parent=11 // pred_check_branch
        %139 = sbr.rel (%p137) target = $region16
      $region15: #{critic_forward.5} parent=11 // pred_region
        %s140 = smul.u32 16, %s19
        %p141 = scmp.lt.s32.totalorder %s140, 15
        %s142 = scalar_select %p141, %s140, 15
        %s143 = smul.addr %s142, 4
        %s144 = scalar_lea.vmem %s1, %s143
        %s145 = smul.u32 16, %s19
      $region16: #{critic_forward.5} parent=11 // pred_fallthru
        _
      // Predicated region
      $region17: #{critic_forward.5} parent=11 // pred_check
        %p146 = pneg %p96
      $region18: #{critic_forward.5} parent=11 // pred_check_branch
        %148 = sbr.rel (%p146) target = $region20
      $region19: #{critic_forward.5} parent=11 // pred_region
        _
      $region20: #{critic_forward.5} parent=11 // pred_fallthru
        _
    $region12: #{critic_forward.5} parent=5 // pred_fallthru
      _
    %p149 = scmp.lt.s32.totalorder %s9, 2
    // Predicated region
    $region21: #{critic_forward.5} parent=5 // pred_check
      %p150 = pneg %p149
    $region22: #{critic_forward.5} parent=5 // pred_check_branch
      %152 = sbr.rel (%p150) target = $region24
    $region23: #{critic_forward.5} parent=5 // pred_region
      // Predicated region
      $region25: #{critic_forward.5} parent=23 // pred_check
        %p153 = pneg %p43
      $region26: #{critic_forward.5} parent=23 // pred_check_branch
        %155 = sbr.rel (%p153) target = $region28
      $region27: #{critic_forward.5} parent=23 // pred_region
        %s156 = smul.u32 32, %s16
        %p157 = scmp.lt.s32.totalorder %s156, 63
        %s158 = scalar_select %p157, %s156, 63
        %p159 = scmp.lt.s32.totalorder %s17, 0
        %s160 = scalar_select %p159, %s17, 0
        %s161 = sadd.s32 %s160, %s158
        %s162 = smul.addr %s161, 4
        %s163 = scalar_lea.vmem %s0, %s162
        %s164 = smul.u32 32, %s16
      $region28: #{critic_forward.5} parent=23 // pred_fallthru
        _
    $region24: #{critic_forward.5} parent=5 // pred_fallthru
      _
    %p165 = scmp.le.s32.totalorder 1, %s9
    %p166 = scmp.lt.s32.totalorder %s9, 3
    %p167 = pnand %p165, %p166
    %p168 = pneg %p167
    // Predicated region
    $region29: #{critic_forward.5} parent=5 // pred_check
      _
    $region30: #{critic_forward.5} parent=5 // pred_check_branch
      %170 = sbr.rel (%p167) target = $region32
    $region31: #{critic_forward.5} parent=5 // pred_region
      %s171 = ssub.s32 %s9, 1
      %s172 = smul.u32 32, %s18
      %p173 = scmp.lt.s32.totalorder %s172, 63
      %s174 = scalar_select %p173, %s172, 63
      %p175 = scmp.lt.s32.totalorder %s19, 0
      %s176 = scalar_select %p175, %s19, 0
      %s177 = sadd.s32 %s176, %s174
      %s178 = smul.addr %s177, 4
      %s179 = scalar_lea.vmem %s0, %s178
      %p180 = pneg %p49
      %p181 = pneg %p46
      %s182 = smul.u32 16, %s19
      %p183 = scmp.lt.s32.totalorder %s182, 15
      %s184 = scalar_select %p183, %s182, 15
      %s185 = smul.addr %s184, 4
      %s186 = scalar_lea.vmem %s1, %s185
      %p187 = pneg %p75
      %p188 = pneg %p72
      %p189 = pneg %p96
      %p190 = pneg %p93
      %p191 = pneg %p122
      %p192 = pneg %p119
      %s193 = smul.u32 32, %s18
      %p194 = scmp.lt.s32.totalorder %s193, 63
      %s195 = scalar_select %p194, %s193, 63
      %s196 = smul.addr %s195, 4
      %s197 = scalar_lea.vmem %s3, %s196
      %s198 = smul.u32 32, %s18
      %p199 = scmp.lt.s32.totalorder %s198, 63
      %s200 = scalar_select %p199, %s198, 63
      %p201 = scmp.lt.s32.totalorder %s19, 0
      %s202 = scalar_select %p201, %s19, 0
      %s203 = sadd.s32 %s202, %s200
      %s204 = smul.addr %s203, 4
      %s205 = scalar_lea.vmem %s0, %s204
      %s206 = smul.u32 32, %s18
      %s207 = smul.u32 16, %s19
      %p208 = scmp.lt.s32.totalorder %s207, 15
      %s209 = scalar_select %p208, %s207, 15
      %s210 = smul.addr %s209, 4
      %s211 = scalar_lea.vmem %s1, %s210
      %s212 = smul.u32 16, %s19
      %s213 = smul.u32 32, %s18
      %p214 = scmp.lt.s32.totalorder %s213, 63
      %s215 = scalar_select %p214, %s213, 63
      %s216 = smul.addr %s215, 4
      %s217 = scalar_lea.vmem %s3, %s216
      %s218 = smul.u32 32, %s18
      %p220 = scmp.eq.s32.totalorder %s19, 0
      // Predicated region
      $region33: #{critic_forward.5} parent=31 // pred_check
        %p221 = pneg %p220
      $region34: #{critic_forward.5} parent=31 // pred_check_branch
        %223 = sbr.rel (%p221) target = $region36
      $region35: #{critic_forward.5} parent=31 // pred_region
        %224 = vst [vmem:[#allocation2] sm:$0xff] 0.0
        %225 = vst [vmem:[#allocation2 + $0x8] sm:$0xff] 0.0
        %226 = vst [vmem:[#allocation2 + $0x10] sm:$0xff] 0.0
        %227 = vst [vmem:[#allocation2 + $0x18] sm:$0xff] 0.0
        %228 = vst [vmem:[#allocation2 + $0x20] sm:$0xff] 0.0
        %229 = vst [vmem:[#allocation2 + $0x28] sm:$0xff] 0.0
        %230 = vst [vmem:[#allocation2 + $0x30] sm:$0xff] 0.0
        %231 = vst [vmem:[#allocation2 + $0x38] sm:$0xff] 0.0
        %232 = vst [vmem:[#allocation2 + $0x40] sm:$0xff] 0.0
        %233 = vst [vmem:[#allocation2 + $0x48] sm:$0xff] 0.0
        %234 = vst [vmem:[#allocation2 + $0x50] sm:$0xff] 0.0
        %235 = vst [vmem:[#allocation2 + $0x58] sm:$0xff] 0.0
        %236 = vst [vmem:[#allocation2 + $0x60] sm:$0xff] 0.0
        %237 = vst [vmem:[#allocation2 + $0x68] sm:$0xff] 0.0
        %238 = vst [vmem:[#allocation2 + $0x70] sm:$0xff] 0.0
        %239 = vst [vmem:[#allocation2 + $0x78] sm:$0xff] 0.0
        %240 = vst [vmem:[#allocation2 + $0x80] sm:$0xff] 0.0
        %241 = vst [vmem:[#allocation2 + $0x88] sm:$0xff] 0.0
        %242 = vst [vmem:[#allocation2 + $0x90] sm:$0xff] 0.0
        %243 = vst [vmem:[#allocation2 + $0x98] sm:$0xff] 0.0
        %244 = vst [vmem:[#allocation2 + $0xa0] sm:$0xff] 0.0
        %245 = vst [vmem:[#allocation2 + $0xa8] sm:$0xff] 0.0
        %246 = vst [vmem:[#allocation2 + $0xb0] sm:$0xff] 0.0
        %247 = vst [vmem:[#allocation2 + $0xb8] sm:$0xff] 0.0
        %248 = vst [vmem:[#allocation2 + $0xc0] sm:$0xff] 0.0
        %249 = vst [vmem:[#allocation2 + $0xc8] sm:$0xff] 0.0
        %250 = vst [vmem:[#allocation2 + $0xd0] sm:$0xff] 0.0
        %251 = vst [vmem:[#allocation2 + $0xd8] sm:$0xff] 0.0
        %252 = vst [vmem:[#allocation2 + $0xe0] sm:$0xff] 0.0
        %253 = vst [vmem:[#allocation2 + $0xe8] sm:$0xff] 0.0
        %254 = vst [vmem:[#allocation2 + $0xf0] sm:$0xff] 0.0
        %255 = vst [vmem:[#allocation2 + $0xf8] sm:$0xff] 0.0
      $region36: #{critic_forward.5} parent=31 // pred_fallthru
        _
      %v256 = vld [vmem:[#allocation2] sm:$0xff]
      %v257 = vld [vmem:[#allocation2 + $0x8] sm:$0xff]
      %v258 = vld [vmem:[#allocation2 + $0x10] sm:$0xff]
      %v259 = vld [vmem:[#allocation2 + $0x18] sm:$0xff]
      %v260 = vld [vmem:[#allocation2 + $0x20] sm:$0xff]
      %v261 = vld [vmem:[#allocation2 + $0x28] sm:$0xff]
      %v262 = vld [vmem:[#allocation2 + $0x30] sm:$0xff]
      %v263 = vld [vmem:[#allocation2 + $0x38] sm:$0xff]
      %v264 = vld [vmem:[#allocation2 + $0x40] sm:$0xff]
      %v265 = vld [vmem:[#allocation2 + $0x48] sm:$0xff]
      %v266 = vld [vmem:[#allocation2 + $0x50] sm:$0xff]
      %v267 = vld [vmem:[#allocation2 + $0x58] sm:$0xff]
      %v268 = vld [vmem:[#allocation2 + $0x60] sm:$0xff]
      %v269 = vld [vmem:[#allocation2 + $0x68] sm:$0xff]
      %v270 = vld [vmem:[#allocation2 + $0x70] sm:$0xff]
      %v271 = vld [vmem:[#allocation2 + $0x78] sm:$0xff]
      %v272 = vld [vmem:[#allocation2 + $0x80] sm:$0xff]
      %v273 = vld [vmem:[#allocation2 + $0x88] sm:$0xff]
      %v274 = vld [vmem:[#allocation2 + $0x90] sm:$0xff]
      %v275 = vld [vmem:[#allocation2 + $0x98] sm:$0xff]
      %v276 = vld [vmem:[#allocation2 + $0xa0] sm:$0xff]
      %v277 = vld [vmem:[#allocation2 + $0xa8] sm:$0xff]
      %v278 = vld [vmem:[#allocation2 + $0xb0] sm:$0xff]
      %v279 = vld [vmem:[#allocation2 + $0xb8] sm:$0xff]
      %v280 = vld [vmem:[#allocation2 + $0xc0] sm:$0xff]
      %v281 = vld [vmem:[#allocation2 + $0xc8] sm:$0xff]
      %v282 = vld [vmem:[#allocation2 + $0xd0] sm:$0xff]
      %v283 = vld [vmem:[#allocation2 + $0xd8] sm:$0xff]
      %v284 = vld [vmem:[#allocation2 + $0xe0] sm:$0xff]
      %v285 = vld [vmem:[#allocation2 + $0xe8] sm:$0xff]
      %v286 = vld [vmem:[#allocation2 + $0xf0] sm:$0xff]
      %v287 = vld [vmem:[#allocation2 + $0xf8] sm:$0xff]
      %v288 = vld [vmem:[%s205] sm:$0xf]
      %v289 = vld [vmem:[%s205 + $0x4] sm:$0xf]
      %v290 = vld [vmem:[%s205 + $0x8] sm:$0xf]
      %v291 = vld [vmem:[%s205 + $0xc] sm:$0xf]
      %v292 = vld [vmem:[%s205 + $0x10] sm:$0xf]
      %v293 = vld [vmem:[%s205 + $0x14] sm:$0xf]
      %v294 = vld [vmem:[%s205 + $0x18] sm:$0xf]
      %v295 = vld [vmem:[%s205 + $0x1c] sm:$0xf]
      %v296 = vld [vmem:[%s205 + $0x20] sm:$0xf]
      %v297 = vld [vmem:[%s205 + $0x24] sm:$0xf]
      %v298 = vld [vmem:[%s205 + $0x28] sm:$0xf]
      %v299 = vld [vmem:[%s205 + $0x2c] sm:$0xf]
      %v300 = vld [vmem:[%s205 + $0x30] sm:$0xf]
      %v301 = vld [vmem:[%s205 + $0x34] sm:$0xf]
      %v302 = vld [vmem:[%s205 + $0x38] sm:$0xf]
      %v303 = vld [vmem:[%s205 + $0x3c] sm:$0xf]
      %v304 = vld [vmem:[%s205 + $0x40] sm:$0xf]
      %v305 = vld [vmem:[%s205 + $0x44] sm:$0xf]
      %v306 = vld [vmem:[%s205 + $0x48] sm:$0xf]
      %v307 = vld [vmem:[%s205 + $0x4c] sm:$0xf]
      %v308 = vld [vmem:[%s205 + $0x50] sm:$0xf]
      %v309 = vld [vmem:[%s205 + $0x54] sm:$0xf]
      %v310 = vld [vmem:[%s205 + $0x58] sm:$0xf]
      %v311 = vld [vmem:[%s205 + $0x5c] sm:$0xf]
      %v312 = vld [vmem:[%s205 + $0x60] sm:$0xf]
      %v313 = vld [vmem:[%s205 + $0x64] sm:$0xf]
      %v314 = vld [vmem:[%s205 + $0x68] sm:$0xf]
      %v315 = vld [vmem:[%s205 + $0x6c] sm:$0xf]
      %v316 = vld [vmem:[%s205 + $0x70] sm:$0xf]
      %v317 = vld [vmem:[%s205 + $0x74] sm:$0xf]
      %v318 = vld [vmem:[%s205 + $0x78] sm:$0xf]
      %v319 = vld [vmem:[%s205 + $0x7c] sm:$0xf]
      %v320 = vld [vmem:[%s211] sm:$0xf]
      %v321 = vld [vmem:[%s211 + $0x4] sm:$0xf]
      %v322 = vld [vmem:[%s211 + $0x8] sm:$0xf]
      %v323 = vld [vmem:[%s211 + $0xc] sm:$0xf]
      %v324 = vld [vmem:[%s211 + $0x10] sm:$0xf]
      %v325 = vld [vmem:[%s211 + $0x14] sm:$0xf]
      %v326 = vld [vmem:[%s211 + $0x18] sm:$0xf]
      %v327 = vld [vmem:[%s211 + $0x1c] sm:$0xf]
      %v328 = vld [vmem:[%s211 + $0x20] sm:$0xf]
      %v329 = vld [vmem:[%s211 + $0x24] sm:$0xf]
      %v330 = vld [vmem:[%s211 + $0x28] sm:$0xf]
      %v331 = vld [vmem:[%s211 + $0x2c] sm:$0xf]
      %v332 = vld [vmem:[%s211 + $0x30] sm:$0xf]
      %v333 = vld [vmem:[%s211 + $0x34] sm:$0xf]
      %v334 = vld [vmem:[%s211 + $0x38] sm:$0xf]
      %v335 = vld [vmem:[%s211 + $0x3c] sm:$0xf]
      %v368 = vunpack.c.l.b16 %v288
      %v369 = vunpack.c.l.b16 %v289
      %v370 = vunpack.c.l.b16 %v290
      %v371 = vunpack.c.l.b16 %v291
      %v372 = vunpack.c.l.b16 %v292
      %v373 = vunpack.c.l.b16 %v293
      %v374 = vunpack.c.l.b16 %v294
      %v375 = vunpack.c.l.b16 %v295
      %v376 = vunpack.c.l.b16 %v296
      %v377 = vunpack.c.l.b16 %v297
      %v378 = vunpack.c.l.b16 %v298
      %v379 = vunpack.c.l.b16 %v299
      %v380 = vunpack.c.l.b16 %v300
      %v381 = vunpack.c.l.b16 %v301
      %v382 = vunpack.c.l.b16 %v302
      %v383 = vunpack.c.l.b16 %v303
      %v384 = vunpack.c.l.b16 %v304
      %v385 = vunpack.c.l.b16 %v305
      %v386 = vunpack.c.l.b16 %v306
      %v387 = vunpack.c.l.b16 %v307
      %v388 = vunpack.c.l.b16 %v308
      %v389 = vunpack.c.l.b16 %v309
      %v390 = vunpack.c.l.b16 %v310
      %v391 = vunpack.c.l.b16 %v311
      %v392 = vunpack.c.l.b16 %v312
      %v393 = vunpack.c.l.b16 %v313
      %v394 = vunpack.c.l.b16 %v314
      %v395 = vunpack.c.l.b16 %v315
      %v396 = vunpack.c.l.b16 %v316
      %v397 = vunpack.c.l.b16 %v317
      %v398 = vunpack.c.l.b16 %v318
      %v399 = vunpack.c.l.b16 %v319
      %v400 = vpack.c.b16 %v369, %v368
      %v401 = vpack.c.b16 %v371, %v370
      %v402 = vpack.c.b16 %v373, %v372
      %v403 = vpack.c.b16 %v375, %v374
      %v404 = vpack.c.b16 %v377, %v376
      %v405 = vpack.c.b16 %v379, %v378
      %v406 = vpack.c.b16 %v381, %v380
      %v407 = vpack.c.b16 %v383, %v382
      %v408 = vpack.c.b16 %v385, %v384
      %v409 = vpack.c.b16 %v387, %v386
      %v410 = vpack.c.b16 %v389, %v388
      %v411 = vpack.c.b16 %v391, %v390
      %v412 = vpack.c.b16 %v393, %v392
      %v413 = vpack.c.b16 %v395, %v394
      %v414 = vpack.c.b16 %v397, %v396
      %v415 = vpack.c.b16 %v399, %v398
      %v448 = vunpack.c.l.b16 %v320
      %v449 = vunpack.c.l.b16 %v321
      %v450 = vunpack.c.l.b16 %v322
      %v451 = vunpack.c.l.b16 %v323
      %v452 = vunpack.c.l.b16 %v324
      %v453 = vunpack.c.l.b16 %v325
      %v454 = vunpack.c.l.b16 %v326
      %v455 = vunpack.c.l.b16 %v327
      %v456 = vunpack.c.l.b16 %v328
      %v457 = vunpack.c.l.b16 %v329
      %v458 = vunpack.c.l.b16 %v330
      %v459 = vunpack.c.l.b16 %v331
      %v460 = vunpack.c.l.b16 %v332
      %v461 = vunpack.c.l.b16 %v333
      %v462 = vunpack.c.l.b16 %v334
      %v463 = vunpack.c.l.b16 %v335
      %v464 = vpack.c.b16 %v449, %v448
      %v465 = vpack.c.b16 %v451, %v450
      %v466 = vpack.c.b16 %v453, %v452
      %v467 = vpack.c.b16 %v455, %v454
      %v468 = vpack.c.b16 %v457, %v456
      %v469 = vpack.c.b16 %v459, %v458
      %v470 = vpack.c.b16 %v461, %v460
      %v471 = vpack.c.b16 %v463, %v462
      %480 = vmatprep.subr.bf16.mxu0 0
      %481 = vmatpush1.bf16.msra.mxu0 %v464
      %482 = vmatprep.subr.bf16.mxu0 0
      %483 = vmatpush1.bf16.msra.mxu0 %v465
      %484 = vmatprep.subr.bf16.mxu0 0
      %485 = vmatpush1.bf16.msra.mxu0 %v466
      %486 = vmatprep.subr.bf16.mxu0 0
      %487 = vmatpush1.bf16.msra.mxu0 %v467
      %488 = vmatprep.subr.bf16.mxu0 0
      %489 = vmatpush1.bf16.msra.mxu0 %v468
      %490 = vmatprep.subr.bf16.mxu0 0
      %491 = vmatpush1.bf16.msra.mxu0 %v469
      %492 = vmatprep.subr.bf16.mxu0 0
      %493 = vmatpush1.bf16.msra.mxu0 %v470
      %494 = vmatprep.subr.bf16.mxu0 0
      %495 = vmatpush1.bf16.msra.mxu0 %v471
      %496 = vmatprep.subr.bf16.mxu0 0
      %497 = vmatpush1.bf16.msra.mxu0 0
      %498 = vmatprep.subr.bf16.mxu0 0
      %499 = vmatpush1.bf16.msra.mxu0 0
      %500 = vmatprep.subr.bf16.mxu0 0
      %501 = vmatpush1.bf16.msra.mxu0 0
      %502 = vmatprep.subr.bf16.mxu0 0
      %503 = vmatpush1.bf16.msra.mxu0 0
      %504 = vmatprep.subr.bf16.mxu0 0
      %505 = vmatpush1.bf16.msra.mxu0 0
      %506 = vmatprep.subr.bf16.mxu0 0
      %507 = vmatpush1.bf16.msra.mxu0 0
      %508 = vmatprep.subr.bf16.mxu0 0
      %509 = vmatpush1.bf16.msra.mxu0 0
      %510 = vmatprep.subr.bf16.mxu0 0
      %511 = vmatpush1.bf16.msra.mxu0 0
      %512 = vmatprep.mubr.bf16.mxu0 0
      %513 = vmatmul.mubr.bf16.gmra.mrb[0].mxu0 %v400
      %v514 = vpop.f32.mrb[0].mxu0
      %v515 = vadd.f32 0.0, %v514
      %v516 = vpop.f32.mrb[0].mxu0
      %v517 = vpop.f32.mrb[0].mxu0
      %v518 = vadd.f32 0.0, %v517
      %v519 = vpop.f32.mrb[0].mxu0
      %520 = vmatprep.mubr.bf16.mxu0 0
      %521 = vmatmul.mubr.bf16.gmra.mrb[0].mxu0 %v401
      %v522 = vpop.f32.mrb[0].mxu0
      %v523 = vadd.f32 0.0, %v522
      %v524 = vpop.f32.mrb[0].mxu0
      %v525 = vpop.f32.mrb[0].mxu0
      %v526 = vadd.f32 0.0, %v525
      %v527 = vpop.f32.mrb[0].mxu0
      %528 = vmatprep.mubr.bf16.mxu0 0
      %529 = vmatmul.mubr.bf16.gmra.mrb[0].mxu0 %v402
      %v530 = vpop.f32.mrb[0].mxu0
      %v531 = vadd.f32 0.0, %v530
      %v532 = vpop.f32.mrb[0].mxu0
      %v533 = vpop.f32.mrb[0].mxu0
      %v534 = vadd.f32 0.0, %v533
      %v535 = vpop.f32.mrb[0].mxu0
      %536 = vmatprep.mubr.bf16.mxu0 0
      %537 = vmatmul.mubr.bf16.gmra.mrb[0].mxu0 %v403
      %v538 = vpop.f32.mrb[0].mxu0
      %v539 = vadd.f32 0.0, %v538
      %v540 = vpop.f32.mrb[0].mxu0
      %v541 = vpop.f32.mrb[0].mxu0
      %v542 = vadd.f32 0.0, %v541
      %v543 = vpop.f32.mrb[0].mxu0
      %544 = vmatprep.mubr.bf16.mxu0 0
      %545 = vmatmul.mubr.bf16.gmra.mrb[0].mxu0 %v404
      %v546 = vpop.f32.mrb[0].mxu0
      %v547 = vadd.f32 0.0, %v546
      %v548 = vpop.f32.mrb[0].mxu0
      %v549 = vpop.f32.mrb[0].mxu0
      %v550 = vadd.f32 0.0, %v549
      %v551 = vpop.f32.mrb[0].mxu0
      %552 = vmatprep.mubr.bf16.mxu0 0
      %553 = vmatmul.mubr.bf16.gmra.mrb[0].mxu0 %v405
      %v554 = vpop.f32.mrb[0].mxu0
      %v555 = vadd.f32 0.0, %v554
      %v556 = vpop.f32.mrb[0].mxu0
      %v557 = vpop.f32.mrb[0].mxu0
      %v558 = vadd.f32 0.0, %v557
      %v559 = vpop.f32.mrb[0].mxu0
      %560 = vmatprep.mubr.bf16.mxu0 0
      %561 = vmatmul.mubr.bf16.gmra.mrb[0].mxu0 %v406
      %v562 = vpop.f32.mrb[0].mxu0
      %v563 = vadd.f32 0.0, %v562
      %v564 = vpop.f32.mrb[0].mxu0
      %v565 = vpop.f32.mrb[0].mxu0
      %v566 = vadd.f32 0.0, %v565
      %v567 = vpop.f32.mrb[0].mxu0
      %568 = vmatprep.mubr.bf16.mxu0 0
      %569 = vmatmul.mubr.bf16.gmra.mrb[0].mxu0 %v407
      %v570 = vpop.f32.mrb[0].mxu0
      %v571 = vadd.f32 0.0, %v570
      %v572 = vpop.f32.mrb[0].mxu0
      %v573 = vpop.f32.mrb[0].mxu0
      %v574 = vadd.f32 0.0, %v573
      %v575 = vpop.f32.mrb[0].mxu0
      %576 = vmatprep.mubr.bf16.mxu0 0
      %577 = vmatmul.mubr.bf16.gmra.mrb[0].mxu0 %v408
      %v578 = vpop.f32.mrb[0].mxu0
      %v579 = vadd.f32 0.0, %v578
      %v580 = vpop.f32.mrb[0].mxu0
      %v581 = vpop.f32.mrb[0].mxu0
      %v582 = vadd.f32 0.0, %v581
      %v583 = vpop.f32.mrb[0].mxu0
      %584 = vmatprep.mubr.bf16.mxu0 0
      %585 = vmatmul.mubr.bf16.gmra.mrb[0].mxu0 %v409
      %v586 = vpop.f32.mrb[0].mxu0
      %v587 = vadd.f32 0.0, %v586
      %v588 = vpop.f32.mrb[0].mxu0
      %v589 = vpop.f32.mrb[0].mxu0
      %v590 = vadd.f32 0.0, %v589
      %v591 = vpop.f32.mrb[0].mxu0
      %592 = vmatprep.mubr.bf16.mxu0 0
      %593 = vmatmul.mubr.bf16.gmra.mrb[0].mxu0 %v410
      %v594 = vpop.f32.mrb[0].mxu0
      %v595 = vadd.f32 0.0, %v594
      %v596 = vpop.f32.mrb[0].mxu0
      %v597 = vpop.f32.mrb[0].mxu0
      %v598 = vadd.f32 0.0, %v597
      %v599 = vpop.f32.mrb[0].mxu0
      %600 = vmatprep.mubr.bf16.mxu0 0
      %601 = vmatmul.mubr.bf16.gmra.mrb[0].mxu0 %v411
      %v602 = vpop.f32.mrb[0].mxu0
      %v603 = vadd.f32 0.0, %v602
      %v604 = vpop.f32.mrb[0].mxu0
      %v605 = vpop.f32.mrb[0].mxu0
      %v606 = vadd.f32 0.0, %v605
      %v607 = vpop.f32.mrb[0].mxu0
      %608 = vmatprep.mubr.bf16.mxu0 0
      %609 = vmatmul.mubr.bf16.gmra.mrb[0].mxu0 %v412
      %v610 = vpop.f32.mrb[0].mxu0
      %v611 = vadd.f32 0.0, %v610
      %v612 = vpop.f32.mrb[0].mxu0
      %v613 = vpop.f32.mrb[0].mxu0
      %v614 = vadd.f32 0.0, %v613
      %v615 = vpop.f32.mrb[0].mxu0
      %616 = vmatprep.mubr.bf16.mxu0 0
      %617 = vmatmul.mubr.bf16.gmra.mrb[0].mxu0 %v413
      %v618 = vpop.f32.mrb[0].mxu0
      %v619 = vadd.f32 0.0, %v618
      %v620 = vpop.f32.mrb[0].mxu0
      %v621 = vpop.f32.mrb[0].mxu0
      %v622 = vadd.f32 0.0, %v621
      %v623 = vpop.f32.mrb[0].mxu0
      %624 = vmatprep.mubr.bf16.mxu0 0
      %625 = vmatmul.mubr.bf16.gmra.mrb[0].mxu0 %v414
      %v626 = vpop.f32.mrb[0].mxu0
      %v627 = vadd.f32 0.0, %v626
      %v628 = vpop.f32.mrb[0].mxu0
      %v629 = vpop.f32.mrb[0].mxu0
      %v630 = vadd.f32 0.0, %v629
      %v631 = vpop.f32.mrb[0].mxu0
      %632 = vmatprep.mubr.bf16.mxu0 0
      %633 = vmatmul.mubr.bf16.gmra.mrb[0].mxu0 %v415
      %v634 = vpop.f32.mrb[0].mxu0
      %v635 = vadd.f32 0.0, %v634
      %v636 = vpop.f32.mrb[0].mxu0
      %v637 = vpop.f32.mrb[0].mxu0
      %v638 = vadd.f32 0.0, %v637
      %v639 = vpop.f32.mrb[0].mxu0
      %640 = vdwg.mxu0
      %v641 = vadd.f32 %v256, %v515
      %v642 = vadd.f32 %v257, %v518
      %v643 = vadd.f32 %v258, %v523
      %v644 = vadd.f32 %v259, %v526
      %v645 = vadd.f32 %v260, %v531
      %v646 = vadd.f32 %v261, %v534
      %v647 = vadd.f32 %v262, %v539
      %v648 = vadd.f32 %v263, %v542
      %v649 = vadd.f32 %v264, %v547
      %v650 = vadd.f32 %v265, %v550
      %v651 = vadd.f32 %v266, %v555
      %v652 = vadd.f32 %v267, %v558
      %v653 = vadd.f32 %v268, %v563
      %v654 = vadd.f32 %v269, %v566
      %v655 = vadd.f32 %v270, %v571
      %v656 = vadd.f32 %v271, %v574
      %v657 = vadd.f32 %v272, %v579
      %v658 = vadd.f32 %v273, %v582
      %v659 = vadd.f32 %v274, %v587
      %v660 = vadd.f32 %v275, %v590
      %v661 = vadd.f32 %v276, %v595
      %v662 = vadd.f32 %v277, %v598
      %v663 = vadd.f32 %v278, %v603
      %v664 = vadd.f32 %v279, %v606
      %v665 = vadd.f32 %v280, %v611
      %v666 = vadd.f32 %v281, %v614
      %v667 = vadd.f32 %v282, %v619
      %v668 = vadd.f32 %v283, %v622
      %v669 = vadd.f32 %v284, %v627
      %v670 = vadd.f32 %v285, %v630
      %v671 = vadd.f32 %v286, %v635
      %v672 = vadd.f32 %v287, %v638
      %673 = vst [vmem:[#allocation2] sm:$0xff] %v641
      %674 = vst [vmem:[#allocation2 + $0x8] sm:$0xff] %v642
      %675 = vst [vmem:[#allocation2 + $0x10] sm:$0xff] %v643
      %676 = vst [vmem:[#allocation2 + $0x18] sm:$0xff] %v644
      %677 = vst [vmem:[#allocation2 + $0x20] sm:$0xff] %v645
      %678 = vst [vmem:[#allocation2 + $0x28] sm:$0xff] %v646
      %679 = vst [vmem:[#allocation2 + $0x30] sm:$0xff] %v647
      %680 = vst [vmem:[#allocation2 + $0x38] sm:$0xff] %v648
      %681 = vst [vmem:[#allocation2 + $0x40] sm:$0xff] %v649
      %682 = vst [vmem:[#allocation2 + $0x48] sm:$0xff] %v650
      %683 = vst [vmem:[#allocation2 + $0x50] sm:$0xff] %v651
      %684 = vst [vmem:[#allocation2 + $0x58] sm:$0xff] %v652
      %685 = vst [vmem:[#allocation2 + $0x60] sm:$0xff] %v653
      %686 = vst [vmem:[#allocation2 + $0x68] sm:$0xff] %v654
      %687 = vst [vmem:[#allocation2 + $0x70] sm:$0xff] %v655
      %688 = vst [vmem:[#allocation2 + $0x78] sm:$0xff] %v656
      %689 = vst [vmem:[#allocation2 + $0x80] sm:$0xff] %v657
      %690 = vst [vmem:[#allocation2 + $0x88] sm:$0xff] %v658
      %691 = vst [vmem:[#allocation2 + $0x90] sm:$0xff] %v659
      %692 = vst [vmem:[#allocation2 + $0x98] sm:$0xff] %v660
      %693 = vst [vmem:[#allocation2 + $0xa0] sm:$0xff] %v661
      %694 = vst [vmem:[#allocation2 + $0xa8] sm:$0xff] %v662
      %695 = vst [vmem:[#allocation2 + $0xb0] sm:$0xff] %v663
      %696 = vst [vmem:[#allocation2 + $0xb8] sm:$0xff] %v664
      %697 = vst [vmem:[#allocation2 + $0xc0] sm:$0xff] %v665
      %698 = vst [vmem:[#allocation2 + $0xc8] sm:$0xff] %v666
      %699 = vst [vmem:[#allocation2 + $0xd0] sm:$0xff] %v667
      %700 = vst [vmem:[#allocation2 + $0xd8] sm:$0xff] %v668
      %701 = vst [vmem:[#allocation2 + $0xe0] sm:$0xff] %v669
      %702 = vst [vmem:[#allocation2 + $0xe8] sm:$0xff] %v670
      %703 = vst [vmem:[#allocation2 + $0xf0] sm:$0xff] %v671
      %704 = vst [vmem:[#allocation2 + $0xf8] sm:$0xff] %v672
      // Predicated region
      $region37: #{critic_forward.5} parent=31 // pred_check
        %p705 = pneg %p220
      $region38: #{critic_forward.5} parent=31 // pred_check_branch
        %707 = sbr.rel (%p705) target = $region40
      $region39: #{critic_forward.5} parent=31 // pred_region
        %v708 = vld [vmem:[#allocation2] sm:$0xff]
        %v709 = vld [vmem:[#allocation2 + $0x8] sm:$0xff]
        %v710 = vld [vmem:[#allocation2 + $0x10] sm:$0xff]
        %v711 = vld [vmem:[#allocation2 + $0x18] sm:$0xff]
        %v712 = vld [vmem:[#allocation2 + $0x20] sm:$0xff]
        %v713 = vld [vmem:[#allocation2 + $0x28] sm:$0xff]
        %v714 = vld [vmem:[#allocation2 + $0x30] sm:$0xff]
        %v715 = vld [vmem:[#allocation2 + $0x38] sm:$0xff]
        %v716 = vld [vmem:[#allocation2 + $0x40] sm:$0xff]
        %v717 = vld [vmem:[#allocation2 + $0x48] sm:$0xff]
        %v718 = vld [vmem:[#allocation2 + $0x50] sm:$0xff]
        %v719 = vld [vmem:[#allocation2 + $0x58] sm:$0xff]
        %v720 = vld [vmem:[#allocation2 + $0x60] sm:$0xff]
        %v721 = vld [vmem:[#allocation2 + $0x68] sm:$0xff]
        %v722 = vld [vmem:[#allocation2 + $0x70] sm:$0xff]
        %v723 = vld [vmem:[#allocation2 + $0x78] sm:$0xff]
        %v724 = vld [vmem:[#allocation2 + $0x80] sm:$0xff]
        %v725 = vld [vmem:[#allocation2 + $0x88] sm:$0xff]
        %v726 = vld [vmem:[#allocation2 + $0x90] sm:$0xff]
        %v727 = vld [vmem:[#allocation2 + $0x98] sm:$0xff]
        %v728 = vld [vmem:[#allocation2 + $0xa0] sm:$0xff]
        %v729 = vld [vmem:[#allocation2 + $0xa8] sm:$0xff]
        %v730 = vld [vmem:[#allocation2 + $0xb0] sm:$0xff]
        %v731 = vld [vmem:[#allocation2 + $0xb8] sm:$0xff]
        %v732 = vld [vmem:[#allocation2 + $0xc0] sm:$0xff]
        %v733 = vld [vmem:[#allocation2 + $0xc8] sm:$0xff]
        %v734 = vld [vmem:[#allocation2 + $0xd0] sm:$0xff]
        %v735 = vld [vmem:[#allocation2 + $0xd8] sm:$0xff]
        %v736 = vld [vmem:[#allocation2 + $0xe0] sm:$0xff]
        %v737 = vld [vmem:[#allocation2 + $0xe8] sm:$0xff]
        %v738 = vld [vmem:[#allocation2 + $0xf0] sm:$0xff]
        %v739 = vld [vmem:[#allocation2 + $0xf8] sm:$0xff]
        %v740 = vld [vmem:[%s2] sm:$0x1]
        %v742 = vlaneseq
        %v743 = vshrl.u32 %v742, 7
        %v744 = vsub.s32 0, %v743
        %v745 = vrot.slane %v740, %v744
        %v747 = vadd.f32 %v708, %v745
        %v748 = vadd.f32 %v709, %v745
        %v749 = vadd.f32 %v710, %v745
        %v750 = vadd.f32 %v711, %v745
        %v751 = vadd.f32 %v712, %v745
        %v752 = vadd.f32 %v713, %v745
        %v753 = vadd.f32 %v714, %v745
        %v754 = vadd.f32 %v715, %v745
        %v755 = vadd.f32 %v716, %v745
        %v756 = vadd.f32 %v717, %v745
        %v757 = vadd.f32 %v718, %v745
        %v758 = vadd.f32 %v719, %v745
        %v759 = vadd.f32 %v720, %v745
        %v760 = vadd.f32 %v721, %v745
        %v761 = vadd.f32 %v722, %v745
        %v762 = vadd.f32 %v723, %v745
        %v763 = vadd.f32 %v724, %v745
        %v764 = vadd.f32 %v725, %v745
        %v765 = vadd.f32 %v726, %v745
        %v766 = vadd.f32 %v727, %v745
        %v767 = vadd.f32 %v728, %v745
        %v768 = vadd.f32 %v729, %v745
        %v769 = vadd.f32 %v730, %v745
        %v770 = vadd.f32 %v731, %v745
        %v771 = vadd.f32 %v732, %v745
        %v772 = vadd.f32 %v733, %v745
        %v773 = vadd.f32 %v734, %v745
        %v774 = vadd.f32 %v735, %v745
        %v775 = vadd.f32 %v736, %v745
        %v776 = vadd.f32 %v737, %v745
        %v777 = vadd.f32 %v738, %v745
        %v778 = vadd.f32 %v739, %v745
        %v779 = vmul.f32 %v747, 0.2
        %v780 = vmul.f32 %v748, 0.2
        %v781 = vmul.f32 %v749, 0.2
        %v782 = vmul.f32 %v750, 0.2
        %v783 = vmul.f32 %v751, 0.2
        %v784 = vmul.f32 %v752, 0.2
        %v785 = vmul.f32 %v753, 0.2
        %v786 = vmul.f32 %v754, 0.2
        %v787 = vmul.f32 %v755, 0.2
        %v788 = vmul.f32 %v756, 0.2
        %v789 = vmul.f32 %v757, 0.2
        %v790 = vmul.f32 %v758, 0.2
        %v791 = vmul.f32 %v759, 0.2
        %v792 = vmul.f32 %v760, 0.2
        %v793 = vmul.f32 %v761, 0.2
        %v794 = vmul.f32 %v762, 0.2
        %v795 = vmul.f32 %v763, 0.2
        %v796 = vmul.f32 %v764, 0.2
        %v797 = vmul.f32 %v765, 0.2
        %v798 = vmul.f32 %v766, 0.2
        %v799 = vmul.f32 %v767, 0.2
        %v800 = vmul.f32 %v768, 0.2
        %v801 = vmul.f32 %v769, 0.2
        %v802 = vmul.f32 %v770, 0.2
        %v803 = vmul.f32 %v771, 0.2
        %v804 = vmul.f32 %v772, 0.2
        %v805 = vmul.f32 %v773, 0.2
        %v806 = vmul.f32 %v774, 0.2
        %v807 = vmul.f32 %v775, 0.2
        %v808 = vmul.f32 %v776, 0.2
        %v809 = vmul.f32 %v777, 0.2
        %v810 = vmul.f32 %v778, 0.2
        %v811 = vmax.f32 %v747, %v779
        %v812 = vmax.f32 %v748, %v780
        %v813 = vmax.f32 %v749, %v781
        %v814 = vmax.f32 %v750, %v782
        %v815 = vmax.f32 %v751, %v783
        %v816 = vmax.f32 %v752, %v784
        %v817 = vmax.f32 %v753, %v785
        %v818 = vmax.f32 %v754, %v786
        %v819 = vmax.f32 %v755, %v787
        %v820 = vmax.f32 %v756, %v788
        %v821 = vmax.f32 %v757, %v789
        %v822 = vmax.f32 %v758, %v790
        %v823 = vmax.f32 %v759, %v791
        %v824 = vmax.f32 %v760, %v792
        %v825 = vmax.f32 %v761, %v793
        %v826 = vmax.f32 %v762, %v794
        %v827 = vmax.f32 %v763, %v795
        %v828 = vmax.f32 %v764, %v796
        %v829 = vmax.f32 %v765, %v797
        %v830 = vmax.f32 %v766, %v798
        %v831 = vmax.f32 %v767, %v799
        %v832 = vmax.f32 %v768, %v800
        %v833 = vmax.f32 %v769, %v801
        %v834 = vmax.f32 %v770, %v802
        %v835 = vmax.f32 %v771, %v803
        %v836 = vmax.f32 %v772, %v804
        %v837 = vmax.f32 %v773, %v805
        %v838 = vmax.f32 %v774, %v806
        %v839 = vmax.f32 %v775, %v807
        %v840 = vmax.f32 %v776, %v808
        %v841 = vmax.f32 %v777, %v809
        %v842 = vmax.f32 %v778, %v810
        %v843 = vpack.c.bf16 %v812, %v811
        %v844 = vpack.c.bf16 %v814, %v813
        %v845 = vpack.c.bf16 %v816, %v815
        %v846 = vpack.c.bf16 %v818, %v817
        %v847 = vpack.c.bf16 %v820, %v819
        %v848 = vpack.c.bf16 %v822, %v821
        %v849 = vpack.c.bf16 %v824, %v823
        %v850 = vpack.c.bf16 %v826, %v825
        %v851 = vpack.c.bf16 %v828, %v827
        %v852 = vpack.c.bf16 %v830, %v829
        %v853 = vpack.c.bf16 %v832, %v831
        %v854 = vpack.c.bf16 %v834, %v833
        %v855 = vpack.c.bf16 %v836, %v835
        %v856 = vpack.c.bf16 %v838, %v837
        %v857 = vpack.c.bf16 %v840, %v839
        %v858 = vpack.c.bf16 %v842, %v841
        %v875 = vunpack.c.l.b16 %v843
        %v876 = vunpack.c.h.b16 %v843
        %v877 = vunpack.c.l.b16 %v844
        %v878 = vunpack.c.h.b16 %v844
        %v879 = vunpack.c.l.b16 %v845
        %v880 = vunpack.c.h.b16 %v845
        %v881 = vunpack.c.l.b16 %v846
        %v882 = vunpack.c.h.b16 %v846
        %v883 = vunpack.c.l.b16 %v847
        %v884 = vunpack.c.h.b16 %v847
        %v885 = vunpack.c.l.b16 %v848
        %v886 = vunpack.c.h.b16 %v848
        %v887 = vunpack.c.l.b16 %v849
        %v888 = vunpack.c.h.b16 %v849
        %v889 = vunpack.c.l.b16 %v850
        %v890 = vunpack.c.h.b16 %v850
        %v891 = vunpack.c.l.b16 %v851
        %v892 = vunpack.c.h.b16 %v851
        %v893 = vunpack.c.l.b16 %v852
        %v894 = vunpack.c.h.b16 %v852
        %v895 = vunpack.c.l.b16 %v853
        %v896 = vunpack.c.h.b16 %v853
        %v897 = vunpack.c.l.b16 %v854
        %v898 = vunpack.c.h.b16 %v854
        %v899 = vunpack.c.l.b16 %v855
        %v900 = vunpack.c.h.b16 %v855
        %v901 = vunpack.c.l.b16 %v856
        %v902 = vunpack.c.h.b16 %v856
        %v903 = vunpack.c.l.b16 %v857
        %v904 = vunpack.c.h.b16 %v857
        %v905 = vunpack.c.l.b16 %v858
        %v906 = vunpack.c.h.b16 %v858
        %v907 = vpack.c.b16 %v875, %v875
        %v908 = vpack.c.b16 %v876, %v876
        %v909 = vpack.c.b16 %v877, %v877
        %v910 = vpack.c.b16 %v878, %v878
        %v911 = vpack.c.b16 %v879, %v879
        %v912 = vpack.c.b16 %v880, %v880
        %v913 = vpack.c.b16 %v881, %v881
        %v914 = vpack.c.b16 %v882, %v882
        %v915 = vpack.c.b16 %v883, %v883
        %v916 = vpack.c.b16 %v884, %v884
        %v917 = vpack.c.b16 %v885, %v885
        %v918 = vpack.c.b16 %v886, %v886
        %v919 = vpack.c.b16 %v887, %v887
        %v920 = vpack.c.b16 %v888, %v888
        %v921 = vpack.c.b16 %v889, %v889
        %v922 = vpack.c.b16 %v890, %v890
        %v923 = vpack.c.b16 %v891, %v891
        %v924 = vpack.c.b16 %v892, %v892
        %v925 = vpack.c.b16 %v893, %v893
        %v926 = vpack.c.b16 %v894, %v894
        %v927 = vpack.c.b16 %v895, %v895
        %v928 = vpack.c.b16 %v896, %v896
        %v929 = vpack.c.b16 %v897, %v897
        %v930 = vpack.c.b16 %v898, %v898
        %v931 = vpack.c.b16 %v899, %v899
        %v932 = vpack.c.b16 %v900, %v900
        %v933 = vpack.c.b16 %v901, %v901
        %v934 = vpack.c.b16 %v902, %v902
        %v935 = vpack.c.b16 %v903, %v903
        %v936 = vpack.c.b16 %v904, %v904
        %v937 = vpack.c.b16 %v905, %v905
        %v938 = vpack.c.b16 %v906, %v906
        %971 = vst [vmem:[%s217] sm:$0xf] %v907
        %972 = vst [vmem:[%s217 + $0x4] sm:$0xf] %v908
        %973 = vst [vmem:[%s217 + $0x8] sm:$0xf] %v909
        %974 = vst [vmem:[%s217 + $0xc] sm:$0xf] %v910
        %975 = vst [vmem:[%s217 + $0x10] sm:$0xf] %v911
        %976 = vst [vmem:[%s217 + $0x14] sm:$0xf] %v912
        %977 = vst [vmem:[%s217 + $0x18] sm:$0xf] %v913
        %978 = vst [vmem:[%s217 + $0x1c] sm:$0xf] %v914
        %979 = vst [vmem:[%s217 + $0x20] sm:$0xf] %v915
        %980 = vst [vmem:[%s217 + $0x24] sm:$0xf] %v916
        %981 = vst [vmem:[%s217 + $0x28] sm:$0xf] %v917
        %982 = vst [vmem:[%s217 + $0x2c] sm:$0xf] %v918
        %983 = vst [vmem:[%s217 + $0x30] sm:$0xf] %v919
        %984 = vst [vmem:[%s217 + $0x34] sm:$0xf] %v920
        %985 = vst [vmem:[%s217 + $0x38] sm:$0xf] %v921
        %986 = vst [vmem:[%s217 + $0x3c] sm:$0xf] %v922
        %987 = vst [vmem:[%s217 + $0x40] sm:$0xf] %v923
        %988 = vst [vmem:[%s217 + $0x44] sm:$0xf] %v924
        %989 = vst [vmem:[%s217 + $0x48] sm:$0xf] %v925
        %990 = vst [vmem:[%s217 + $0x4c] sm:$0xf] %v926
        %991 = vst [vmem:[%s217 + $0x50] sm:$0xf] %v927
        %992 = vst [vmem:[%s217 + $0x54] sm:$0xf] %v928
        %993 = vst [vmem:[%s217 + $0x58] sm:$0xf] %v929
        %994 = vst [vmem:[%s217 + $0x5c] sm:$0xf] %v930
        %995 = vst [vmem:[%s217 + $0x60] sm:$0xf] %v931
        %996 = vst [vmem:[%s217 + $0x64] sm:$0xf] %v932
        %997 = vst [vmem:[%s217 + $0x68] sm:$0xf] %v933
        %998 = vst [vmem:[%s217 + $0x6c] sm:$0xf] %v934
        %999 = vst [vmem:[%s217 + $0x70] sm:$0xf] %v935
        %1000 = vst [vmem:[%s217 + $0x74] sm:$0xf] %v936
        %1001 = vst [vmem:[%s217 + $0x78] sm:$0xf] %v937
        %1002 = vst [vmem:[%s217 + $0x7c] sm:$0xf] %v938
      $region40: #{critic_forward.5} parent=31 // pred_fallthru
        _
      %s1003 = smul.u32 32, %s18
      %p1004 = scmp.lt.s32.totalorder %s1003, 63
      %s1005 = scalar_select %p1004, %s1003, 63
      %s1006 = smul.addr %s1005, 4
      %s1007 = scalar_lea.vmem %s3, %s1006
      // Predicated region
      $region41: #{critic_forward.5} parent=31 // pred_check
        %p1008 = pneg %p119
      $region42: #{critic_forward.5} parent=31 // pred_check_branch
        %1010 = sbr.rel (%p1008) target = $region44
      $region43: #{critic_forward.5} parent=31 // pred_region
        %s1011 = smul.u32 32, %s18
      $region44: #{critic_forward.5} parent=31 // pred_fallthru
        _
    $region32: #{critic_forward.5} parent=5 // pred_fallthru
      _
    %p1012 = scmp.le.s32.totalorder 2, %s9
    // Predicated region
    $region45: #{critic_forward.5} parent=5 // pred_check
      %p1013 = pneg %p1012
    $region46: #{critic_forward.5} parent=5 // pred_check_branch
      %1015 = sbr.rel (%p1013) target = $region48
    $region47: #{critic_forward.5} parent=5 // pred_region
      %s1016 = ssub.s32 %s9, 2
      // Predicated region
      $region49: #{critic_forward.5} parent=47 // pred_check
        %p1017 = pneg %p125
      $region50: #{critic_forward.5} parent=47 // pred_check_branch
        %1019 = sbr.rel (%p1017) target = $region52
      $region51: #{critic_forward.5} parent=47 // pred_region
        %s1020 = smul.u32 32, %s20
        %p1021 = scmp.lt.s32.totalorder %s1020, 63
        %s1022 = scalar_select %p1021, %s1020, 63
        %s1023 = smul.addr %s1022, 4
        %s1024 = scalar_lea.vmem %s3, %s1023
      $region52: #{critic_forward.5} parent=47 // pred_fallthru
        _
    $region48: #{critic_forward.5} parent=5 // pred_fallthru
      _
  $region6: #{critic_forward.5} parent=0 // loop_footer
    %s13 = sadd.s32 1, %s9
  $region7: #{critic_forward.5} parent=0 // loop_footer_branch
    %8 = sbr.rel target = $region3
  $region8: #{critic_forward.5} parent=0 // loop_exit
    _

// kernel: critic_forward.6
$region0: #{critic_forward.6}
  #allocation0 [shape = 'u32[]', space=smem, size = 0x4, offset = 0x4, fixed_abs, tag = 'smem constant byte address 0x4 - core index']
  #allocation1 [shape = 'u32[144,128]{1,0:T(1,128)}', space=vmem, size = 0x12000, scoped, tag = 'internal scratch']
  #allocation2 [shape = 'f32[64,128]{1,0:T(8,128)}', space=vmem, size = 0x8000, scoped, tag = 'scratch operand']
  %s0 = inlined_call_operand.vmem [shape: bf16[128,256], index: 0, kind: input, shape index: {}]
  %s1 = inlined_call_operand.vmem [shape: bf16[256,128], index: 1, kind: input, shape index: {}]
  %s2 = inlined_call_operand.vmem [shape: bf16[128,128], index: 2, kind: output, shape index: {0}]
  %s3 = inlined_call_operand.vmem [shape: f32[2,1,128], index: 3, kind: output, shape index: {1}]
  %s4 = inlined_call_operand.vmem [shape: f32[2,1,128], index: 4, kind: output, shape index: {2}]
  %5 = xla_tuple %s2, %s3, %s4
  %s6 = sld [smem:[#allocation0]]
  $region65: #{critic_forward.6} parent=0
    _
  %s8 = ssub.s32 1, %s6
  %s9 = scalar_select 0, %s8, %s6
  loop: start=0, step=1, limit=4
  $region2: #{critic_forward.6} parent=0 // loop_pre_header
    _
  $region3: #{critic_forward.6} parent=0 // loop_header
    %s11 = sphi 0, %s15
    %p12 = scmp.ge.s32.totalorder %s11, 4
    %s18 = sphi 0, %s30
    %s19 = sphi 0, %s26
    %s20 = sphi 0, %s18
    %s21 = sphi 0, %s19
    %s22 = sphi 0, %s20
    %s23 = sphi 0, %s21
    %s35 = sphi 0, %s37
    %s38 = sphi 0, %s35
    %s39 = sphi 0, %s38
    %s55 = sphi 0, %s39
    %s61 = sphi 0, %s63
    %s64 = sphi 0, %s61
    %s65 = sphi 0, %s64
    %s81 = sphi 0, %s65
    %s87 = sphi 0, %s89
    %s90 = sphi 0, %s87
    %s91 = sphi 0, %s90
    %s107 = sphi 0, %s91
    %s113 = sphi 0, %s115
    %s116 = sphi 0, %s113
    %s117 = sphi 0, %s116
    %s133 = sphi 0, %s117
    %s139 = sphi 0, %s141
    %s142 = sphi 0, %s139
    %s143 = sphi 0, %s142
    %s159 = sphi 0, %s143
  $region4: #{critic_forward.6} parent=0 // loop_header_branch
    %14 = sbr.rel (%p12) target = $region8
  $region5: #{critic_forward.6} parent=0 // loop_body
    %s16 = ssub.s32 %s11, 1
    %s17 = ssub.s32 %s11, 2
    %s24 = sadd.s32 1, %s19
    %p25 = scmp.ge.s32.totalorder %s24, 1
    %s26 = scalar_select %p25, 0, %s24
    %s27 = sadd.s32 1, %s18
    %s28 = scalar_select %p25, %s27, %s18
    %p29 = scmp.ge.s32.totalorder %s28, 2
    %s30 = scalar_select %p29, 0, %s28
    %s31 = ssub.s32 %s18, %s30
    %s32 = ssub.s32 %s19, %s26
    %s33 = sor.u32 %s31, %s32
    %p34 = scmp.eq.s32.totalorder %s33, 0
    %s36 = sadd.s32 %s35, 1
    %s37 = scalar_select %p34, %s35, %s36
    %p40 = pneg %p34
    %p41 = scmp.eq.s32.totalorder %s11, 1
    %p42 = por %p40, %p41
    %p43 = scmp.ne.s32.totalorder %s35, %s38
    %p44 = scmp.eq.s32.totalorder %s11, 0
    %p45 = por %p43, %p44
    %p46 = scmp.ne.s32.totalorder %s35, %s38
    %p47 = scmp.eq.s32.totalorder %s16, 1
    %p48 = por %p46, %p47
    %p49 = scmp.ne.s32.totalorder %s38, %s39
    %p50 = scmp.eq.s32.totalorder %s16, 0
    %p51 = por %p49, %p50
    %p52 = scmp.ne.s32.totalorder %s38, %s39
    %p53 = scmp.eq.s32.totalorder %s17, 1
    %p54 = por %p52, %p53
    %p56 = scmp.ne.s32.totalorder %s39, %s55
    %p57 = scmp.eq.s32.totalorder %s17, 0
    %p58 = por %p56, %p57
    %s59 = ssub.s32 %s19, %s26
    %p60 = scmp.eq.s32.totalorder %s59, 0
    %s62 = sadd.s32 %s61, 1
    %s63 = scalar_select %p60, %s61, %s62
    %p66 = pneg %p60
    %p67 = scmp.eq.s32.totalorder %s11, 1
    %p68 = por %p66, %p67
    %p69 = scmp.ne.s32.totalorder %s61, %s64
    %p70 = scmp.eq.s32.totalorder %s11, 0
    %p71 = por %p69, %p70
    %p72 = scmp.ne.s32.totalorder %s61, %s64
    %p73 = scmp.eq.s32.totalorder %s16, 1
    %p74 = por %p72, %p73
    %p75 = scmp.ne.s32.totalorder %s64, %s65
    %p76 = scmp.eq.s32.totalorder %s16, 0
    %p77 = por %p75, %p76
    %p78 = scmp.ne.s32.totalorder %s64, %s65
    %p79 = scmp.eq.s32.totalorder %s17, 1
    %p80 = por %p78, %p79
    %p82 = scmp.ne.s32.totalorder %s65, %s81
    %p83 = scmp.eq.s32.totalorder %s17, 0
    %p84 = por %p82, %p83
    %s85 = ssub.s32 %s18, %s30
    %p86 = scmp.eq.s32.totalorder %s85, 0
    %s88 = sadd.s32 %s87, 1
    %s89 = scalar_select %p86, %s87, %s88
    %p92 = pneg %p86
    %p93 = scmp.eq.s32.totalorder %s11, 1
    %p94 = por %p92, %p93
    %p95 = scmp.ne.s32.totalorder %s87, %s90
    %p96 = scmp.eq.s32.totalorder %s11, 0
    %p97 = por %p95, %p96
    %p98 = scmp.ne.s32.totalorder %s87, %s90
    %p99 = scmp.eq.s32.totalorder %s16, 1
    %p100 = por %p98, %p99
    %p101 = scmp.ne.s32.totalorder %s90, %s91
    %p102 = scmp.eq.s32.totalorder %s16, 0
    %p103 = por %p101, %p102
    %p104 = scmp.ne.s32.totalorder %s90, %s91
    %p105 = scmp.eq.s32.totalorder %s17, 1
    %p106 = por %p104, %p105
    %p108 = scmp.ne.s32.totalorder %s91, %s107
    %p109 = scmp.eq.s32.totalorder %s17, 0
    %p110 = por %p108, %p109
    %s111 = ssub.s32 %s18, %s30
    %p112 = scmp.eq.s32.totalorder %s111, 0
    %s114 = sadd.s32 %s113, 1
    %s115 = scalar_select %p112, %s113, %s114
    %p118 = pneg %p112
    %p119 = scmp.eq.s32.totalorder %s11, 1
    %p120 = por %p118, %p119
    %p121 = scmp.ne.s32.totalorder %s113, %s116
    %p122 = scmp.eq.s32.totalorder %s11, 0
    %p123 = por %p121, %p122
    %p124 = scmp.ne.s32.totalorder %s113, %s116
    %p125 = scmp.eq.s32.totalorder %s16, 1
    %p126 = por %p124, %p125
    %p127 = scmp.ne.s32.totalorder %s116, %s117
    %p128 = scmp.eq.s32.totalorder %s16, 0
    %p129 = por %p127, %p128
    %p130 = scmp.ne.s32.totalorder %s116, %s117
    %p131 = scmp.eq.s32.totalorder %s17, 1
    %p132 = por %p130, %p131
    %p134 = scmp.ne.s32.totalorder %s117, %s133
    %p135 = scmp.eq.s32.totalorder %s17, 0
    %p136 = por %p134, %p135
    %s137 = ssub.s32 %s18, %s30
    %p138 = scmp.eq.s32.totalorder %s137, 0
    %s140 = sadd.s32 %s139, 1
    %s141 = scalar_select %p138, %s139, %s140
    %p144 = pneg %p138
    %p145 = scmp.eq.s32.totalorder %s11, 1
    %p146 = por %p144, %p145
    %p147 = scmp.ne.s32.totalorder %s139, %s142
    %p148 = scmp.eq.s32.totalorder %s11, 0
    %p149 = por %p147, %p148
    %p150 = scmp.ne.s32.totalorder %s139, %s142
    %p151 = scmp.eq.s32.totalorder %s16, 1
    %p152 = por %p150, %p151
    %p153 = scmp.ne.s32.totalorder %s142, %s143
    %p154 = scmp.eq.s32.totalorder %s16, 0
    %p155 = por %p153, %p154
    %p156 = scmp.ne.s32.totalorder %s142, %s143
    %p157 = scmp.eq.s32.totalorder %s17, 1
    %p158 = por %p156, %p157
    %p160 = scmp.ne.s32.totalorder %s143, %s159
    %p161 = scmp.eq.s32.totalorder %s17, 0
    %p162 = por %p160, %p161
    %p163 = scmp.le.s32.totalorder 1, %s11
    %p164 = scmp.lt.s32.totalorder %s11, 3
    %p165 = pnand %p163, %p164
    %p166 = pneg %p165
    // Predicated region
    $region9: #{critic_forward.6} parent=5 // pred_check
      _
    $region10: #{critic_forward.6} parent=5 // pred_check_branch
      %168 = sbr.rel (%p165) target = $region12
    $region11: #{critic_forward.6} parent=5 // pred_region
      %s169 = ssub.s32 %s11, 1
      // Predicated region
      $region13: #{critic_forward.6} parent=11 // pred_check
        %p170 = pneg %p77
      $region14: #{critic_forward.6} parent=11 // pred_check_branch
        %172 = sbr.rel (%p170) target = $region16
      $region15: #{critic_forward.6} parent=11 // pred_region
        %s173 = smul.u32 32, %s21
        %p174 = scmp.lt.s32.totalorder %s173, 31
        %s175 = scalar_select %p174, %s173, 31
        %s176 = smul.addr %s175, 4
        %s177 = scalar_lea.vmem %s1, %s176
        %s178 = smul.u32 32, %s21
      $region16: #{critic_forward.6} parent=11 // pred_fallthru
        _
    $region12: #{critic_forward.6} parent=5 // pred_fallthru
      _
    %p179 = scmp.lt.s32.totalorder %s11, 2
    // Predicated region
    $region17: #{critic_forward.6} parent=5 // pred_check
      %p180 = pneg %p179
    $region18: #{critic_forward.6} parent=5 // pred_check_branch
      %182 = sbr.rel (%p180) target = $region20
    $region19: #{critic_forward.6} parent=5 // pred_region
      // Predicated region
      $region21: #{critic_forward.6} parent=19 // pred_check
        %p183 = pneg %p45
      $region22: #{critic_forward.6} parent=19 // pred_check_branch
        %185 = sbr.rel (%p183) target = $region24
      $region23: #{critic_forward.6} parent=19 // pred_region
        %s186 = smul.u32 8, %s18
        %s187 = smul.u32 2, %s19
        %p188 = scmp.lt.s32.totalorder %s186, 15
        %s189 = scalar_select %p188, %s186, 15
        %p190 = scmp.lt.s32.totalorder %s187, 1
        %s191 = scalar_select %p190, %s187, 1
        %s192 = smul.addr %s189, 2
        %s193 = sadd.s32 %s191, %s192
        %s194 = smul.addr %s193, 4
        %s195 = scalar_lea.vmem %s0, %s194
        %s196 = smul.u32 8, %s18
        %s197 = smul.u32 2, %s19
      $region24: #{critic_forward.6} parent=19 // pred_fallthru
        _
    $region20: #{critic_forward.6} parent=5 // pred_fallthru
      _
    %p198 = scmp.le.s32.totalorder 1, %s11
    %p199 = scmp.lt.s32.totalorder %s11, 3
    %p200 = pnand %p198, %p199
    %p201 = pneg %p200
    // Predicated region
    $region25: #{critic_forward.6} parent=5 // pred_check
      _
    $region26: #{critic_forward.6} parent=5 // pred_check_branch
      %203 = sbr.rel (%p200) target = $region28
    $region27: #{critic_forward.6} parent=5 // pred_region
      %s204 = ssub.s32 %s11, 1
      %s205 = smul.u32 8, %s20
      %s206 = smul.u32 2, %s21
      %p207 = scmp.lt.s32.totalorder %s205, 15
      %s208 = scalar_select %p207, %s205, 15
      %p209 = scmp.lt.s32.totalorder %s206, 1
      %s210 = scalar_select %p209, %s206, 1
      %s211 = smul.addr %s208, 2
      %s212 = sadd.s32 %s210, %s211
      %s213 = smul.addr %s212, 4
      %s214 = scalar_lea.vmem %s0, %s213
      %p215 = pneg %p51
      %p216 = pneg %p48
      %s217 = smul.u32 32, %s21
      %p218 = scmp.lt.s32.totalorder %s217, 31
      %s219 = scalar_select %p218, %s217, 31
      %s220 = smul.addr %s219, 4
      %s221 = scalar_lea.vmem %s1, %s220
      %p222 = pneg %p77
      %p223 = pneg %p74
      %p224 = pneg %p103
      %p225 = pneg %p100
      %s226 = smul.u32 8, %s20
      %p227 = scmp.lt.s32.totalorder %s226, 15
      %s228 = scalar_select %p227, %s226, 15
      %s229 = smul.addr %s228, 4
      %s230 = scalar_lea.vmem %s2, %s229
      %p231 = pneg %p129
      %p232 = pneg %p126
      %p233 = scmp.lt.s32.totalorder %s20, 1
      %s234 = scalar_select %p233, %s20, 1
      %s235 = scalar_lea.vmem %s3, %s234
      %p236 = pneg %p155
      %p237 = pneg %p152
      %p238 = scmp.lt.s32.totalorder %s20, 1
      %s239 = scalar_select %p238, %s20, 1
      %s240 = scalar_lea.vmem %s4, %s239
      %s241 = smul.u32 8, %s20
      %s242 = smul.u32 2, %s21
      %p243 = scmp.lt.s32.totalorder %s241, 15
      %s244 = scalar_select %p243, %s241, 15
      %p245 = scmp.lt.s32.totalorder %s242, 1
      %s246 = scalar_select %p245, %s242, 1
      %s247 = smul.addr %s244, 2
      %s248 = sadd.s32 %s246, %s247
      %s249 = smul.addr %s248, 4
      %s250 = scalar_lea.vmem %s0, %s249
      %s251 = smul.u32 8, %s20
      %s252 = smul.u32 2, %s21
      %s253 = smul.u32 32, %s21
      %p254 = scmp.lt.s32.totalorder %s253, 31
      %s255 = scalar_select %p254, %s253, 31
      %s256 = smul.addr %s255, 4
      %s257 = scalar_lea.vmem %s1, %s256
      %s258 = smul.u32 32, %s21
      %s259 = smul.u32 8, %s20
      %p260 = scmp.lt.s32.totalorder %s259, 15
      %s261 = scalar_select %p260, %s259, 15
      %s262 = smul.addr %s261, 4
      %s263 = scalar_lea.vmem %s2, %s262
      %s264 = smul.u32 8, %s20
      %p265 = scmp.lt.s32.totalorder %s20, 1
      %s266 = scalar_select %p265, %s20, 1
      %s267 = scalar_lea.vmem %s3, %s266
      %p268 = scmp.lt.s32.totalorder %s20, 1
      %s269 = scalar_select %p268, %s20, 1
      %s270 = scalar_lea.vmem %s4, %s269
      %p272 = scmp.eq.s32.totalorder %s21, 0
      // Predicated region
      $region29: #{critic_forward.6} parent=27 // pred_check
        %p273 = pneg %p272
      $region30: #{critic_forward.6} parent=27 // pred_check_branch
        %275 = sbr.rel (%p273) target = $region32
      $region31: #{critic_forward.6} parent=27 // pred_region
        %276 = vst [vmem:[#allocation2] sm:$0xff] 0.0
        %277 = vst [vmem:[#allocation2 + $0x8] sm:$0xff] 0.0
        %278 = vst [vmem:[#allocation2 + $0x10] sm:$0xff] 0.0
        %279 = vst [vmem:[#allocation2 + $0x18] sm:$0xff] 0.0
        %280 = vst [vmem:[#allocation2 + $0x20] sm:$0xff] 0.0
        %281 = vst [vmem:[#allocation2 + $0x28] sm:$0xff] 0.0
        %282 = vst [vmem:[#allocation2 + $0x30] sm:$0xff] 0.0
        %283 = vst [vmem:[#allocation2 + $0x38] sm:$0xff] 0.0
      $region32: #{critic_forward.6} parent=27 // pred_fallthru
        _
      %v284 = vld [vmem:[#allocation2] sm:$0xff]
      %v285 = vld [vmem:[#allocation2 + $0x8] sm:$0xff]
      %v286 = vld [vmem:[#allocation2 + $0x10] sm:$0xff]
      %v287 = vld [vmem:[#allocation2 + $0x18] sm:$0xff]
      %v288 = vld [vmem:[#allocation2 + $0x20] sm:$0xff]
      %v289 = vld [vmem:[#allocation2 + $0x28] sm:$0xff]
      %v290 = vld [vmem:[#allocation2 + $0x30] sm:$0xff]
      %v291 = vld [vmem:[#allocation2 + $0x38] sm:$0xff]
      %v292 = vld [vmem:[%s250] sm:$0xff]
      %v293 = vld [vmem:[%s250 + $0x8] sm:$0xff]
      %v294 = vld [vmem:[%s250 + $0x10] sm:$0xff]
      %v295 = vld [vmem:[%s250 + $0x18] sm:$0xff]
      %v296 = vld [vmem:[%s250 + $0x20] sm:$0xff]
      %v297 = vld [vmem:[%s250 + $0x28] sm:$0xff]
      %v298 = vld [vmem:[%s250 + $0x30] sm:$0xff]
      %v299 = vld [vmem:[%s250 + $0x38] sm:$0xff]
      %v300 = vld [vmem:[%s257] sm:$0xf]
      %v301 = vld [vmem:[%s257 + $0x4] sm:$0xf]
      %v302 = vld [vmem:[%s257 + $0x8] sm:$0xf]
      %v303 = vld [vmem:[%s257 + $0xc] sm:$0xf]
      %v304 = vld [vmem:[%s257 + $0x10] sm:$0xf]
      %v305 = vld [vmem:[%s257 + $0x14] sm:$0xf]
      %v306 = vld [vmem:[%s257 + $0x18] sm:$0xf]
      %v307 = vld [vmem:[%s257 + $0x1c] sm:$0xf]
      %v308 = vld [vmem:[%s257 + $0x20] sm:$0xf]
      %v309 = vld [vmem:[%s257 + $0x24] sm:$0xf]
      %v310 = vld [vmem:[%s257 + $0x28] sm:$0xf]
      %v311 = vld [vmem:[%s257 + $0x2c] sm:$0xf]
      %v312 = vld [vmem:[%s257 + $0x30] sm:$0xf]
      %v313 = vld [vmem:[%s257 + $0x34] sm:$0xf]
      %v314 = vld [vmem:[%s257 + $0x38] sm:$0xf]
      %v315 = vld [vmem:[%s257 + $0x3c] sm:$0xf]
      %v316 = vld [vmem:[%s257 + $0x40] sm:$0xf]
      %v317 = vld [vmem:[%s257 + $0x44] sm:$0xf]
      %v318 = vld [vmem:[%s257 + $0x48] sm:$0xf]
      %v319 = vld [vmem:[%s257 + $0x4c] sm:$0xf]
      %v320 = vld [vmem:[%s257 + $0x50] sm:$0xf]
      %v321 = vld [vmem:[%s257 + $0x54] sm:$0xf]
      %v322 = vld [vmem:[%s257 + $0x58] sm:$0xf]
      %v323 = vld [vmem:[%s257 + $0x5c] sm:$0xf]
      %v324 = vld [vmem:[%s257 + $0x60] sm:$0xf]
      %v325 = vld [vmem:[%s257 + $0x64] sm:$0xf]
      %v326 = vld [vmem:[%s257 + $0x68] sm:$0xf]
      %v327 = vld [vmem:[%s257 + $0x6c] sm:$0xf]
      %v328 = vld [vmem:[%s257 + $0x70] sm:$0xf]
      %v329 = vld [vmem:[%s257 + $0x74] sm:$0xf]
      %v330 = vld [vmem:[%s257 + $0x78] sm:$0xf]
      %v331 = vld [vmem:[%s257 + $0x7c] sm:$0xf]
      %v340 = vunpack.c.l.b16 %v292
      %v341 = vunpack.c.h.b16 %v292
      %v342 = vunpack.c.l.b16 %v293
      %v343 = vunpack.c.h.b16 %v293
      %v344 = vunpack.c.l.b16 %v294
      %v345 = vunpack.c.h.b16 %v294
      %v346 = vunpack.c.l.b16 %v295
      %v347 = vunpack.c.h.b16 %v295
      %v348 = vunpack.c.l.b16 %v296
      %v349 = vunpack.c.h.b16 %v296
      %v350 = vunpack.c.l.b16 %v297
      %v351 = vunpack.c.h.b16 %v297
      %v352 = vunpack.c.l.b16 %v298
      %v353 = vunpack.c.h.b16 %v298
      %v354 = vunpack.c.l.b16 %v299
      %v355 = vunpack.c.h.b16 %v299
      %v356 = vpack.c.b16 %v342, %v340
      %v357 = vpack.c.b16 %v343, %v341
      %v358 = vpack.c.b16 %v346, %v344
      %v359 = vpack.c.b16 %v347, %v345
      %v360 = vpack.c.b16 %v350, %v348
      %v361 = vpack.c.b16 %v351, %v349
      %v362 = vpack.c.b16 %v354, %v352
      %v363 = vpack.c.b16 %v355, %v353
      %v404 = vunpack.c.l.b16 %v300
      %v405 = vunpack.c.l.b16 %v301
      %v406 = vunpack.c.l.b16 %v302
      %v407 = vunpack.c.l.b16 %v303
      %v408 = vunpack.c.l.b16 %v304
      %v409 = vunpack.c.l.b16 %v305
      %v410 = vunpack.c.l.b16 %v306
      %v411 = vunpack.c.l.b16 %v307
      %v412 = vunpack.c.l.b16 %v308
      %v413 = vunpack.c.l.b16 %v309
      %v414 = vunpack.c.l.b16 %v310
      %v415 = vunpack.c.l.b16 %v311
      %v416 = vunpack.c.l.b16 %v312
      %v417 = vunpack.c.l.b16 %v313
      %v418 = vunpack.c.l.b16 %v314
      %v419 = vunpack.c.l.b16 %v315
      %v420 = vunpack.c.l.b16 %v316
      %v421 = vunpack.c.l.b16 %v317
      %v422 = vunpack.c.l.b16 %v318
      %v423 = vunpack.c.l.b16 %v319
      %v424 = vunpack.c.l.b16 %v320
      %v425 = vunpack.c.l.b16 %v321
      %v426 = vunpack.c.l.b16 %v322
      %v427 = vunpack.c.l.b16 %v323
      %v428 = vunpack.c.l.b16 %v324
      %v429 = vunpack.c.l.b16 %v325
      %v430 = vunpack.c.l.b16 %v326
      %v431 = vunpack.c.l.b16 %v327
      %v432 = vunpack.c.l.b16 %v328
      %v433 = vunpack.c.l.b16 %v329
      %v434 = vunpack.c.l.b16 %v330
      %v435 = vunpack.c.l.b16 %v331
      %v436 = vpack.c.b16 %v405, %v404
      %v437 = vpack.c.b16 %v407, %v406
      %v438 = vpack.c.b16 %v409, %v408
      %v439 = vpack.c.b16 %v411, %v410
      %v440 = vpack.c.b16 %v413, %v412
      %v441 = vpack.c.b16 %v415, %v414
      %v442 = vpack.c.b16 %v417, %v416
      %v443 = vpack.c.b16 %v419, %v418
      %v444 = vpack.c.b16 %v421, %v420
      %v445 = vpack.c.b16 %v423, %v422
      %v446 = vpack.c.b16 %v425, %v424
      %v447 = vpack.c.b16 %v427, %v426
      %v448 = vpack.c.b16 %v429, %v428
      %v449 = vpack.c.b16 %v431, %v430
      %v450 = vpack.c.b16 %v433, %v432
      %v451 = vpack.c.b16 %v435, %v434
      %468 = vmatprep.subr.bf16.mxu0 0
      %469 = vmatpush1.bf16.msra.mxu0 %v436
      %470 = vmatprep.subr.bf16.mxu0 0
      %471 = vmatpush1.bf16.msra.mxu0 %v437
      %472 = vmatprep.subr.bf16.mxu0 0
      %473 = vmatpush1.bf16.msra.mxu0 %v438
      %474 = vmatprep.subr.bf16.mxu0 0
      %475 = vmatpush1.bf16.msra.mxu0 %v439
      %476 = vmatprep.subr.bf16.mxu0 0
      %477 = vmatpush1.bf16.msra.mxu0 %v440
      %478 = vmatprep.subr.bf16.mxu0 0
      %479 = vmatpush1.bf16.msra.mxu0 %v441
      %480 = vmatprep.subr.bf16.mxu0 0
      %481 = vmatpush1.bf16.msra.mxu0 %v442
      %482 = vmatprep.subr.bf16.mxu0 0
      %483 = vmatpush1.bf16.msra.mxu0 %v443
      %484 = vmatprep.subr.bf16.mxu0 0
      %485 = vmatpush1.bf16.msra.mxu0 %v444
      %486 = vmatprep.subr.bf16.mxu0 0
      %487 = vmatpush1.bf16.msra.mxu0 %v445
      %488 = vmatprep.subr.bf16.mxu0 0
      %489 = vmatpush1.bf16.msra.mxu0 %v446
      %490 = vmatprep.subr.bf16.mxu0 0
      %491 = vmatpush1.bf16.msra.mxu0 %v447
      %492 = vmatprep.subr.bf16.mxu0 0
      %493 = vmatpush1.bf16.msra.mxu0 %v448
      %494 = vmatprep.subr.bf16.mxu0 0
      %495 = vmatpush1.bf16.msra.mxu0 %v449
      %496 = vmatprep.subr.bf16.mxu0 0
      %497 = vmatpush1.bf16.msra.mxu0 %v450
      %498 = vmatprep.subr.bf16.mxu0 0
      %499 = vmatpush1.bf16.msra.mxu0 %v451
      %500 = vmatprep.mubr.bf16.mxu0 %v357
      %501 = vmatmul.mubr.bf16.gmra.mrb[0].mxu0 %v356
      %v502 = vpop.f32.mrb[0].mxu0
      %v503 = vadd.f32 0.0, %v502
      %v504 = vpop.f32.mrb[0].mxu0
      %v505 = vpop.f32.mrb[0].mxu0
      %v506 = vadd.f32 0.0, %v505
      %v507 = vpop.f32.mrb[0].mxu0
      %508 = vmatprep.mubr.bf16.mxu0 %v359
      %509 = vmatmul.mubr.bf16.gmra.mrb[0].mxu0 %v358
      %v510 = vpop.f32.mrb[0].mxu0
      %v511 = vadd.f32 0.0, %v510
      %v512 = vpop.f32.mrb[0].mxu0
      %v513 = vpop.f32.mrb[0].mxu0
      %v514 = vadd.f32 0.0, %v513
      %v515 = vpop.f32.mrb[0].mxu0
      %516 = vmatprep.mubr.bf16.mxu0 %v361
      %517 = vmatmul.mubr.bf16.gmra.mrb[0].mxu0 %v360
      %v518 = vpop.f32.mrb[0].mxu0
      %v519 = vadd.f32 0.0, %v518
      %v520 = vpop.f32.mrb[0].mxu0
      %v521 = vpop.f32.mrb[0].mxu0
      %v522 = vadd.f32 0.0, %v521
      %v523 = vpop.f32.mrb[0].mxu0
      %524 = vmatprep.mubr.bf16.mxu0 %v363
      %525 = vmatmul.mubr.bf16.gmra.mrb[0].mxu0 %v362
      %v526 = vpop.f32.mrb[0].mxu0
      %v527 = vadd.f32 0.0, %v526
      %v528 = vpop.f32.mrb[0].mxu0
      %v529 = vpop.f32.mrb[0].mxu0
      %v530 = vadd.f32 0.0, %v529
      %v531 = vpop.f32.mrb[0].mxu0
      %532 = vdwg.mxu0
      %v533 = vadd.f32 %v284, %v503
      %v534 = vadd.f32 %v285, %v506
      %v535 = vadd.f32 %v286, %v511
      %v536 = vadd.f32 %v287, %v514
      %v537 = vadd.f32 %v288, %v519
      %v538 = vadd.f32 %v289, %v522
      %v539 = vadd.f32 %v290, %v527
      %v540 = vadd.f32 %v291, %v530
      %541 = vst [vmem:[#allocation2] sm:$0xff] %v533
      %542 = vst [vmem:[#allocation2 + $0x8] sm:$0xff] %v534
      %543 = vst [vmem:[#allocation2 + $0x10] sm:$0xff] %v535
      %544 = vst [vmem:[#allocation2 + $0x18] sm:$0xff] %v536
      %545 = vst [vmem:[#allocation2 + $0x20] sm:$0xff] %v537
      %546 = vst [vmem:[#allocation2 + $0x28] sm:$0xff] %v538
      %547 = vst [vmem:[#allocation2 + $0x30] sm:$0xff] %v539
      %548 = vst [vmem:[#allocation2 + $0x38] sm:$0xff] %v540
      // Predicated region
      $region33: #{critic_forward.6} parent=27 // pred_check
        %p549 = pneg %p272
      $region34: #{critic_forward.6} parent=27 // pred_check_branch
        %551 = sbr.rel (%p549) target = $region36
      $region35: #{critic_forward.6} parent=27 // pred_region
        %v552 = vld [vmem:[#allocation2] sm:$0xff]
        %v553 = vld [vmem:[#allocation2 + $0x8] sm:$0xff]
        %v554 = vld [vmem:[#allocation2 + $0x10] sm:$0xff]
        %v555 = vld [vmem:[#allocation2 + $0x18] sm:$0xff]
        %v556 = vld [vmem:[#allocation2 + $0x20] sm:$0xff]
        %v557 = vld [vmem:[#allocation2 + $0x28] sm:$0xff]
        %v558 = vld [vmem:[#allocation2 + $0x30] sm:$0xff]
        %v559 = vld [vmem:[#allocation2 + $0x38] sm:$0xff]
        %v560 = vadd.f32 %v552, %v553
        %v561 = vadd.f32 %v560, %v554
        %v562 = vadd.f32 %v561, %v555
        %v563 = vadd.f32 %v562, %v556
        %v564 = vadd.f32 %v563, %v557
        %v565 = vadd.f32 %v564, %v558
        %v566 = vadd.f32 %v565, %v559
        %v567 = vrot.slane %v566, 4
        %v568 = vadd.f32 %v566, %v567
        %v569 = vrot.slane %v568, 2
        %v570 = vadd.f32 %v568, %v569
        %v571 = vrot.slane %v570, 1
        %v572 = vadd.f32 %v570, %v571
        %573 = vst [vmem:[%s267] sm:$0x1] %v572
        %v574 = vmul.f32 %v552, %v552
        %v575 = vmul.f32 %v553, %v553
        %v576 = vmul.f32 %v554, %v554
        %v577 = vmul.f32 %v555, %v555
        %v578 = vmul.f32 %v556, %v556
        %v579 = vmul.f32 %v557, %v557
        %v580 = vmul.f32 %v558, %v558
        %v581 = vmul.f32 %v559, %v559
        %v582 = vadd.f32 %v574, %v575
        %v583 = vadd.f32 %v582, %v576
        %v584 = vadd.f32 %v583, %v577
        %v585 = vadd.f32 %v584, %v578
        %v586 = vadd.f32 %v585, %v579
        %v587 = vadd.f32 %v586, %v580
        %v588 = vadd.f32 %v587, %v581
        %v589 = vrot.slane %v588, 4
        %v590 = vadd.f32 %v588, %v589
        %v591 = vrot.slane %v590, 2
        %v592 = vadd.f32 %v590, %v591
        %v593 = vrot.slane %v592, 1
        %v594 = vadd.f32 %v592, %v593
        %595 = vst [vmem:[%s270] sm:$0x1] %v594
        %v596 = vpack.c.bf16 %v553, %v552
        %v597 = vpack.c.bf16 %v555, %v554
        %v598 = vpack.c.bf16 %v557, %v556
        %v599 = vpack.c.bf16 %v559, %v558
        %v604 = vunpack.c.l.b16 %v596
        %v605 = vunpack.c.h.b16 %v596
        %v606 = vunpack.c.l.b16 %v597
        %v607 = vunpack.c.h.b16 %v597
        %v608 = vunpack.c.l.b16 %v598
        %v609 = vunpack.c.h.b16 %v598
        %v610 = vunpack.c.l.b16 %v599
        %v611 = vunpack.c.h.b16 %v599
        %v612 = vpack.c.b16 %v604, %v604
        %v613 = vpack.c.b16 %v605, %v605
        %v614 = vpack.c.b16 %v606, %v606
        %v615 = vpack.c.b16 %v607, %v607
        %v616 = vpack.c.b16 %v608, %v608
        %v617 = vpack.c.b16 %v609, %v609
        %v618 = vpack.c.b16 %v610, %v610
        %v619 = vpack.c.b16 %v611, %v611
        %628 = vst [vmem:[%s263] sm:$0xf] %v612
        %629 = vst [vmem:[%s263 + $0x4] sm:$0xf] %v613
        %630 = vst [vmem:[%s263 + $0x8] sm:$0xf] %v614
        %631 = vst [vmem:[%s263 + $0xc] sm:$0xf] %v615
        %632 = vst [vmem:[%s263 + $0x10] sm:$0xf] %v616
        %633 = vst [vmem:[%s263 + $0x14] sm:$0xf] %v617
        %634 = vst [vmem:[%s263 + $0x18] sm:$0xf] %v618
        %635 = vst [vmem:[%s263 + $0x1c] sm:$0xf] %v619
      $region36: #{critic_forward.6} parent=27 // pred_fallthru
        _
      %s636 = smul.u32 8, %s20
      %p637 = scmp.lt.s32.totalorder %s636, 15
      %s638 = scalar_select %p637, %s636, 15
      %s639 = smul.addr %s638, 4
      %s640 = scalar_lea.vmem %s2, %s639
      %p641 = scmp.lt.s32.totalorder %s20, 1
      %s642 = scalar_select %p641, %s20, 1
      %s643 = scalar_lea.vmem %s3, %s642
      %p644 = scmp.lt.s32.totalorder %s20, 1
      %s645 = scalar_select %p644, %s20, 1
      %s646 = scalar_lea.vmem %s4, %s645
      // Predicated region
      $region37: #{critic_forward.6} parent=27 // pred_check
        %p647 = pneg %p100
      $region38: #{critic_forward.6} parent=27 // pred_check_branch
        %649 = sbr.rel (%p647) target = $region40
      $region39: #{critic_forward.6} parent=27 // pred_region
        %s650 = smul.u32 8, %s20
      $region40: #{critic_forward.6} parent=27 // pred_fallthru
        _
      // Predicated region
      $region41: #{critic_forward.6} parent=27 // pred_check
        %p651 = pneg %p126
      $region42: #{critic_forward.6} parent=27 // pred_check_branch
        %653 = sbr.rel (%p651) target = $region44
      $region43: #{critic_forward.6} parent=27 // pred_region
        _
      $region44: #{critic_forward.6} parent=27 // pred_fallthru
        _
      // Predicated region
      $region45: #{critic_forward.6} parent=27 // pred_check
        %p654 = pneg %p152
      $region46: #{critic_forward.6} parent=27 // pred_check_branch
        %656 = sbr.rel (%p654) target = $region48
      $region47: #{critic_forward.6} parent=27 // pred_region
        _
      $region48: #{critic_forward.6} parent=27 // pred_fallthru
        _
    $region28: #{critic_forward.6} parent=5 // pred_fallthru
      _
    %p657 = scmp.le.s32.totalorder 2, %s11
    // Predicated region
    $region49: #{critic_forward.6} parent=5 // pred_check
      %p658 = pneg %p657
    $region50: #{critic_forward.6} parent=5 // pred_check_branch
      %660 = sbr.rel (%p658) target = $region52
    $region51: #{critic_forward.6} parent=5 // pred_region
      %s661 = ssub.s32 %s11, 2
      // Predicated region
      $region53: #{critic_forward.6} parent=51 // pred_check
        %p662 = pneg %p106
      $region54: #{critic_forward.6} parent=51 // pred_check_branch
        %664 = sbr.rel (%p662) target = $region56
      $region55: #{critic_forward.6} parent=51 // pred_region
        %s665 = smul.u32 8, %s22
        %p666 = scmp.lt.s32.totalorder %s665, 15
        %s667 = scalar_select %p666, %s665, 15
        %s668 = smul.addr %s667, 4
        %s669 = scalar_lea.vmem %s2, %s668
      $region56: #{critic_forward.6} parent=51 // pred_fallthru
        _
      // Predicated region
      $region57: #{critic_forward.6} parent=51 // pred_check
        %p670 = pneg %p132
      $region58: #{critic_forward.6} parent=51 // pred_check_branch
        %672 = sbr.rel (%p670) target = $region60
      $region59: #{critic_forward.6} parent=51 // pred_region
        %p673 = scmp.lt.s32.totalorder %s22, 1
        %s674 = scalar_select %p673, %s22, 1
        %s675 = scalar_lea.vmem %s3, %s674
      $region60: #{critic_forward.6} parent=51 // pred_fallthru
        _
      // Predicated region
      $region61: #{critic_forward.6} parent=51 // pred_check
        %p676 = pneg %p158
      $region62: #{critic_forward.6} parent=51 // pred_check_branch
        %678 = sbr.rel (%p676) target = $region64
      $region63: #{critic_forward.6} parent=51 // pred_region
        %p679 = scmp.lt.s32.totalorder %s22, 1
        %s680 = scalar_select %p679, %s22, 1
        %s681 = scalar_lea.vmem %s4, %s680
      $region64: #{critic_forward.6} parent=51 // pred_fallthru
        _
    $region52: #{critic_forward.6} parent=5 // pred_fallthru
      _
  $region6: #{critic_forward.6} parent=0 // loop_footer
    %s15 = sadd.s32 1, %s11
  $region7: #{critic_forward.6} parent=0 // loop_footer_branch
    %10 = sbr.rel target = $region3
  $region8: #{critic_forward.6} parent=0 // loop_exit
    _

// kernel: critic_forward.7
$region0: #{critic_forward.7}
  #allocation0 [shape = 'u32[]', space=smem, size = 0x4, offset = 0x4, fixed_abs, tag = 'smem constant byte address 0x4 - core index']
  #allocation1 [shape = 'u32[144,128]{1,0:T(1,128)}', space=vmem, size = 0x12000, scoped, tag = 'internal scratch']
  #allocation2 [shape = 'f32[16,128]{1,0:T(8,128)}', space=vmem, size = 0x2000, scoped, tag = 'scratch operand']
  %s0 = inlined_call_operand.vmem [shape: bf16[32,512], index: 0, kind: input, shape index: {}]
  %s1 = inlined_call_operand.vmem [shape: bf16[512,128], index: 1, kind: input, shape index: {}]
  %s2 = inlined_call_operand.vmem [shape: bf16[32,128], index: 2, kind: output, shape index: {0}]
  %s3 = inlined_call_operand.vmem [shape: f32[2,1,128], index: 3, kind: output, shape index: {1}]
  %s4 = inlined_call_operand.vmem [shape: f32[2,1,128], index: 4, kind: output, shape index: {2}]
  %5 = xla_tuple %s2, %s3, %s4
  %s6 = sld [smem:[#allocation0]]
  $region65: #{critic_forward.7} parent=0
    _
  %s8 = ssub.s32 1, %s6
  %s9 = scalar_select 0, %s8, %s6
  loop: start=0, step=1, limit=4
  $region2: #{critic_forward.7} parent=0 // loop_pre_header
    _
  $region3: #{critic_forward.7} parent=0 // loop_header
    %s11 = sphi 0, %s15
    %p12 = scmp.ge.s32.totalorder %s11, 4
    %s18 = sphi 0, %s30
    %s19 = sphi 0, %s26
    %s20 = sphi 0, %s18
    %s21 = sphi 0, %s19
    %s22 = sphi 0, %s20
    %s23 = sphi 0, %s21
    %s35 = sphi 0, %s37
    %s38 = sphi 0, %s35
    %s39 = sphi 0, %s38
    %s55 = sphi 0, %s39
    %s61 = sphi 0, %s63
    %s64 = sphi 0, %s61
    %s65 = sphi 0, %s64
    %s81 = sphi 0, %s65
    %s87 = sphi 0, %s89
    %s90 = sphi 0, %s87
    %s91 = sphi 0, %s90
    %s107 = sphi 0, %s91
    %s113 = sphi 0, %s115
    %s116 = sphi 0, %s113
    %s117 = sphi 0, %s116
    %s133 = sphi 0, %s117
    %s139 = sphi 0, %s141
    %s142 = sphi 0, %s139
    %s143 = sphi 0, %s142
    %s159 = sphi 0, %s143
  $region4: #{critic_forward.7} parent=0 // loop_header_branch
    %14 = sbr.rel (%p12) target = $region8
  $region5: #{critic_forward.7} parent=0 // loop_body
    %s16 = ssub.s32 %s11, 1
    %s17 = ssub.s32 %s11, 2
    %s24 = sadd.s32 1, %s19
    %p25 = scmp.ge.s32.totalorder %s24, 1
    %s26 = scalar_select %p25, 0, %s24
    %s27 = sadd.s32 1, %s18
    %s28 = scalar_select %p25, %s27, %s18
    %p29 = scmp.ge.s32.totalorder %s28, 2
    %s30 = scalar_select %p29, 0, %s28
    %s31 = ssub.s32 %s18, %s30
    %s32 = ssub.s32 %s19, %s26
    %s33 = sor.u32 %s31, %s32
    %p34 = scmp.eq.s32.totalorder %s33, 0
    %s36 = sadd.s32 %s35, 1
    %s37 = scalar_select %p34, %s35, %s36
    %p40 = pneg %p34
    %p41 = scmp.eq.s32.totalorder %s11, 1
    %p42 = por %p40, %p41
    %p43 = scmp.ne.s32.totalorder %s35, %s38
    %p44 = scmp.eq.s32.totalorder %s11, 0
    %p45 = por %p43, %p44
    %p46 = scmp.ne.s32.totalorder %s35, %s38
    %p47 = scmp.eq.s32.totalorder %s16, 1
    %p48 = por %p46, %p47
    %p49 = scmp.ne.s32.totalorder %s38, %s39
    %p50 = scmp.eq.s32.totalorder %s16, 0
    %p51 = por %p49, %p50
    %p52 = scmp.ne.s32.totalorder %s38, %s39
    %p53 = scmp.eq.s32.totalorder %s17, 1
    %p54 = por %p52, %p53
    %p56 = scmp.ne.s32.totalorder %s39, %s55
    %p57 = scmp.eq.s32.totalorder %s17, 0
    %p58 = por %p56, %p57
    %s59 = ssub.s32 %s19, %s26
    %p60 = scmp.eq.s32.totalorder %s59, 0
    %s62 = sadd.s32 %s61, 1
    %s63 = scalar_select %p60, %s61, %s62
    %p66 = pneg %p60
    %p67 = scmp.eq.s32.totalorder %s11, 1
    %p68 = por %p66, %p67
    %p69 = scmp.ne.s32.totalorder %s61, %s64
    %p70 = scmp.eq.s32.totalorder %s11, 0
    %p71 = por %p69, %p70
    %p72 = scmp.ne.s32.totalorder %s61, %s64
    %p73 = scmp.eq.s32.totalorder %s16, 1
    %p74 = por %p72, %p73
    %p75 = scmp.ne.s32.totalorder %s64, %s65
    %p76 = scmp.eq.s32.totalorder %s16, 0
    %p77 = por %p75, %p76
    %p78 = scmp.ne.s32.totalorder %s64, %s65
    %p79 = scmp.eq.s32.totalorder %s17, 1
    %p80 = por %p78, %p79
    %p82 = scmp.ne.s32.totalorder %s65, %s81
    %p83 = scmp.eq.s32.totalorder %s17, 0
    %p84 = por %p82, %p83
    %s85 = ssub.s32 %s18, %s30
    %p86 = scmp.eq.s32.totalorder %s85, 0
    %s88 = sadd.s32 %s87, 1
    %s89 = scalar_select %p86, %s87, %s88
    %p92 = pneg %p86
    %p93 = scmp.eq.s32.totalorder %s11, 1
    %p94 = por %p92, %p93
    %p95 = scmp.ne.s32.totalorder %s87, %s90
    %p96 = scmp.eq.s32.totalorder %s11, 0
    %p97 = por %p95, %p96
    %p98 = scmp.ne.s32.totalorder %s87, %s90
    %p99 = scmp.eq.s32.totalorder %s16, 1
    %p100 = por %p98, %p99
    %p101 = scmp.ne.s32.totalorder %s90, %s91
    %p102 = scmp.eq.s32.totalorder %s16, 0
    %p103 = por %p101, %p102
    %p104 = scmp.ne.s32.totalorder %s90, %s91
    %p105 = scmp.eq.s32.totalorder %s17, 1
    %p106 = por %p104, %p105
    %p108 = scmp.ne.s32.totalorder %s91, %s107
    %p109 = scmp.eq.s32.totalorder %s17, 0
    %p110 = por %p108, %p109
    %s111 = ssub.s32 %s18, %s30
    %p112 = scmp.eq.s32.totalorder %s111, 0
    %s114 = sadd.s32 %s113, 1
    %s115 = scalar_select %p112, %s113, %s114
    %p118 = pneg %p112
    %p119 = scmp.eq.s32.totalorder %s11, 1
    %p120 = por %p118, %p119
    %p121 = scmp.ne.s32.totalorder %s113, %s116
    %p122 = scmp.eq.s32.totalorder %s11, 0
    %p123 = por %p121, %p122
    %p124 = scmp.ne.s32.totalorder %s113, %s116
    %p125 = scmp.eq.s32.totalorder %s16, 1
    %p126 = por %p124, %p125
    %p127 = scmp.ne.s32.totalorder %s116, %s117
    %p128 = scmp.eq.s32.totalorder %s16, 0
    %p129 = por %p127, %p128
    %p130 = scmp.ne.s32.totalorder %s116, %s117
    %p131 = scmp.eq.s32.totalorder %s17, 1
    %p132 = por %p130, %p131
    %p134 = scmp.ne.s32.totalorder %s117, %s133
    %p135 = scmp.eq.s32.totalorder %s17, 0
    %p136 = por %p134, %p135
    %s137 = ssub.s32 %s18, %s30
    %p138 = scmp.eq.s32.totalorder %s137, 0
    %s140 = sadd.s32 %s139, 1
    %s141 = scalar_select %p138, %s139, %s140
    %p144 = pneg %p138
    %p145 = scmp.eq.s32.totalorder %s11, 1
    %p146 = por %p144, %p145
    %p147 = scmp.ne.s32.totalorder %s139, %s142
    %p148 = scmp.eq.s32.totalorder %s11, 0
    %p149 = por %p147, %p148
    %p150 = scmp.ne.s32.totalorder %s139, %s142
    %p151 = scmp.eq.s32.totalorder %s16, 1
    %p152 = por %p150, %p151
    %p153 = scmp.ne.s32.totalorder %s142, %s143
    %p154 = scmp.eq.s32.totalorder %s16, 0
    %p155 = por %p153, %p154
    %p156 = scmp.ne.s32.totalorder %s142, %s143
    %p157 = scmp.eq.s32.totalorder %s17, 1
    %p158 = por %p156, %p157
    %p160 = scmp.ne.s32.totalorder %s143, %s159
    %p161 = scmp.eq.s32.totalorder %s17, 0
    %p162 = por %p160, %p161
    %p163 = scmp.le.s32.totalorder 1, %s11
    %p164 = scmp.lt.s32.totalorder %s11, 3
    %p165 = pnand %p163, %p164
    %p166 = pneg %p165
    // Predicated region
    $region9: #{critic_forward.7} parent=5 // pred_check
      _
    $region10: #{critic_forward.7} parent=5 // pred_check_branch
      %168 = sbr.rel (%p165) target = $region12
    $region11: #{critic_forward.7} parent=5 // pred_region
      %s169 = ssub.s32 %s11, 1
      // Predicated region
      $region13: #{critic_forward.7} parent=11 // pred_check
        %p170 = pneg %p77
      $region14: #{critic_forward.7} parent=11 // pred_check_branch
        %172 = sbr.rel (%p170) target = $region16
      $region15: #{critic_forward.7} parent=11 // pred_region
        %s173 = smul.u32 64, %s21
        %p174 = scmp.lt.s32.totalorder %s173, 63
        %s175 = scalar_select %p174, %s173, 63
        %s176 = smul.addr %s175, 4
        %s177 = scalar_lea.vmem %s1, %s176
        %s178 = smul.u32 64, %s21
      $region16: #{critic_forward.7} parent=11 // pred_fallthru
        _
    $region12: #{critic_forward.7} parent=5 // pred_fallthru
      _
    %p179 = scmp.lt.s32.totalorder %s11, 2
    // Predicated region
    $region17: #{critic_forward.7} parent=5 // pred_check
      %p180 = pneg %p179
    $region18: #{critic_forward.7} parent=5 // pred_check_branch
      %182 = sbr.rel (%p180) target = $region20
    $region19: #{critic_forward.7} parent=5 // pred_region
      // Predicated region
      $region21: #{critic_forward.7} parent=19 // pred_check
        %p183 = pneg %p45
      $region22: #{critic_forward.7} parent=19 // pred_check_branch
        %185 = sbr.rel (%p183) target = $region24
      $region23: #{critic_forward.7} parent=19 // pred_region
        %s186 = smul.u32 2, %s18
        %s187 = smul.u32 4, %s19
        %p188 = scmp.lt.s32.totalorder %s186, 3
        %s189 = scalar_select %p188, %s186, 3
        %p190 = scmp.lt.s32.totalorder %s187, 3
        %s191 = scalar_select %p190, %s187, 3
        %s192 = smul.addr %s189, 4
        %s193 = sadd.s32 %s191, %s192
        %s194 = smul.addr %s193, 4
        %s195 = scalar_lea.vmem %s0, %s194
        %s196 = smul.u32 2, %s18
        %s197 = smul.u32 4, %s19
      $region24: #{critic_forward.7} parent=19 // pred_fallthru
        _
    $region20: #{critic_forward.7} parent=5 // pred_fallthru
      _
    %p198 = scmp.le.s32.totalorder 1, %s11
    %p199 = scmp.lt.s32.totalorder %s11, 3
    %p200 = pnand %p198, %p199
    %p201 = pneg %p200
    // Predicated region
    $region25: #{critic_forward.7} parent=5 // pred_check
      _
    $region26: #{critic_forward.7} parent=5 // pred_check_branch
      %203 = sbr.rel (%p200) target = $region28
    $region27: #{critic_forward.7} parent=5 // pred_region
      %s204 = ssub.s32 %s11, 1
      %s205 = smul.u32 2, %s20
      %s206 = smul.u32 4, %s21
      %p207 = scmp.lt.s32.totalorder %s205, 3
      %s208 = scalar_select %p207, %s205, 3
      %p209 = scmp.lt.s32.totalorder %s206, 3
      %s210 = scalar_select %p209, %s206, 3
      %s211 = smul.addr %s208, 4
      %s212 = sadd.s32 %s210, %s211
      %s213 = smul.addr %s212, 4
      %s214 = scalar_lea.vmem %s0, %s213
      %p215 = pneg %p51
      %p216 = pneg %p48
      %s217 = smul.u32 64, %s21
      %p218 = scmp.lt.s32.totalorder %s217, 63
      %s219 = scalar_select %p218, %s217, 63
      %s220 = smul.addr %s219, 4
      %s221 = scalar_lea.vmem %s1, %s220
      %p222 = pneg %p77
      %p223 = pneg %p74
      %p224 = pneg %p103
      %p225 = pneg %p100
      %s226 = smul.u32 2, %s20
      %p227 = scmp.lt.s32.totalorder %s226, 3
      %s228 = scalar_select %p227, %s226, 3
      %s229 = smul.addr %s228, 4
      %s230 = scalar_lea.vmem %s2, %s229
      %p231 = pneg %p129
      %p232 = pneg %p126
      %p233 = scmp.lt.s32.totalorder %s20, 1
      %s234 = scalar_select %p233, %s20, 1
      %s235 = scalar_lea.vmem %s3, %s234
      %p236 = pneg %p155
      %p237 = pneg %p152
      %p238 = scmp.lt.s32.totalorder %s20, 1
      %s239 = scalar_select %p238, %s20, 1
      %s240 = scalar_lea.vmem %s4, %s239
      %s241 = smul.u32 2, %s20
      %s242 = smul.u32 4, %s21
      %p243 = scmp.lt.s32.totalorder %s241, 3
      %s244 = scalar_select %p243, %s241, 3
      %p245 = scmp.lt.s32.totalorder %s242, 3
      %s246 = scalar_select %p245, %s242, 3
      %s247 = smul.addr %s244, 4
      %s248 = sadd.s32 %s246, %s247
      %s249 = smul.addr %s248, 4
      %s250 = scalar_lea.vmem %s0, %s249
      %s251 = smul.u32 2, %s20
      %s252 = smul.u32 4, %s21
      %s253 = smul.u32 64, %s21
      %p254 = scmp.lt.s32.totalorder %s253, 63
      %s255 = scalar_select %p254, %s253, 63
      %s256 = smul.addr %s255, 4
      %s257 = scalar_lea.vmem %s1, %s256
      %s258 = smul.u32 64, %s21
      %s259 = smul.u32 2, %s20
      %p260 = scmp.lt.s32.totalorder %s259, 3
      %s261 = scalar_select %p260, %s259, 3
      %s262 = smul.addr %s261, 4
      %s263 = scalar_lea.vmem %s2, %s262
      %s264 = smul.u32 2, %s20
      %p265 = scmp.lt.s32.totalorder %s20, 1
      %s266 = scalar_select %p265, %s20, 1
      %s267 = scalar_lea.vmem %s3, %s266
      %p268 = scmp.lt.s32.totalorder %s20, 1
      %s269 = scalar_select %p268, %s20, 1
      %s270 = scalar_lea.vmem %s4, %s269
      %p272 = scmp.eq.s32.totalorder %s21, 0
      // Predicated region
      $region29: #{critic_forward.7} parent=27 // pred_check
        %p273 = pneg %p272
      $region30: #{critic_forward.7} parent=27 // pred_check_branch
        %275 = sbr.rel (%p273) target = $region32
      $region31: #{critic_forward.7} parent=27 // pred_region
        %276 = vst [vmem:[#allocation2] sm:$0xff] 0.0
        %277 = vst [vmem:[#allocation2 + $0x8] sm:$0xff] 0.0
      $region32: #{critic_forward.7} parent=27 // pred_fallthru
        _
      %v278 = vld [vmem:[#allocation2] sm:$0xff]
      %v279 = vld [vmem:[#allocation2 + $0x8] sm:$0xff]
      %v280 = vld [vmem:[%s250] sm:$0xff]
      %v281 = vld [vmem:[%s250 + $0x8] sm:$0xff]
      %v282 = vld [vmem:[%s250 + $0x10] sm:$0xff]
      %v283 = vld [vmem:[%s250 + $0x18] sm:$0xff]
      %v284 = vld [vmem:[%s257] sm:$0xf]
      %v285 = vld [vmem:[%s257 + $0x4] sm:$0xf]
      %v286 = vld [vmem:[%s257 + $0x8] sm:$0xf]
      %v287 = vld [vmem:[%s257 + $0xc] sm:$0xf]
      %v288 = vld [vmem:[%s257 + $0x10] sm:$0xf]
      %v289 = vld [vmem:[%s257 + $0x14] sm:$0xf]
      %v290 = vld [vmem:[%s257 + $0x18] sm:$0xf]
      %v291 = vld [vmem:[%s257 + $0x1c] sm:$0xf]
      %v292 = vld [vmem:[%s257 + $0x20] sm:$0xf]
      %v293 = vld [vmem:[%s257 + $0x24] sm:$0xf]
      %v294 = vld [vmem:[%s257 + $0x28] sm:$0xf]
      %v295 = vld [vmem:[%s257 + $0x2c] sm:$0xf]
      %v296 = vld [vmem:[%s257 + $0x30] sm:$0xf]
      %v297 = vld [vmem:[%s257 + $0x34] sm:$0xf]
      %v298 = vld [vmem:[%s257 + $0x38] sm:$0xf]
      %v299 = vld [vmem:[%s257 + $0x3c] sm:$0xf]
      %v300 = vld [vmem:[%s257 + $0x40] sm:$0xf]
      %v301 = vld [vmem:[%s257 + $0x44] sm:$0xf]
      %v302 = vld [vmem:[%s257 + $0x48] sm:$0xf]
      %v303 = vld [vmem:[%s257 + $0x4c] sm:$0xf]
      %v304 = vld [vmem:[%s257 + $0x50] sm:$0xf]
      %v305 = vld [vmem:[%s257 + $0x54] sm:$0xf]
      %v306 = vld [vmem:[%s257 + $0x58] sm:$0xf]
      %v307 = vld [vmem:[%s257 + $0x5c] sm:$0xf]
      %v308 = vld [vmem:[%s257 + $0x60] sm:$0xf]
      %v309 = vld [vmem:[%s257 + $0x64] sm:$0xf]
      %v310 = vld [vmem:[%s257 + $0x68] sm:$0xf]
      %v311 = vld [vmem:[%s257 + $0x6c] sm:$0xf]
      %v312 = vld [vmem:[%s257 + $0x70] sm:$0xf]
      %v313 = vld [vmem:[%s257 + $0x74] sm:$0xf]
      %v314 = vld [vmem:[%s257 + $0x78] sm:$0xf]
      %v315 = vld [vmem:[%s257 + $0x7c] sm:$0xf]
      %v316 = vld [vmem:[%s257 + $0x80] sm:$0xf]
      %v317 = vld [vmem:[%s257 + $0x84] sm:$0xf]
      %v318 = vld [vmem:[%s257 + $0x88] sm:$0xf]
      %v319 = vld [vmem:[%s257 + $0x8c] sm:$0xf]
      %v320 = vld [vmem:[%s257 + $0x90] sm:$0xf]
      %v321 = vld [vmem:[%s257 + $0x94] sm:$0xf]
      %v322 = vld [vmem:[%s257 + $0x98] sm:$0xf]
      %v323 = vld [vmem:[%s257 + $0x9c] sm:$0xf]
      %v324 = vld [vmem:[%s257 + $0xa0] sm:$0xf]
      %v325 = vld [vmem:[%s257 + $0xa4] sm:$0xf]
      %v326 = vld [vmem:[%s257 + $0xa8] sm:$0xf]
      %v327 = vld [vmem:[%s257 + $0xac] sm:$0xf]
      %v328 = vld [vmem:[%s257 + $0xb0] sm:$0xf]
      %v329 = vld [vmem:[%s257 + $0xb4] sm:$0xf]
      %v330 = vld [vmem:[%s257 + $0xb8] sm:$0xf]
      %v331 = vld [vmem:[%s257 + $0xbc] sm:$0xf]
      %v332 = vld [vmem:[%s257 + $0xc0] sm:$0xf]
      %v333 = vld [vmem:[%s257 + $0xc4] sm:$0xf]
      %v334 = vld [vmem:[%s257 + $0xc8] sm:$0xf]
      %v335 = vld [vmem:[%s257 + $0xcc] sm:$0xf]
      %v336 = vld [vmem:[%s257 + $0xd0] sm:$0xf]
      %v337 = vld [vmem:[%s257 + $0xd4] sm:$0xf]
      %v338 = vld [vmem:[%s257 + $0xd8] sm:$0xf]
      %v339 = vld [vmem:[%s257 + $0xdc] sm:$0xf]
      %v340 = vld [vmem:[%s257 + $0xe0] sm:$0xf]
      %v341 = vld [vmem:[%s257 + $0xe4] sm:$0xf]
      %v342 = vld [vmem:[%s257 + $0xe8] sm:$0xf]
      %v343 = vld [vmem:[%s257 + $0xec] sm:$0xf]
      %v344 = vld [vmem:[%s257 + $0xf0] sm:$0xf]
      %v345 = vld [vmem:[%s257 + $0xf4] sm:$0xf]
      %v346 = vld [vmem:[%s257 + $0xf8] sm:$0xf]
      %v347 = vld [vmem:[%s257 + $0xfc] sm:$0xf]
      %v352 = vunpack.c.l.b16 %v280
      %v353 = vunpack.c.h.b16 %v280
      %v354 = vunpack.c.l.b16 %v281
      %v355 = vunpack.c.h.b16 %v281
      %v356 = vunpack.c.l.b16 %v282
      %v357 = vunpack.c.h.b16 %v282
      %v358 = vunpack.c.l.b16 %v283
      %v359 = vunpack.c.h.b16 %v283
      %v360 = vpack.c.b16 %v356, %v352
      %v361 = vpack.c.b16 %v357, %v353
      %v362 = vpack.c.b16 %v358, %v354
      %v363 = vpack.c.b16 %v359, %v355
      %v432 = vunpack.c.l.b16 %v284
      %v433 = vunpack.c.l.b16 %v285
      %v434 = vunpack.c.l.b16 %v286
      %v435 = vunpack.c.l.b16 %v287
      %v436 = vunpack.c.l.b16 %v288
      %v437 = vunpack.c.l.b16 %v289
      %v438 = vunpack.c.l.b16 %v290
      %v439 = vunpack.c.l.b16 %v291
      %v440 = vunpack.c.l.b16 %v292
      %v441 = vunpack.c.l.b16 %v293
      %v442 = vunpack.c.l.b16 %v294
      %v443 = vunpack.c.l.b16 %v295
      %v444 = vunpack.c.l.b16 %v296
      %v445 = vunpack.c.l.b16 %v297
      %v446 = vunpack.c.l.b16 %v298
      %v447 = vunpack.c.l.b16 %v299
      %v448 = vunpack.c.l.b16 %v300
      %v449 = vunpack.c.l.b16 %v301
      %v450 = vunpack.c.l.b16 %v302
      %v451 = vunpack.c.l.b16 %v303
      %v452 = vunpack.c.l.b16 %v304
      %v453 = vunpack.c.l.b16 %v305
      %v454 = vunpack.c.l.b16 %v306
      %v455 = vunpack.c.l.b16 %v307
      %v456 = vunpack.c.l.b16 %v308
      %v457 = vunpack.c.l.b16 %v309
      %v458 = vunpack.c.l.b16 %v310
      %v459 = vunpack.c.l.b16 %v311
      %v460 = vunpack.c.l.b16 %v312
      %v461 = vunpack.c.l.b16 %v313
      %v462 = vunpack.c.l.b16 %v314
      %v463 = vunpack.c.l.b16 %v315
      %v464 = vunpack.c.l.b16 %v316
      %v465 = vunpack.c.l.b16 %v317
      %v466 = vunpack.c.l.b16 %v318
      %v467 = vunpack.c.l.b16 %v319
      %v468 = vunpack.c.l.b16 %v320
      %v469 = vunpack.c.l.b16 %v321
      %v470 = vunpack.c.l.b16 %v322
      %v471 = vunpack.c.l.b16 %v323
      %v472 = vunpack.c.l.b16 %v324
      %v473 = vunpack.c.l.b16 %v325
      %v474 = vunpack.c.l.b16 %v326
      %v475 = vunpack.c.l.b16 %v327
      %v476 = vunpack.c.l.b16 %v328
      %v477 = vunpack.c.l.b16 %v329
      %v478 = vunpack.c.l.b16 %v330
      %v479 = vunpack.c.l.b16 %v331
      %v480 = vunpack.c.l.b16 %v332
      %v481 = vunpack.c.l.b16 %v333
      %v482 = vunpack.c.l.b16 %v334
      %v483 = vunpack.c.l.b16 %v335
      %v484 = vunpack.c.l.b16 %v336
      %v485 = vunpack.c.l.b16 %v337
      %v486 = vunpack.c.l.b16 %v338
      %v487 = vunpack.c.l.b16 %v339
      %v488 = vunpack.c.l.b16 %v340
      %v489 = vunpack.c.l.b16 %v341
      %v490 = vunpack.c.l.b16 %v342
      %v491 = vunpack.c.l.b16 %v343
      %v492 = vunpack.c.l.b16 %v344
      %v493 = vunpack.c.l.b16 %v345
      %v494 = vunpack.c.l.b16 %v346
      %v495 = vunpack.c.l.b16 %v347
      %v496 = vpack.c.b16 %v433, %v432
      %v497 = vpack.c.b16 %v435, %v434
      %v498 = vpack.c.b16 %v437, %v436
      %v499 = vpack.c.b16 %v439, %v438
      %v500 = vpack.c.b16 %v441, %v440
      %v501 = vpack.c.b16 %v443, %v442
      %v502 = vpack.c.b16 %v445, %v444
      %v503 = vpack.c.b16 %v447, %v446
      %v504 = vpack.c.b16 %v449, %v448
      %v505 = vpack.c.b16 %v451, %v450
      %v506 = vpack.c.b16 %v453, %v452
      %v507 = vpack.c.b16 %v455, %v454
      %v508 = vpack.c.b16 %v457, %v456
      %v509 = vpack.c.b16 %v459, %v458
      %v510 = vpack.c.b16 %v461, %v460
      %v511 = vpack.c.b16 %v463, %v462
      %v512 = vpack.c.b16 %v465, %v464
      %v513 = vpack.c.b16 %v467, %v466
      %v514 = vpack.c.b16 %v469, %v468
      %v515 = vpack.c.b16 %v471, %v470
      %v516 = vpack.c.b16 %v473, %v472
      %v517 = vpack.c.b16 %v475, %v474
      %v518 = vpack.c.b16 %v477, %v476
      %v519 = vpack.c.b16 %v479, %v478
      %v520 = vpack.c.b16 %v481, %v480
      %v521 = vpack.c.b16 %v483, %v482
      %v522 = vpack.c.b16 %v485, %v484
      %v523 = vpack.c.b16 %v487, %v486
      %v524 = vpack.c.b16 %v489, %v488
      %v525 = vpack.c.b16 %v491, %v490
      %v526 = vpack.c.b16 %v493, %v492
      %v527 = vpack.c.b16 %v495, %v494
      %560 = vmatprep.subr.bf16.mxu0 0
      %561 = vmatpush1.bf16.msra.mxu0 %v496
      %562 = vmatprep.subr.bf16.mxu0 0
      %563 = vmatpush1.bf16.msra.mxu0 %v497
      %564 = vmatprep.subr.bf16.mxu0 0
      %565 = vmatpush1.bf16.msra.mxu0 %v498
      %566 = vmatprep.subr.bf16.mxu0 0
      %567 = vmatpush1.bf16.msra.mxu0 %v499
      %568 = vmatprep.subr.bf16.mxu0 0
      %569 = vmatpush1.bf16.msra.mxu0 %v500
      %570 = vmatprep.subr.bf16.mxu0 0
      %571 = vmatpush1.bf16.msra.mxu0 %v501
      %572 = vmatprep.subr.bf16.mxu0 0
      %573 = vmatpush1.bf16.msra.mxu0 %v502
      %574 = vmatprep.subr.bf16.mxu0 0
      %575 = vmatpush1.bf16.msra.mxu0 %v503
      %576 = vmatprep.subr.bf16.mxu0 0
      %577 = vmatpush1.bf16.msra.mxu0 %v504
      %578 = vmatprep.subr.bf16.mxu0 0
      %579 = vmatpush1.bf16.msra.mxu0 %v505
      %580 = vmatprep.subr.bf16.mxu0 0
      %581 = vmatpush1.bf16.msra.mxu0 %v506
      %582 = vmatprep.subr.bf16.mxu0 0
      %583 = vmatpush1.bf16.msra.mxu0 %v507
      %584 = vmatprep.subr.bf16.mxu0 0
      %585 = vmatpush1.bf16.msra.mxu0 %v508
      %586 = vmatprep.subr.bf16.mxu0 0
      %587 = vmatpush1.bf16.msra.mxu0 %v509
      %588 = vmatprep.subr.bf16.mxu0 0
      %589 = vmatpush1.bf16.msra.mxu0 %v510
      %590 = vmatprep.subr.bf16.mxu0 0
      %591 = vmatpush1.bf16.msra.mxu0 %v511
      %592 = vmatprep.mubr.bf16.mxu0 %v361
      %593 = vmatmul.mubr.bf16.gmra.mrb[0].mxu0 %v360
      %v594 = vpop.f32.mrb[0].mxu0
      %v595 = vadd.f32 0.0, %v594
      %v596 = vpop.f32.mrb[0].mxu0
      %v597 = vpop.f32.mrb[0].mxu0
      %v598 = vadd.f32 0.0, %v597
      %v599 = vpop.f32.mrb[0].mxu0
      %600 = vdwg.mxu0
      %601 = vmatprep.subr.bf16.mxu0 0
      %602 = vmatpush1.bf16.msra.mxu0 %v512
      %603 = vmatprep.subr.bf16.mxu0 0
      %604 = vmatpush1.bf16.msra.mxu0 %v513
      %605 = vmatprep.subr.bf16.mxu0 0
      %606 = vmatpush1.bf16.msra.mxu0 %v514
      %607 = vmatprep.subr.bf16.mxu0 0
      %608 = vmatpush1.bf16.msra.mxu0 %v515
      %609 = vmatprep.subr.bf16.mxu0 0
      %610 = vmatpush1.bf16.msra.mxu0 %v516
      %611 = vmatprep.subr.bf16.mxu0 0
      %612 = vmatpush1.bf16.msra.mxu0 %v517
      %613 = vmatprep.subr.bf16.mxu0 0
      %614 = vmatpush1.bf16.msra.mxu0 %v518
      %615 = vmatprep.subr.bf16.mxu0 0
      %616 = vmatpush1.bf16.msra.mxu0 %v519
      %617 = vmatprep.subr.bf16.mxu0 0
      %618 = vmatpush1.bf16.msra.mxu0 %v520
      %619 = vmatprep.subr.bf16.mxu0 0
      %620 = vmatpush1.bf16.msra.mxu0 %v521
      %621 = vmatprep.subr.bf16.mxu0 0
      %622 = vmatpush1.bf16.msra.mxu0 %v522
      %623 = vmatprep.subr.bf16.mxu0 0
      %624 = vmatpush1.bf16.msra.mxu0 %v523
      %625 = vmatprep.subr.bf16.mxu0 0
      %626 = vmatpush1.bf16.msra.mxu0 %v524
      %627 = vmatprep.subr.bf16.mxu0 0
      %628 = vmatpush1.bf16.msra.mxu0 %v525
      %629 = vmatprep.subr.bf16.mxu0 0
      %630 = vmatpush1.bf16.msra.mxu0 %v526
      %631 = vmatprep.subr.bf16.mxu0 0
      %632 = vmatpush1.bf16.msra.mxu0 %v527
      %633 = vmatprep.mubr.bf16.mxu0 %v363
      %634 = vmatmul.mubr.bf16.gmra.mrb[0].mxu0 %v362
      %v635 = vpop.f32.mrb[0].mxu0
      %v636 = vadd.f32 %v595, %v635
      %v637 = vpop.f32.mrb[0].mxu0
      %v638 = vpop.f32.mrb[0].mxu0
      %v639 = vadd.f32 %v598, %v638
      %v640 = vpop.f32.mrb[0].mxu0
      %641 = vdwg.mxu0
      %v642 = vadd.f32 %v278, %v636
      %v643 = vadd.f32 %v279, %v639
      %644 = vst [vmem:[#allocation2] sm:$0xff] %v642
      %645 = vst [vmem:[#allocation2 + $0x8] sm:$0xff] %v643
      // Predicated region
      $region33: #{critic_forward.7} parent=27 // pred_check
        %p646 = pneg %p272
      $region34: #{critic_forward.7} parent=27 // pred_check_branch
        %648 = sbr.rel (%p646) target = $region36
      $region35: #{critic_forward.7} parent=27 // pred_region
        %v649 = vld [vmem:[#allocation2] sm:$0xff]
        %v650 = vld [vmem:[#allocation2 + $0x8] sm:$0xff]
        %v651 = vadd.f32 %v649, %v650
        %v652 = vrot.slane %v651, 4
        %v653 = vadd.f32 %v651, %v652
        %v654 = vrot.slane %v653, 2
        %v655 = vadd.f32 %v653, %v654
        %v656 = vrot.slane %v655, 1
        %v657 = vadd.f32 %v655, %v656
        %658 = vst [vmem:[%s267] sm:$0x1] %v657
        %v659 = vmul.f32 %v649, %v649
        %v660 = vmul.f32 %v650, %v650
        %v661 = vadd.f32 %v659, %v660
        %v662 = vrot.slane %v661, 4
        %v663 = vadd.f32 %v661, %v662
        %v664 = vrot.slane %v663, 2
        %v665 = vadd.f32 %v663, %v664
        %v666 = vrot.slane %v665, 1
        %v667 = vadd.f32 %v665, %v666
        %668 = vst [vmem:[%s270] sm:$0x1] %v667
        %v669 = vpack.c.bf16 %v650, %v649
        %v671 = vunpack.c.l.b16 %v669
        %v672 = vunpack.c.h.b16 %v669
        %v673 = vpack.c.b16 %v671, %v671
        %v674 = vpack.c.b16 %v672, %v672
        %677 = vst [vmem:[%s263] sm:$0xf] %v673
        %678 = vst [vmem:[%s263 + $0x4] sm:$0xf] %v674
      $region36: #{critic_forward.7} parent=27 // pred_fallthru
        _
      %s679 = smul.u32 2, %s20
      %p680 = scmp.lt.s32.totalorder %s679, 3
      %s681 = scalar_select %p680, %s679, 3
      %s682 = smul.addr %s681, 4
      %s683 = scalar_lea.vmem %s2, %s682
      %p684 = scmp.lt.s32.totalorder %s20, 1
      %s685 = scalar_select %p684, %s20, 1
      %s686 = scalar_lea.vmem %s3, %s685
      %p687 = scmp.lt.s32.totalorder %s20, 1
      %s688 = scalar_select %p687, %s20, 1
      %s689 = scalar_lea.vmem %s4, %s688
      // Predicated region
      $region37: #{critic_forward.7} parent=27 // pred_check
        %p690 = pneg %p100
      $region38: #{critic_forward.7} parent=27 // pred_check_branch
        %692 = sbr.rel (%p690) target = $region40
      $region39: #{critic_forward.7} parent=27 // pred_region
        %s693 = smul.u32 2, %s20
      $region40: #{critic_forward.7} parent=27 // pred_fallthru
        _
      // Predicated region
      $region41: #{critic_forward.7} parent=27 // pred_check
        %p694 = pneg %p126
      $region42: #{critic_forward.7} parent=27 // pred_check_branch
        %696 = sbr.rel (%p694) target = $region44
      $region43: #{critic_forward.7} parent=27 // pred_region
        _
      $region44: #{critic_forward.7} parent=27 // pred_fallthru
        _
      // Predicated region
      $region45: #{critic_forward.7} parent=27 // pred_check
        %p697 = pneg %p152
      $region46: #{critic_forward.7} parent=27 // pred_check_branch
        %699 = sbr.rel (%p697) target = $region48
      $region47: #{critic_forward.7} parent=27 // pred_region
        _
      $region48: #{critic_forward.7} parent=27 // pred_fallthru
        _
    $region28: #{critic_forward.7} parent=5 // pred_fallthru
      _
    %p700 = scmp.le.s32.totalorder 2, %s11
    // Predicated region
    $region49: #{critic_forward.7} parent=5 // pred_check
      %p701 = pneg %p700
    $region50: #{critic_forward.7} parent=5 // pred_check_branch
      %703 = sbr.rel (%p701) target = $region52
    $region51: #{critic_forward.7} parent=5 // pred_region
      %s704 = ssub.s32 %s11, 2
      // Predicated region
      $region53: #{critic_forward.7} parent=51 // pred_check
        %p705 = pneg %p106
      $region54: #{critic_forward.7} parent=51 // pred_check_branch
        %707 = sbr.rel (%p705) target = $region56
      $region55: #{critic_forward.7} parent=51 // pred_region
        %s708 = smul.u32 2, %s22
        %p709 = scmp.lt.s32.totalorder %s708, 3
        %s710 = scalar_select %p709, %s708, 3
        %s711 = smul.addr %s710, 4
        %s712 = scalar_lea.vmem %s2, %s711
      $region56: #{critic_forward.7} parent=51 // pred_fallthru
        _
      // Predicated region
      $region57: #{critic_forward.7} parent=51 // pred_check
        %p713 = pneg %p132
      $region58: #{critic_forward.7} parent=51 // pred_check_branch
        %715 = sbr.rel (%p713) target = $region60
      $region59: #{critic_forward.7} parent=51 // pred_region
        %p716 = scmp.lt.s32.totalorder %s22, 1
        %s717 = scalar_select %p716, %s22, 1
        %s718 = scalar_lea.vmem %s3, %s717
      $region60: #{critic_forward.7} parent=51 // pred_fallthru
        _
      // Predicated region
      $region61: #{critic_forward.7} parent=51 // pred_check
        %p719 = pneg %p158
      $region62: #{critic_forward.7} parent=51 // pred_check_branch
        %721 = sbr.rel (%p719) target = $region64
      $region63: #{critic_forward.7} parent=51 // pred_region
        %p722 = scmp.lt.s32.totalorder %s22, 1
        %s723 = scalar_select %p722, %s22, 1
        %s724 = scalar_lea.vmem %s4, %s723
      $region64: #{critic_forward.7} parent=51 // pred_fallthru
        _
    $region52: #{critic_forward.7} parent=5 // pred_fallthru
      _
  $region6: #{critic_forward.7} parent=0 // loop_footer
    %s15 = sadd.s32 1, %s11
  $region7: #{critic_forward.7} parent=0 // loop_footer_branch
    %10 = sbr.rel target = $region3
  $region8: #{critic_forward.7} parent=0 // loop_exit
    _

// kernel: critic_forward.8
$region0: #{critic_forward.8}
  #allocation0 [shape = 'u32[]', space=smem, size = 0x4, offset = 0x4, fixed_abs, tag = 'smem constant byte address 0x4 - core index']
  #allocation1 [shape = 'u32[144,128]{1,0:T(1,128)}', space=vmem, size = 0x12000, scoped, tag = 'internal scratch']
  #allocation2 [shape = 'f32[8,128]{1,0:T(8,128)}', space=vmem, size = 0x1000, scoped, tag = 'scratch operand']
  %s0 = inlined_call_operand.vmem [shape: bf16[24,1024], index: 0, kind: input, shape index: {}]
  %s1 = inlined_call_operand.vmem [shape: bf16[1024,128], index: 1, kind: input, shape index: {}]
  %s2 = inlined_call_operand.vmem [shape: bf16[24,128], index: 2, kind: output, shape index: {0}]
  %s3 = inlined_call_operand.vmem [shape: f32[3,1,128], index: 3, kind: output, shape index: {1}]
  %s4 = inlined_call_operand.vmem [shape: f32[3,1,128], index: 4, kind: output, shape index: {2}]
  %5 = xla_tuple %s2, %s3, %s4
  %s6 = sld [smem:[#allocation0]]
  $region65: #{critic_forward.8} parent=0
    _
  %s8 = ssub.s32 1, %s6
  %s9 = scalar_select 0, %s8, %s6
  loop: start=0, step=1, limit=5
  $region2: #{critic_forward.8} parent=0 // loop_pre_header
    _
  $region3: #{critic_forward.8} parent=0 // loop_header
    %s11 = sphi 0, %s15
    %p12 = scmp.ge.s32.totalorder %s11, 5
    %s18 = sphi 0, %s30
    %s19 = sphi 0, %s26
    %s20 = sphi 0, %s18
    %s21 = sphi 0, %s19
    %s22 = sphi 0, %s20
    %s23 = sphi 0, %s21
    %s35 = sphi 0, %s37
    %s38 = sphi 0, %s35
    %s39 = sphi 0, %s38
    %s55 = sphi 0, %s39
    %s61 = sphi 0, %s63
    %s64 = sphi 0, %s61
    %s65 = sphi 0, %s64
    %s81 = sphi 0, %s65
    %s87 = sphi 0, %s89
    %s90 = sphi 0, %s87
    %s91 = sphi 0, %s90
    %s107 = sphi 0, %s91
    %s113 = sphi 0, %s115
    %s116 = sphi 0, %s113
    %s117 = sphi 0, %s116
    %s133 = sphi 0, %s117
    %s139 = sphi 0, %s141
    %s142 = sphi 0, %s139
    %s143 = sphi 0, %s142
    %s159 = sphi 0, %s143
  $region4: #{critic_forward.8} parent=0 // loop_header_branch
    %14 = sbr.rel (%p12) target = $region8
  $region5: #{critic_forward.8} parent=0 // loop_body
    %s16 = ssub.s32 %s11, 1
    %s17 = ssub.s32 %s11, 2
    %s24 = sadd.s32 1, %s19
    %p25 = scmp.ge.s32.totalorder %s24, 1
    %s26 = scalar_select %p25, 0, %s24
    %s27 = sadd.s32 1, %s18
    %s28 = scalar_select %p25, %s27, %s18
    %p29 = scmp.ge.s32.totalorder %s28, 3
    %s30 = scalar_select %p29, 0, %s28
    %s31 = ssub.s32 %s18, %s30
    %s32 = ssub.s32 %s19, %s26
    %s33 = sor.u32 %s31, %s32
    %p34 = scmp.eq.s32.totalorder %s33, 0
    %s36 = sadd.s32 %s35, 1
    %s37 = scalar_select %p34, %s35, %s36
    %p40 = pneg %p34
    %p41 = scmp.eq.s32.totalorder %s11, 2
    %p42 = por %p40, %p41
    %p43 = scmp.ne.s32.totalorder %s35, %s38
    %p44 = scmp.eq.s32.totalorder %s11, 0
    %p45 = por %p43, %p44
    %p46 = scmp.ne.s32.totalorder %s35, %s38
    %p47 = scmp.eq.s32.totalorder %s16, 2
    %p48 = por %p46, %p47
    %p49 = scmp.ne.s32.totalorder %s38, %s39
    %p50 = scmp.eq.s32.totalorder %s16, 0
    %p51 = por %p49, %p50
    %p52 = scmp.ne.s32.totalorder %s38, %s39
    %p53 = scmp.eq.s32.totalorder %s17, 2
    %p54 = por %p52, %p53
    %p56 = scmp.ne.s32.totalorder %s39, %s55
    %p57 = scmp.eq.s32.totalorder %s17, 0
    %p58 = por %p56, %p57
    %s59 = ssub.s32 %s19, %s26
    %p60 = scmp.eq.s32.totalorder %s59, 0
    %s62 = sadd.s32 %s61, 1
    %s63 = scalar_select %p60, %s61, %s62
    %p66 = pneg %p60
    %p67 = scmp.eq.s32.totalorder %s11, 2
    %p68 = por %p66, %p67
    %p69 = scmp.ne.s32.totalorder %s61, %s64
    %p70 = scmp.eq.s32.totalorder %s11, 0
    %p71 = por %p69, %p70
    %p72 = scmp.ne.s32.totalorder %s61, %s64
    %p73 = scmp.eq.s32.totalorder %s16, 2
    %p74 = por %p72, %p73
    %p75 = scmp.ne.s32.totalorder %s64, %s65
    %p76 = scmp.eq.s32.totalorder %s16, 0
    %p77 = por %p75, %p76
    %p78 = scmp.ne.s32.totalorder %s64, %s65
    %p79 = scmp.eq.s32.totalorder %s17, 2
    %p80 = por %p78, %p79
    %p82 = scmp.ne.s32.totalorder %s65, %s81
    %p83 = scmp.eq.s32.totalorder %s17, 0
    %p84 = por %p82, %p83
    %s85 = ssub.s32 %s18, %s30
    %p86 = scmp.eq.s32.totalorder %s85, 0
    %s88 = sadd.s32 %s87, 1
    %s89 = scalar_select %p86, %s87, %s88
    %p92 = pneg %p86
    %p93 = scmp.eq.s32.totalorder %s11, 2
    %p94 = por %p92, %p93
    %p95 = scmp.ne.s32.totalorder %s87, %s90
    %p96 = scmp.eq.s32.totalorder %s11, 0
    %p97 = por %p95, %p96
    %p98 = scmp.ne.s32.totalorder %s87, %s90
    %p99 = scmp.eq.s32.totalorder %s16, 2
    %p100 = por %p98, %p99
    %p101 = scmp.ne.s32.totalorder %s90, %s91
    %p102 = scmp.eq.s32.totalorder %s16, 0
    %p103 = por %p101, %p102
    %p104 = scmp.ne.s32.totalorder %s90, %s91
    %p105 = scmp.eq.s32.totalorder %s17, 2
    %p106 = por %p104, %p105
    %p108 = scmp.ne.s32.totalorder %s91, %s107
    %p109 = scmp.eq.s32.totalorder %s17, 0
    %p110 = por %p108, %p109
    %s111 = ssub.s32 %s18, %s30
    %p112 = scmp.eq.s32.totalorder %s111, 0
    %s114 = sadd.s32 %s113, 1
    %s115 = scalar_select %p112, %s113, %s114
    %p118 = pneg %p112
    %p119 = scmp.eq.s32.totalorder %s11, 2
    %p120 = por %p118, %p119
    %p121 = scmp.ne.s32.totalorder %s113, %s116
    %p122 = scmp.eq.s32.totalorder %s11, 0
    %p123 = por %p121, %p122
    %p124 = scmp.ne.s32.totalorder %s113, %s116
    %p125 = scmp.eq.s32.totalorder %s16, 2
    %p126 = por %p124, %p125
    %p127 = scmp.ne.s32.totalorder %s116, %s117
    %p128 = scmp.eq.s32.totalorder %s16, 0
    %p129 = por %p127, %p128
    %p130 = scmp.ne.s32.totalorder %s116, %s117
    %p131 = scmp.eq.s32.totalorder %s17, 2
    %p132 = por %p130, %p131
    %p134 = scmp.ne.s32.totalorder %s117, %s133
    %p135 = scmp.eq.s32.totalorder %s17, 0
    %p136 = por %p134, %p135
    %s137 = ssub.s32 %s18, %s30
    %p138 = scmp.eq.s32.totalorder %s137, 0
    %s140 = sadd.s32 %s139, 1
    %s141 = scalar_select %p138, %s139, %s140
    %p144 = pneg %p138
    %p145 = scmp.eq.s32.totalorder %s11, 2
    %p146 = por %p144, %p145
    %p147 = scmp.ne.s32.totalorder %s139, %s142
    %p148 = scmp.eq.s32.totalorder %s11, 0
    %p149 = por %p147, %p148
    %p150 = scmp.ne.s32.totalorder %s139, %s142
    %p151 = scmp.eq.s32.totalorder %s16, 2
    %p152 = por %p150, %p151
    %p153 = scmp.ne.s32.totalorder %s142, %s143
    %p154 = scmp.eq.s32.totalorder %s16, 0
    %p155 = por %p153, %p154
    %p156 = scmp.ne.s32.totalorder %s142, %s143
    %p157 = scmp.eq.s32.totalorder %s17, 2
    %p158 = por %p156, %p157
    %p160 = scmp.ne.s32.totalorder %s143, %s159
    %p161 = scmp.eq.s32.totalorder %s17, 0
    %p162 = por %p160, %p161
    %p163 = scmp.le.s32.totalorder 1, %s11
    %p164 = scmp.lt.s32.totalorder %s11, 4
    %p165 = pnand %p163, %p164
    %p166 = pneg %p165
    // Predicated region
    $region9: #{critic_forward.8} parent=5 // pred_check
      _
    $region10: #{critic_forward.8} parent=5 // pred_check_branch
      %168 = sbr.rel (%p165) target = $region12
    $region11: #{critic_forward.8} parent=5 // pred_region
      %s169 = ssub.s32 %s11, 1
      // Predicated region
      $region13: #{critic_forward.8} parent=11 // pred_check
        %p170 = pneg %p77
      $region14: #{critic_forward.8} parent=11 // pred_check_branch
        %172 = sbr.rel (%p170) target = $region16
      $region15: #{critic_forward.8} parent=11 // pred_region
        %s173 = smul.u32 128, %s21
        %p174 = scmp.lt.s32.totalorder %s173, 127
        %s175 = scalar_select %p174, %s173, 127
        %s176 = smul.addr %s175, 4
        %s177 = scalar_lea.vmem %s1, %s176
        %s178 = smul.u32 128, %s21
      $region16: #{critic_forward.8} parent=11 // pred_fallthru
        _
    $region12: #{critic_forward.8} parent=5 // pred_fallthru
      _
    %p179 = scmp.lt.s32.totalorder %s11, 3
    // Predicated region
    $region17: #{critic_forward.8} parent=5 // pred_check
      %p180 = pneg %p179
    $region18: #{critic_forward.8} parent=5 // pred_check_branch
      %182 = sbr.rel (%p180) target = $region20
    $region19: #{critic_forward.8} parent=5 // pred_region
      // Predicated region
      $region21: #{critic_forward.8} parent=19 // pred_check
        %p183 = pneg %p45
      $region22: #{critic_forward.8} parent=19 // pred_check_branch
        %185 = sbr.rel (%p183) target = $region24
      $region23: #{critic_forward.8} parent=19 // pred_region
        %s186 = smul.u32 8, %s19
        %p187 = scmp.lt.s32.totalorder %s18, 2
        %s188 = scalar_select %p187, %s18, 2
        %p189 = scmp.lt.s32.totalorder %s186, 7
        %s190 = scalar_select %p189, %s186, 7
        %s191 = smul.addr %s188, 8
        %s192 = sadd.s32 %s190, %s191
        %s193 = smul.addr %s192, 4
        %s194 = scalar_lea.vmem %s0, %s193
        %s195 = smul.u32 8, %s19
      $region24: #{critic_forward.8} parent=19 // pred_fallthru
        _
    $region20: #{critic_forward.8} parent=5 // pred_fallthru
      _
    %p196 = scmp.le.s32.totalorder 1, %s11
    %p197 = scmp.lt.s32.totalorder %s11, 4
    %p198 = pnand %p196, %p197
    %p199 = pneg %p198
    // Predicated region
    $region25: #{critic_forward.8} parent=5 // pred_check
      _
    $region26: #{critic_forward.8} parent=5 // pred_check_branch
      %201 = sbr.rel (%p198) target = $region28
    $region27: #{critic_forward.8} parent=5 // pred_region
      %s202 = ssub.s32 %s11, 1
      %s203 = smul.u32 8, %s21
      %p204 = scmp.lt.s32.totalorder %s20, 2
      %s205 = scalar_select %p204, %s20, 2
      %p206 = scmp.lt.s32.totalorder %s203, 7
      %s207 = scalar_select %p206, %s203, 7
      %s208 = smul.addr %s205, 8
      %s209 = sadd.s32 %s207, %s208
      %s210 = smul.addr %s209, 4
      %s211 = scalar_lea.vmem %s0, %s210
      %p212 = pneg %p51
      %p213 = pneg %p48
      %s214 = smul.u32 128, %s21
      %p215 = scmp.lt.s32.totalorder %s214, 127
      %s216 = scalar_select %p215, %s214, 127
      %s217 = smul.addr %s216, 4
      %s218 = scalar_lea.vmem %s1, %s217
      %p219 = pneg %p77
      %p220 = pneg %p74
      %p221 = pneg %p103
      %p222 = pneg %p100
      %p223 = scmp.lt.s32.totalorder %s20, 2
      %s224 = scalar_select %p223, %s20, 2
      %s225 = smul.addr %s224, 4
      %s226 = scalar_lea.vmem %s2, %s225
      %p227 = pneg %p129
      %p228 = pneg %p126
      %p229 = scmp.lt.s32.totalorder %s20, 2
      %s230 = scalar_select %p229, %s20, 2
      %s231 = scalar_lea.vmem %s3, %s230
      %p232 = pneg %p155
      %p233 = pneg %p152
      %p234 = scmp.lt.s32.totalorder %s20, 2
      %s235 = scalar_select %p234, %s20, 2
      %s236 = scalar_lea.vmem %s4, %s235
      %s237 = smul.u32 8, %s21
      %p238 = scmp.lt.s32.totalorder %s20, 2
      %s239 = scalar_select %p238, %s20, 2
      %p240 = scmp.lt.s32.totalorder %s237, 7
      %s241 = scalar_select %p240, %s237, 7
      %s242 = smul.addr %s239, 8
      %s243 = sadd.s32 %s241, %s242
      %s244 = smul.addr %s243, 4
      %s245 = scalar_lea.vmem %s0, %s244
      %s246 = smul.u32 8, %s21
      %s247 = smul.u32 128, %s21
      %p248 = scmp.lt.s32.totalorder %s247, 127
      %s249 = scalar_select %p248, %s247, 127
      %s250 = smul.addr %s249, 4
      %s251 = scalar_lea.vmem %s1, %s250
      %s252 = smul.u32 128, %s21
      %p253 = scmp.lt.s32.totalorder %s20, 2
      %s254 = scalar_select %p253, %s20, 2
      %s255 = smul.addr %s254, 4
      %s256 = scalar_lea.vmem %s2, %s255
      %p257 = scmp.lt.s32.totalorder %s20, 2
      %s258 = scalar_select %p257, %s20, 2
      %s259 = scalar_lea.vmem %s3, %s258
      %p260 = scmp.lt.s32.totalorder %s20, 2
      %s261 = scalar_select %p260, %s20, 2
      %s262 = scalar_lea.vmem %s4, %s261
      %p264 = scmp.eq.s32.totalorder %s21, 0
      // Predicated region
      $region29: #{critic_forward.8} parent=27 // pred_check
        %p265 = pneg %p264
      $region30: #{critic_forward.8} parent=27 // pred_check_branch
        %267 = sbr.rel (%p265) target = $region32
      $region31: #{critic_forward.8} parent=27 // pred_region
        %268 = vst [vmem:[#allocation2] sm:$0xff] 0.0
      $region32: #{critic_forward.8} parent=27 // pred_fallthru
        _
      %v269 = vld [vmem:[#allocation2] sm:$0xff]
      %v270 = vld [vmem:[%s245] sm:$0xff]
      %v271 = vld [vmem:[%s245 + $0x8] sm:$0xff]
      %v272 = vld [vmem:[%s245 + $0x10] sm:$0xff]
      %v273 = vld [vmem:[%s245 + $0x18] sm:$0xff]
      %v274 = vld [vmem:[%s251] sm:$0xf]
      %v275 = vld [vmem:[%s251 + $0x4] sm:$0xf]
      %v276 = vld [vmem:[%s251 + $0x8] sm:$0xf]
      %v277 = vld [vmem:[%s251 + $0xc] sm:$0xf]
      %v278 = vld [vmem:[%s251 + $0x10] sm:$0xf]
      %v279 = vld [vmem:[%s251 + $0x14] sm:$0xf]
      %v280 = vld [vmem:[%s251 + $0x18] sm:$0xf]
      %v281 = vld [vmem:[%s251 + $0x1c] sm:$0xf]
      %v282 = vld [vmem:[%s251 + $0x20] sm:$0xf]
      %v283 = vld [vmem:[%s251 + $0x24] sm:$0xf]
      %v284 = vld [vmem:[%s251 + $0x28] sm:$0xf]
      %v285 = vld [vmem:[%s251 + $0x2c] sm:$0xf]
      %v286 = vld [vmem:[%s251 + $0x30] sm:$0xf]
      %v287 = vld [vmem:[%s251 + $0x34] sm:$0xf]
      %v288 = vld [vmem:[%s251 + $0x38] sm:$0xf]
      %v289 = vld [vmem:[%s251 + $0x3c] sm:$0xf]
      %v290 = vld [vmem:[%s251 + $0x40] sm:$0xf]
      %v291 = vld [vmem:[%s251 + $0x44] sm:$0xf]
      %v292 = vld [vmem:[%s251 + $0x48] sm:$0xf]
      %v293 = vld [vmem:[%s251 + $0x4c] sm:$0xf]
      %v294 = vld [vmem:[%s251 + $0x50] sm:$0xf]
      %v295 = vld [vmem:[%s251 + $0x54] sm:$0xf]
      %v296 = vld [vmem:[%s251 + $0x58] sm:$0xf]
      %v297 = vld [vmem:[%s251 + $0x5c] sm:$0xf]
      %v298 = vld [vmem:[%s251 + $0x60] sm:$0xf]
      %v299 = vld [vmem:[%s251 + $0x64] sm:$0xf]
      %v300 = vld [vmem:[%s251 + $0x68] sm:$0xf]
      %v301 = vld [vmem:[%s251 + $0x6c] sm:$0xf]
      %v302 = vld [vmem:[%s251 + $0x70] sm:$0xf]
      %v303 = vld [vmem:[%s251 + $0x74] sm:$0xf]
      %v304 = vld [vmem:[%s251 + $0x78] sm:$0xf]
      %v305 = vld [vmem:[%s251 + $0x7c] sm:$0xf]
      %v306 = vld [vmem:[%s251 + $0x80] sm:$0xf]
      %v307 = vld [vmem:[%s251 + $0x84] sm:$0xf]
      %v308 = vld [vmem:[%s251 + $0x88] sm:$0xf]
      %v309 = vld [vmem:[%s251 + $0x8c] sm:$0xf]
      %v310 = vld [vmem:[%s251 + $0x90] sm:$0xf]
      %v311 = vld [vmem:[%s251 + $0x94] sm:$0xf]
      %v312 = vld [vmem:[%s251 + $0x98] sm:$0xf]
      %v313 = vld [vmem:[%s251 + $0x9c] sm:$0xf]
      %v314 = vld [vmem:[%s251 + $0xa0] sm:$0xf]
      %v315 = vld [vmem:[%s251 + $0xa4] sm:$0xf]
      %v316 = vld [vmem:[%s251 + $0xa8] sm:$0xf]
      %v317 = vld [vmem:[%s251 + $0xac] sm:$0xf]
      %v318 = vld [vmem:[%s251 + $0xb0] sm:$0xf]
      %v319 = vld [vmem:[%s251 + $0xb4] sm:$0xf]
      %v320 = vld [vmem:[%s251 + $0xb8] sm:$0xf]
      %v321 = vld [vmem:[%s251 + $0xbc] sm:$0xf]
      %v322 = vld [vmem:[%s251 + $0xc0] sm:$0xf]
      %v323 = vld [vmem:[%s251 + $0xc4] sm:$0xf]
      %v324 = vld [vmem:[%s251 + $0xc8] sm:$0xf]
      %v325 = vld [vmem:[%s251 + $0xcc] sm:$0xf]
      %v326 = vld [vmem:[%s251 + $0xd0] sm:$0xf]
      %v327 = vld [vmem:[%s251 + $0xd4] sm:$0xf]
      %v328 = vld [vmem:[%s251 + $0xd8] sm:$0xf]
      %v329 = vld [vmem:[%s251 + $0xdc] sm:$0xf]
      %v330 = vld [vmem:[%s251 + $0xe0] sm:$0xf]
      %v331 = vld [vmem:[%s251 + $0xe4] sm:$0xf]
      %v332 = vld [vmem:[%s251 + $0xe8] sm:$0xf]
      %v333 = vld [vmem:[%s251 + $0xec] sm:$0xf]
      %v334 = vld [vmem:[%s251 + $0xf0] sm:$0xf]
      %v335 = vld [vmem:[%s251 + $0xf4] sm:$0xf]
      %v336 = vld [vmem:[%s251 + $0xf8] sm:$0xf]
      %v337 = vld [vmem:[%s251 + $0xfc] sm:$0xf]
      %v338 = vld [vmem:[%s251 + $0x100] sm:$0xf]
      %v339 = vld [vmem:[%s251 + $0x104] sm:$0xf]
      %v340 = vld [vmem:[%s251 + $0x108] sm:$0xf]
      %v341 = vld [vmem:[%s251 + $0x10c] sm:$0xf]
      %v342 = vld [vmem:[%s251 + $0x110] sm:$0xf]
      %v343 = vld [vmem:[%s251 + $0x114] sm:$0xf]
      %v344 = vld [vmem:[%s251 + $0x118] sm:$0xf]
      %v345 = vld [vmem:[%s251 + $0x11c] sm:$0xf]
      %v346 = vld [vmem:[%s251 + $0x120] sm:$0xf]
      %v347 = vld [vmem:[%s251 + $0x124] sm:$0xf]
      %v348 = vld [vmem:[%s251 + $0x128] sm:$0xf]
      %v349 = vld [vmem:[%s251 + $0x12c] sm:$0xf]
      %v350 = vld [vmem:[%s251 + $0x130] sm:$0xf]
      %v351 = vld [vmem:[%s251 + $0x134] sm:$0xf]
      %v352 = vld [vmem:[%s251 + $0x138] sm:$0xf]
      %v353 = vld [vmem:[%s251 + $0x13c] sm:$0xf]
      %v354 = vld [vmem:[%s251 + $0x140] sm:$0xf]
      %v355 = vld [vmem:[%s251 + $0x144] sm:$0xf]
      %v356 = vld [vmem:[%s251 + $0x148] sm:$0xf]
      %v357 = vld [vmem:[%s251 + $0x14c] sm:$0xf]
      %v358 = vld [vmem:[%s251 + $0x150] sm:$0xf]
      %v359 = vld [vmem:[%s251 + $0x154] sm:$0xf]
      %v360 = vld [vmem:[%s251 + $0x158] sm:$0xf]
      %v361 = vld [vmem:[%s251 + $0x15c] sm:$0xf]
      %v362 = vld [vmem:[%s251 + $0x160] sm:$0xf]
      %v363 = vld [vmem:[%s251 + $0x164] sm:$0xf]
      %v364 = vld [vmem:[%s251 + $0x168] sm:$0xf]
      %v365 = vld [vmem:[%s251 + $0x16c] sm:$0xf]
      %v366 = vld [vmem:[%s251 + $0x170] sm:$0xf]
      %v367 = vld [vmem:[%s251 + $0x174] sm:$0xf]
      %v368 = vld [vmem:[%s251 + $0x178] sm:$0xf]
      %v369 = vld [vmem:[%s251 + $0x17c] sm:$0xf]
      %v370 = vld [vmem:[%s251 + $0x180] sm:$0xf]
      %v371 = vld [vmem:[%s251 + $0x184] sm:$0xf]
      %v372 = vld [vmem:[%s251 + $0x188] sm:$0xf]
      %v373 = vld [vmem:[%s251 + $0x18c] sm:$0xf]
      %v374 = vld [vmem:[%s251 + $0x190] sm:$0xf]
      %v375 = vld [vmem:[%s251 + $0x194] sm:$0xf]
      %v376 = vld [vmem:[%s251 + $0x198] sm:$0xf]
      %v377 = vld [vmem:[%s251 + $0x19c] sm:$0xf]
      %v378 = vld [vmem:[%s251 + $0x1a0] sm:$0xf]
      %v379 = vld [vmem:[%s251 + $0x1a4] sm:$0xf]
      %v380 = vld [vmem:[%s251 + $0x1a8] sm:$0xf]
      %v381 = vld [vmem:[%s251 + $0x1ac] sm:$0xf]
      %v382 = vld [vmem:[%s251 + $0x1b0] sm:$0xf]
      %v383 = vld [vmem:[%s251 + $0x1b4] sm:$0xf]
      %v384 = vld [vmem:[%s251 + $0x1b8] sm:$0xf]
      %v385 = vld [vmem:[%s251 + $0x1bc] sm:$0xf]
      %v386 = vld [vmem:[%s251 + $0x1c0] sm:$0xf]
      %v387 = vld [vmem:[%s251 + $0x1c4] sm:$0xf]
      %v388 = vld [vmem:[%s251 + $0x1c8] sm:$0xf]
      %v389 = vld [vmem:[%s251 + $0x1cc] sm:$0xf]
      %v390 = vld [vmem:[%s251 + $0x1d0] sm:$0xf]
      %v391 = vld [vmem:[%s251 + $0x1d4] sm:$0xf]
      %v392 = vld [vmem:[%s251 + $0x1d8] sm:$0xf]
      %v393 = vld [vmem:[%s251 + $0x1dc] sm:$0xf]
      %v394 = vld [vmem:[%s251 + $0x1e0] sm:$0xf]
      %v395 = vld [vmem:[%s251 + $0x1e4] sm:$0xf]
      %v396 = vld [vmem:[%s251 + $0x1e8] sm:$0xf]
      %v397 = vld [vmem:[%s251 + $0x1ec] sm:$0xf]
      %v398 = vld [vmem:[%s251 + $0x1f0] sm:$0xf]
      %v399 = vld [vmem:[%s251 + $0x1f4] sm:$0xf]
      %v400 = vld [vmem:[%s251 + $0x1f8] sm:$0xf]
      %v401 = vld [vmem:[%s251 + $0x1fc] sm:$0xf]
      %v406 = vunpack.c.l.b16 %v270
      %v407 = vunpack.c.h.b16 %v270
      %v408 = vunpack.c.l.b16 %v271
      %v409 = vunpack.c.h.b16 %v271
      %v410 = vunpack.c.l.b16 %v272
      %v411 = vunpack.c.h.b16 %v272
      %v412 = vunpack.c.l.b16 %v273
      %v413 = vunpack.c.h.b16 %v273
      %v414 = vpack.c.b16 %v406, %v406
      %v415 = vpack.c.b16 %v407, %v407
      %v416 = vpack.c.b16 %v408, %v408
      %v417 = vpack.c.b16 %v409, %v409
      %v418 = vpack.c.b16 %v410, %v410
      %v419 = vpack.c.b16 %v411, %v411
      %v420 = vpack.c.b16 %v412, %v412
      %v421 = vpack.c.b16 %v413, %v413
      %v558 = vunpack.c.l.b16 %v274
      %v559 = vunpack.c.l.b16 %v275
      %v560 = vunpack.c.l.b16 %v276
      %v561 = vunpack.c.l.b16 %v277
      %v562 = vunpack.c.l.b16 %v278
      %v563 = vunpack.c.l.b16 %v279
      %v564 = vunpack.c.l.b16 %v280
      %v565 = vunpack.c.l.b16 %v281
      %v566 = vunpack.c.l.b16 %v282
      %v567 = vunpack.c.l.b16 %v283
      %v568 = vunpack.c.l.b16 %v284
      %v569 = vunpack.c.l.b16 %v285
      %v570 = vunpack.c.l.b16 %v286
      %v571 = vunpack.c.l.b16 %v287
      %v572 = vunpack.c.l.b16 %v288
      %v573 = vunpack.c.l.b16 %v289
      %v574 = vunpack.c.l.b16 %v290
      %v575 = vunpack.c.l.b16 %v291
      %v576 = vunpack.c.l.b16 %v292
      %v577 = vunpack.c.l.b16 %v293
      %v578 = vunpack.c.l.b16 %v294
      %v579 = vunpack.c.l.b16 %v295
      %v580 = vunpack.c.l.b16 %v296
      %v581 = vunpack.c.l.b16 %v297
      %v582 = vunpack.c.l.b16 %v298
      %v583 = vunpack.c.l.b16 %v299
      %v584 = vunpack.c.l.b16 %v300
      %v585 = vunpack.c.l.b16 %v301
      %v586 = vunpack.c.l.b16 %v302
      %v587 = vunpack.c.l.b16 %v303
      %v588 = vunpack.c.l.b16 %v304
      %v589 = vunpack.c.l.b16 %v305
      %v590 = vunpack.c.l.b16 %v306
      %v591 = vunpack.c.l.b16 %v307
      %v592 = vunpack.c.l.b16 %v308
      %v593 = vunpack.c.l.b16 %v309
      %v594 = vunpack.c.l.b16 %v310
      %v595 = vunpack.c.l.b16 %v311
      %v596 = vunpack.c.l.b16 %v312
      %v597 = vunpack.c.l.b16 %v313
      %v598 = vunpack.c.l.b16 %v314
      %v599 = vunpack.c.l.b16 %v315
      %v600 = vunpack.c.l.b16 %v316
      %v601 = vunpack.c.l.b16 %v317
      %v602 = vunpack.c.l.b16 %v318
      %v603 = vunpack.c.l.b16 %v319
      %v604 = vunpack.c.l.b16 %v320
      %v605 = vunpack.c.l.b16 %v321
      %v606 = vunpack.c.l.b16 %v322
      %v607 = vunpack.c.l.b16 %v323
      %v608 = vunpack.c.l.b16 %v324
      %v609 = vunpack.c.l.b16 %v325
      %v610 = vunpack.c.l.b16 %v326
      %v611 = vunpack.c.l.b16 %v327
      %v612 = vunpack.c.l.b16 %v328
      %v613 = vunpack.c.l.b16 %v329
      %v614 = vunpack.c.l.b16 %v330
      %v615 = vunpack.c.l.b16 %v331
      %v616 = vunpack.c.l.b16 %v332
      %v617 = vunpack.c.l.b16 %v333
      %v618 = vunpack.c.l.b16 %v334
      %v619 = vunpack.c.l.b16 %v335
      %v620 = vunpack.c.l.b16 %v336
      %v621 = vunpack.c.l.b16 %v337
      %v622 = vunpack.c.l.b16 %v338
      %v623 = vunpack.c.l.b16 %v339
      %v624 = vunpack.c.l.b16 %v340
      %v625 = vunpack.c.l.b16 %v341
      %v626 = vunpack.c.l.b16 %v342
      %v627 = vunpack.c.l.b16 %v343
      %v628 = vunpack.c.l.b16 %v344
      %v629 = vunpack.c.l.b16 %v345
      %v630 = vunpack.c.l.b16 %v346
      %v631 = vunpack.c.l.b16 %v347
      %v632 = vunpack.c.l.b16 %v348
      %v633 = vunpack.c.l.b16 %v349
      %v634 = vunpack.c.l.b16 %v350
      %v635 = vunpack.c.l.b16 %v351
      %v636 = vunpack.c.l.b16 %v352
      %v637 = vunpack.c.l.b16 %v353
      %v638 = vunpack.c.l.b16 %v354
      %v639 = vunpack.c.l.b16 %v355
      %v640 = vunpack.c.l.b16 %v356
      %v641 = vunpack.c.l.b16 %v357
      %v642 = vunpack.c.l.b16 %v358
      %v643 = vunpack.c.l.b16 %v359
      %v644 = vunpack.c.l.b16 %v360
      %v645 = vunpack.c.l.b16 %v361
      %v646 = vunpack.c.l.b16 %v362
      %v647 = vunpack.c.l.b16 %v363
      %v648 = vunpack.c.l.b16 %v364
      %v649 = vunpack.c.l.b16 %v365
      %v650 = vunpack.c.l.b16 %v366
      %v651 = vunpack.c.l.b16 %v367
      %v652 = vunpack.c.l.b16 %v368
      %v653 = vunpack.c.l.b16 %v369
      %v654 = vunpack.c.l.b16 %v370
      %v655 = vunpack.c.l.b16 %v371
      %v656 = vunpack.c.l.b16 %v372
      %v657 = vunpack.c.l.b16 %v373
      %v658 = vunpack.c.l.b16 %v374
      %v659 = vunpack.c.l.b16 %v375
      %v660 = vunpack.c.l.b16 %v376
      %v661 = vunpack.c.l.b16 %v377
      %v662 = vunpack.c.l.b16 %v378
      %v663 = vunpack.c.l.b16 %v379
      %v664 = vunpack.c.l.b16 %v380
      %v665 = vunpack.c.l.b16 %v381
      %v666 = vunpack.c.l.b16 %v382
      %v667 = vunpack.c.l.b16 %v383
      %v668 = vunpack.c.l.b16 %v384
      %v669 = vunpack.c.l.b16 %v385
      %v670 = vunpack.c.l.b16 %v386
      %v671 = vunpack.c.l.b16 %v387
      %v672 = vunpack.c.l.b16 %v388
      %v673 = vunpack.c.l.b16 %v389
      %v674 = vunpack.c.l.b16 %v390
      %v675 = vunpack.c.l.b16 %v391
      %v676 = vunpack.c.l.b16 %v392
      %v677 = vunpack.c.l.b16 %v393
      %v678 = vunpack.c.l.b16 %v394
      %v679 = vunpack.c.l.b16 %v395
      %v680 = vunpack.c.l.b16 %v396
      %v681 = vunpack.c.l.b16 %v397
      %v682 = vunpack.c.l.b16 %v398
      %v683 = vunpack.c.l.b16 %v399
      %v684 = vunpack.c.l.b16 %v400
      %v685 = vunpack.c.l.b16 %v401
      %v686 = vpack.c.b16 %v559, %v558
      %v687 = vpack.c.b16 %v561, %v560
      %v688 = vpack.c.b16 %v563, %v562
      %v689 = vpack.c.b16 %v565, %v564
      %v690 = vpack.c.b16 %v567, %v566
      %v691 = vpack.c.b16 %v569, %v568
      %v692 = vpack.c.b16 %v571, %v570
      %v693 = vpack.c.b16 %v573, %v572
      %v694 = vpack.c.b16 %v575, %v574
      %v695 = vpack.c.b16 %v577, %v576
      %v696 = vpack.c.b16 %v579, %v578
      %v697 = vpack.c.b16 %v581, %v580
      %v698 = vpack.c.b16 %v583, %v582
      %v699 = vpack.c.b16 %v585, %v584
      %v700 = vpack.c.b16 %v587, %v586
      %v701 = vpack.c.b16 %v589, %v588
      %v702 = vpack.c.b16 %v591, %v590
      %v703 = vpack.c.b16 %v593, %v592
      %v704 = vpack.c.b16 %v595, %v594
      %v705 = vpack.c.b16 %v597, %v596
      %v706 = vpack.c.b16 %v599, %v598
      %v707 = vpack.c.b16 %v601, %v600
      %v708 = vpack.c.b16 %v603, %v602
      %v709 = vpack.c.b16 %v605, %v604
      %v710 = vpack.c.b16 %v607, %v606
      %v711 = vpack.c.b16 %v609, %v608
      %v712 = vpack.c.b16 %v611, %v610
      %v713 = vpack.c.b16 %v613, %v612
      %v714 = vpack.c.b16 %v615, %v614
      %v715 = vpack.c.b16 %v617, %v616
      %v716 = vpack.c.b16 %v619, %v618
      %v717 = vpack.c.b16 %v621, %v620
      %v718 = vpack.c.b16 %v623, %v622
      %v719 = vpack.c.b16 %v625, %v624
      %v720 = vpack.c.b16 %v627, %v626
      %v721 = vpack.c.b16 %v629, %v628
      %v722 = vpack.c.b16 %v631, %v630
      %v723 = vpack.c.b16 %v633, %v632
      %v724 = vpack.c.b16 %v635, %v634
      %v725 = vpack.c.b16 %v637, %v636
      %v726 = vpack.c.b16 %v639, %v638
      %v727 = vpack.c.b16 %v641, %v640
      %v728 = vpack.c.b16 %v643, %v642
      %v729 = vpack.c.b16 %v645, %v644
      %v730 = vpack.c.b16 %v647, %v646
      %v731 = vpack.c.b16 %v649, %v648
      %v732 = vpack.c.b16 %v651, %v650
      %v733 = vpack.c.b16 %v653, %v652
      %v734 = vpack.c.b16 %v655, %v654
      %v735 = vpack.c.b16 %v657, %v656
      %v736 = vpack.c.b16 %v659, %v658
      %v737 = vpack.c.b16 %v661, %v660
      %v738 = vpack.c.b16 %v663, %v662
      %v739 = vpack.c.b16 %v665, %v664
      %v740 = vpack.c.b16 %v667, %v666
      %v741 = vpack.c.b16 %v669, %v668
      %v742 = vpack.c.b16 %v671, %v670
      %v743 = vpack.c.b16 %v673, %v672
      %v744 = vpack.c.b16 %v675, %v674
      %v745 = vpack.c.b16 %v677, %v676
      %v746 = vpack.c.b16 %v679, %v678
      %v747 = vpack.c.b16 %v681, %v680
      %v748 = vpack.c.b16 %v683, %v682
      %v749 = vpack.c.b16 %v685, %v684
      %814 = vmatprep.subr.bf16.mxu0 0
      %815 = vmatpush1.bf16.msra.mxu0 %v686
      %816 = vmatprep.subr.bf16.mxu0 0
      %817 = vmatpush1.bf16.msra.mxu0 %v687
      %818 = vmatprep.subr.bf16.mxu0 0
      %819 = vmatpush1.bf16.msra.mxu0 %v688
      %820 = vmatprep.subr.bf16.mxu0 0
      %821 = vmatpush1.bf16.msra.mxu0 %v689
      %822 = vmatprep.subr.bf16.mxu0 0
      %823 = vmatpush1.bf16.msra.mxu0 %v690
      %824 = vmatprep.subr.bf16.mxu0 0
      %825 = vmatpush1.bf16.msra.mxu0 %v691
      %826 = vmatprep.subr.bf16.mxu0 0
      %827 = vmatpush1.bf16.msra.mxu0 %v692
      %828 = vmatprep.subr.bf16.mxu0 0
      %829 = vmatpush1.bf16.msra.mxu0 %v693
      %830 = vmatprep.subr.bf16.mxu0 0
      %831 = vmatpush1.bf16.msra.mxu0 %v694
      %832 = vmatprep.subr.bf16.mxu0 0
      %833 = vmatpush1.bf16.msra.mxu0 %v695
      %834 = vmatprep.subr.bf16.mxu0 0
      %835 = vmatpush1.bf16.msra.mxu0 %v696
      %836 = vmatprep.subr.bf16.mxu0 0
      %837 = vmatpush1.bf16.msra.mxu0 %v697
      %838 = vmatprep.subr.bf16.mxu0 0
      %839 = vmatpush1.bf16.msra.mxu0 %v698
      %840 = vmatprep.subr.bf16.mxu0 0
      %841 = vmatpush1.bf16.msra.mxu0 %v699
      %842 = vmatprep.subr.bf16.mxu0 0
      %843 = vmatpush1.bf16.msra.mxu0 %v700
      %844 = vmatprep.subr.bf16.mxu0 0
      %845 = vmatpush1.bf16.msra.mxu0 %v701
      %846 = vmatprep.mubr.bf16.mxu0 %v415
      %847 = vmatmul.mubr.bf16.gmra.mrb[0].mxu0 %v414
      %v848 = vpop.f32.mrb[0].mxu0
      %v849 = vadd.f32 0.0, %v848
      %v850 = vpop.f32.mrb[0].mxu0
      %v851 = vpop.f32.mrb[0].mxu0
      %v852 = vpop.f32.mrb[0].mxu0
      %853 = vdwg.mxu0
      %854 = vmatprep.subr.bf16.mxu0 0
      %855 = vmatpush1.bf16.msra.mxu0 %v702
      %856 = vmatprep.subr.bf16.mxu0 0
      %857 = vmatpush1.bf16.msra.mxu0 %v703
      %858 = vmatprep.subr.bf16.mxu0 0
      %859 = vmatpush1.bf16.msra.mxu0 %v704
      %860 = vmatprep.subr.bf16.mxu0 0
      %861 = vmatpush1.bf16.msra.mxu0 %v705
      %862 = vmatprep.subr.bf16.mxu0 0
      %863 = vmatpush1.bf16.msra.mxu0 %v706
      %864 = vmatprep.subr.bf16.mxu0 0
      %865 = vmatpush1.bf16.msra.mxu0 %v707
      %866 = vmatprep.subr.bf16.mxu0 0
      %867 = vmatpush1.bf16.msra.mxu0 %v708
      %868 = vmatprep.subr.bf16.mxu0 0
      %869 = vmatpush1.bf16.msra.mxu0 %v709
      %870 = vmatprep.subr.bf16.mxu0 0
      %871 = vmatpush1.bf16.msra.mxu0 %v710
      %872 = vmatprep.subr.bf16.mxu0 0
      %873 = vmatpush1.bf16.msra.mxu0 %v711
      %874 = vmatprep.subr.bf16.mxu0 0
      %875 = vmatpush1.bf16.msra.mxu0 %v712
      %876 = vmatprep.subr.bf16.mxu0 0
      %877 = vmatpush1.bf16.msra.mxu0 %v713
      %878 = vmatprep.subr.bf16.mxu0 0
      %879 = vmatpush1.bf16.msra.mxu0 %v714
      %880 = vmatprep.subr.bf16.mxu0 0
      %881 = vmatpush1.bf16.msra.mxu0 %v715
      %882 = vmatprep.subr.bf16.mxu0 0
      %883 = vmatpush1.bf16.msra.mxu0 %v716
      %884 = vmatprep.subr.bf16.mxu0 0
      %885 = vmatpush1.bf16.msra.mxu0 %v717
      %886 = vmatprep.mubr.bf16.mxu0 %v417
      %887 = vmatmul.mubr.bf16.gmra.mrb[0].mxu0 %v416
      %v888 = vpop.f32.mrb[0].mxu0
      %v889 = vadd.f32 %v849, %v888
      %v890 = vpop.f32.mrb[0].mxu0
      %v891 = vpop.f32.mrb[0].mxu0
      %v892 = vpop.f32.mrb[0].mxu0
      %893 = vdwg.mxu0
      %894 = vmatprep.subr.bf16.mxu0 0
      %895 = vmatpush1.bf16.msra.mxu0 %v718
      %896 = vmatprep.subr.bf16.mxu0 0
      %897 = vmatpush1.bf16.msra.mxu0 %v719
      %898 = vmatprep.subr.bf16.mxu0 0
      %899 = vmatpush1.bf16.msra.mxu0 %v720
      %900 = vmatprep.subr.bf16.mxu0 0
      %901 = vmatpush1.bf16.msra.mxu0 %v721
      %902 = vmatprep.subr.bf16.mxu0 0
      %903 = vmatpush1.bf16.msra.mxu0 %v722
      %904 = vmatprep.subr.bf16.mxu0 0
      %905 = vmatpush1.bf16.msra.mxu0 %v723
      %906 = vmatprep.subr.bf16.mxu0 0
      %907 = vmatpush1.bf16.msra.mxu0 %v724
      %908 = vmatprep.subr.bf16.mxu0 0
      %909 = vmatpush1.bf16.msra.mxu0 %v725
      %910 = vmatprep.subr.bf16.mxu0 0
      %911 = vmatpush1.bf16.msra.mxu0 %v726
      %912 = vmatprep.subr.bf16.mxu0 0
      %913 = vmatpush1.bf16.msra.mxu0 %v727
      %914 = vmatprep.subr.bf16.mxu0 0
      %915 = vmatpush1.bf16.msra.mxu0 %v728
      %916 = vmatprep.subr.bf16.mxu0 0
      %917 = vmatpush1.bf16.msra.mxu0 %v729
      %918 = vmatprep.subr.bf16.mxu0 0
      %919 = vmatpush1.bf16.msra.mxu0 %v730
      %920 = vmatprep.subr.bf16.mxu0 0
      %921 = vmatpush1.bf16.msra.mxu0 %v731
      %922 = vmatprep.subr.bf16.mxu0 0
      %923 = vmatpush1.bf16.msra.mxu0 %v732
      %924 = vmatprep.subr.bf16.mxu0 0
      %925 = vmatpush1.bf16.msra.mxu0 %v733
      %926 = vmatprep.mubr.bf16.mxu0 %v419
      %927 = vmatmul.mubr.bf16.gmra.mrb[0].mxu0 %v418
      %v928 = vpop.f32.mrb[0].mxu0
      %v929 = vadd.f32 %v889, %v928
      %v930 = vpop.f32.mrb[0].mxu0
      %v931 = vpop.f32.mrb[0].mxu0
      %v932 = vpop.f32.mrb[0].mxu0
      %933 = vdwg.mxu0
      %934 = vmatprep.subr.bf16.mxu0 0
      %935 = vmatpush1.bf16.msra.mxu0 %v734
      %936 = vmatprep.subr.bf16.mxu0 0
      %937 = vmatpush1.bf16.msra.mxu0 %v735
      %938 = vmatprep.subr.bf16.mxu0 0
      %939 = vmatpush1.bf16.msra.mxu0 %v736
      %940 = vmatprep.subr.bf16.mxu0 0
      %941 = vmatpush1.bf16.msra.mxu0 %v737
      %942 = vmatprep.subr.bf16.mxu0 0
      %943 = vmatpush1.bf16.msra.mxu0 %v738
      %944 = vmatprep.subr.bf16.mxu0 0
      %945 = vmatpush1.bf16.msra.mxu0 %v739
      %946 = vmatprep.subr.bf16.mxu0 0
      %947 = vmatpush1.bf16.msra.mxu0 %v740
      %948 = vmatprep.subr.bf16.mxu0 0
      %949 = vmatpush1.bf16.msra.mxu0 %v741
      %950 = vmatprep.subr.bf16.mxu0 0
      %951 = vmatpush1.bf16.msra.mxu0 %v742
      %952 = vmatprep.subr.bf16.mxu0 0
      %953 = vmatpush1.bf16.msra.mxu0 %v743
      %954 = vmatprep.subr.bf16.mxu0 0
      %955 = vmatpush1.bf16.msra.mxu0 %v744
      %956 = vmatprep.subr.bf16.mxu0 0
      %957 = vmatpush1.bf16.msra.mxu0 %v745
      %958 = vmatprep.subr.bf16.mxu0 0
      %959 = vmatpush1.bf16.msra.mxu0 %v746
      %960 = vmatprep.subr.bf16.mxu0 0
      %961 = vmatpush1.bf16.msra.mxu0 %v747
      %962 = vmatprep.subr.bf16.mxu0 0
      %963 = vmatpush1.bf16.msra.mxu0 %v748
      %964 = vmatprep.subr.bf16.mxu0 0
      %965 = vmatpush1.bf16.msra.mxu0 %v749
      %966 = vmatprep.mubr.bf16.mxu0 %v421
      %967 = vmatmul.mubr.bf16.gmra.mrb[0].mxu0 %v420
      %v968 = vpop.f32.mrb[0].mxu0
      %v969 = vadd.f32 %v929, %v968
      %v970 = vpop.f32.mrb[0].mxu0
      %v971 = vpop.f32.mrb[0].mxu0
      %v972 = vpop.f32.mrb[0].mxu0
      %973 = vdwg.mxu0
      %v974 = vadd.f32 %v269, %v969
      %975 = vst [vmem:[#allocation2] sm:$0xff] %v974
      // Predicated region
      $region33: #{critic_forward.8} parent=27 // pred_check
        %p976 = pneg %p264
      $region34: #{critic_forward.8} parent=27 // pred_check_branch
        %978 = sbr.rel (%p976) target = $region36
      $region35: #{critic_forward.8} parent=27 // pred_region
        %v979 = vld [vmem:[#allocation2] sm:$0xff]
        %v980 = vrot.slane %v979, 4
        %v981 = vadd.f32 %v979, %v980
        %v982 = vrot.slane %v981, 2
        %v983 = vadd.f32 %v981, %v982
        %v984 = vrot.slane %v983, 1
        %v985 = vadd.f32 %v983, %v984
        %986 = vst [vmem:[%s259] sm:$0x1] %v985
        %v987 = vmul.f32 %v979, %v979
        %v988 = vrot.slane %v987, 4
        %v989 = vadd.f32 %v987, %v988
        %v990 = vrot.slane %v989, 2
        %v991 = vadd.f32 %v989, %v990
        %v992 = vrot.slane %v991, 1
        %v993 = vadd.f32 %v991, %v992
        %994 = vst [vmem:[%s262] sm:$0x1] %v993
        %v995 = vpack.c.bf16 %v979, %v979
        %996 = vst [vmem:[%s256] sm:$0xf] %v995
      $region36: #{critic_forward.8} parent=27 // pred_fallthru
        _
      %p997 = scmp.lt.s32.totalorder %s20, 2
      %s998 = scalar_select %p997, %s20, 2
      %s999 = smul.addr %s998, 4
      %s1000 = scalar_lea.vmem %s2, %s999
      %p1001 = scmp.lt.s32.totalorder %s20, 2
      %s1002 = scalar_select %p1001, %s20, 2
      %s1003 = scalar_lea.vmem %s3, %s1002
      %p1004 = scmp.lt.s32.totalorder %s20, 2
      %s1005 = scalar_select %p1004, %s20, 2
      %s1006 = scalar_lea.vmem %s4, %s1005
      // Predicated region
      $region37: #{critic_forward.8} parent=27 // pred_check
        %p1007 = pneg %p100
      $region38: #{critic_forward.8} parent=27 // pred_check_branch
        %1009 = sbr.rel (%p1007) target = $region40
      $region39: #{critic_forward.8} parent=27 // pred_region
        _
      $region40: #{critic_forward.8} parent=27 // pred_fallthru
        _
      // Predicated region
      $region41: #{critic_forward.8} parent=27 // pred_check
        %p1010 = pneg %p126
      $region42: #{critic_forward.8} parent=27 // pred_check_branch
        %1012 = sbr.rel (%p1010) target = $region44
      $region43: #{critic_forward.8} parent=27 // pred_region
        _
      $region44: #{critic_forward.8} parent=27 // pred_fallthru
        _
      // Predicated region
      $region45: #{critic_forward.8} parent=27 // pred_check
        %p1013 = pneg %p152
      $region46: #{critic_forward.8} parent=27 // pred_check_branch
        %1015 = sbr.rel (%p1013) target = $region48
      $region47: #{critic_forward.8} parent=27 // pred_region
        _
      $region48: #{critic_forward.8} parent=27 // pred_fallthru
        _
    $region28: #{critic_forward.8} parent=5 // pred_fallthru
      _
    %p1016 = scmp.le.s32.totalorder 2, %s11
    // Predicated region
    $region49: #{critic_forward.8} parent=5 // pred_check
      %p1017 = pneg %p1016
    $region50: #{critic_forward.8} parent=5 // pred_check_branch
      %1019 = sbr.rel (%p1017) target = $region52
    $region51: #{critic_forward.8} parent=5 // pred_region
      %s1020 = ssub.s32 %s11, 2
      // Predicated region
      $region53: #{critic_forward.8} parent=51 // pred_check
        %p1021 = pneg %p106
      $region54: #{critic_forward.8} parent=51 // pred_check_branch
        %1023 = sbr.rel (%p1021) target = $region56
      $region55: #{critic_forward.8} parent=51 // pred_region
        %p1024 = scmp.lt.s32.totalorder %s22, 2
        %s1025 = scalar_select %p1024, %s22, 2
        %s1026 = smul.addr %s1025, 4
        %s1027 = scalar_lea.vmem %s2, %s1026
      $region56: #{critic_forward.8} parent=51 // pred_fallthru
        _
      // Predicated region
      $region57: #{critic_forward.8} parent=51 // pred_check
        %p1028 = pneg %p132
      $region58: #{critic_forward.8} parent=51 // pred_check_branch
        %1030 = sbr.rel (%p1028) target = $region60
      $region59: #{critic_forward.8} parent=51 // pred_region
        %p1031 = scmp.lt.s32.totalorder %s22, 2
        %s1032 = scalar_select %p1031, %s22, 2
        %s1033 = scalar_lea.vmem %s3, %s1032
      $region60: #{critic_forward.8} parent=51 // pred_fallthru
        _
      // Predicated region
      $region61: #{critic_forward.8} parent=51 // pred_check
        %p1034 = pneg %p158
      $region62: #{critic_forward.8} parent=51 // pred_check_branch
        %1036 = sbr.rel (%p1034) target = $region64
      $region63: #{critic_forward.8} parent=51 // pred_region
        %p1037 = scmp.lt.s32.totalorder %s22, 2
        %s1038 = scalar_select %p1037, %s22, 2
        %s1039 = scalar_lea.vmem %s4, %s1038
      $region64: #{critic_forward.8} parent=51 // pred_fallthru
        _
    $region52: #{critic_forward.8} parent=5 // pred_fallthru
      _
  $region6: #{critic_forward.8} parent=0 // loop_footer
    %s15 = sadd.s32 1, %s11
  $region7: #{critic_forward.8} parent=0 // loop_footer_branch
    %10 = sbr.rel target = $region3
  $region8: #{critic_forward.8} parent=0 // loop_exit
    _

// kernel: critic_forward.9
$region0: #{critic_forward.9}
  #allocation0 [shape = 'u32[]', space=smem, size = 0x4, offset = 0x4, fixed_abs, tag = 'smem constant byte address 0x4 - core index']
  #allocation1 [shape = 'u32[144,128]{1,0:T(1,128)}', space=vmem, size = 0x12000, scoped, tag = 'internal scratch']
  #allocation2 [shape = 'f32[1,1]{1,0:T(1,128)S(1)}', space=vmem, size = 0x200, scoped, tag = 'scoped memory for critic_forward.9']
  %s0 = inlined_call_operand.vmem [shape: bf16[8,2048], index: 0, kind: input, shape index: {}]
  %s1 = inlined_call_operand.vmem [shape: f32[1,2048], index: 1, kind: input, shape index: {}]
  %s2 = inlined_call_operand.<no memory space> [shape: f32[1,1], index: 2, kind: input, shape index: {}]
  %s3 = inlined_call_operand.vmem [shape: f32[8,1], index: 3, kind: output, shape index: {}]
  %s4 = sld [smem:[#allocation0]]
  $region22: #{critic_forward.9} parent=0
    _
  %s6 = ssub.s32 1, %s4
  %s7 = scalar_select 0, %s6, %s4
  %v8 = vstv %s2
  %9 = vst [vmem:[#allocation2] sm:$0x1] %v8
  // Predicated region
  $region2: #{critic_forward.9} parent=0 // pred_check
    _
  $region3: #{critic_forward.9} parent=0 // pred_check_branch
    %11 = sbr.rel (0) target = $region5
  $region4: #{critic_forward.9} parent=0 // pred_region
    _
  $region5: #{critic_forward.9} parent=0 // pred_fallthru
    _
  // Predicated region
  $region6: #{critic_forward.9} parent=0 // pred_check
    _
  $region7: #{critic_forward.9} parent=0 // pred_check_branch
    %13 = sbr.rel (0) target = $region9
  $region8: #{critic_forward.9} parent=0 // pred_region
    _
  $region9: #{critic_forward.9} parent=0 // pred_fallthru
    _
  // Predicated region
  $region10: #{critic_forward.9} parent=0 // pred_check
    _
  $region11: #{critic_forward.9} parent=0 // pred_check_branch
    %15 = sbr.rel (0) target = $region13
  $region12: #{critic_forward.9} parent=0 // pred_region
    _
  $region13: #{critic_forward.9} parent=0 // pred_fallthru
    _
  %v16 = vld [vmem:[%s0] sm:$0xff]
  %v17 = vld [vmem:[%s0 + $0x8] sm:$0xff]
  %v18 = vld [vmem:[%s0 + $0x10] sm:$0xff]
  %v19 = vld [vmem:[%s0 + $0x18] sm:$0xff]
  %v20 = vld [vmem:[%s0 + $0x20] sm:$0xff]
  %v21 = vld [vmem:[%s0 + $0x28] sm:$0xff]
  %v22 = vld [vmem:[%s0 + $0x30] sm:$0xff]
  %v23 = vld [vmem:[%s0 + $0x38] sm:$0xff]
  %v24 = vunpack.c.l.bf16 %v16
  %v25 = vunpack.c.h.bf16 %v16
  %v26 = vunpack.c.l.bf16 %v17
  %v27 = vunpack.c.h.bf16 %v17
  %v28 = vunpack.c.l.bf16 %v18
  %v29 = vunpack.c.h.bf16 %v18
  %v30 = vunpack.c.l.bf16 %v19
  %v31 = vunpack.c.h.bf16 %v19
  %v32 = vunpack.c.l.bf16 %v20
  %v33 = vunpack.c.h.bf16 %v20
  %v34 = vunpack.c.l.bf16 %v21
  %v35 = vunpack.c.h.bf16 %v21
  %v36 = vunpack.c.l.bf16 %v22
  %v37 = vunpack.c.h.bf16 %v22
  %v38 = vunpack.c.l.bf16 %v23
  %v39 = vunpack.c.h.bf16 %v23
  %v40 = vld [vmem:[%s1] sm:$0xff]
  %v41 = vld [vmem:[%s1 + $0x8] sm:$0xff]
  %v44 = vlaneseq
  %v45 = vshrl.u32 %v44, 7
  %v46 = vsub.s32 0, %v45
  %v47 = vrot.slane %v40, %v46
  %v48 = vlaneseq
  %v49 = vshrl.u32 %v48, 7
  %v50 = vsub.s32 1, %v49
  %v51 = vrot.slane %v40, %v50
  %v52 = vlaneseq
  %v53 = vshrl.u32 %v52, 7
  %v54 = vsub.s32 2, %v53
  %v55 = vrot.slane %v40, %v54
  %v56 = vlaneseq
  %v57 = vshrl.u32 %v56, 7
  %v58 = vsub.s32 3, %v57
  %v59 = vrot.slane %v40, %v58
  %v60 = vlaneseq
  %v61 = vshrl.u32 %v60, 7
  %v62 = vsub.s32 4, %v61
  %v63 = vrot.slane %v40, %v62
  %v64 = vlaneseq
  %v65 = vshrl.u32 %v64, 7
  %v66 = vsub.s32 5, %v65
  %v67 = vrot.slane %v40, %v66
  %v68 = vlaneseq
  %v69 = vshrl.u32 %v68, 7
  %v70 = vsub.s32 6, %v69
  %v71 = vrot.slane %v40, %v70
  %v72 = vlaneseq
  %v73 = vshrl.u32 %v72, 7
  %v74 = vsub.s32 7, %v73
  %v75 = vrot.slane %v40, %v74
  %v76 = vlaneseq
  %v77 = vshrl.u32 %v76, 7
  %v78 = vsub.s32 0, %v77
  %v79 = vrot.slane %v41, %v78
  %v80 = vlaneseq
  %v81 = vshrl.u32 %v80, 7
  %v82 = vsub.s32 1, %v81
  %v83 = vrot.slane %v41, %v82
  %v84 = vlaneseq
  %v85 = vshrl.u32 %v84, 7
  %v86 = vsub.s32 2, %v85
  %v87 = vrot.slane %v41, %v86
  %v88 = vlaneseq
  %v89 = vshrl.u32 %v88, 7
  %v90 = vsub.s32 3, %v89
  %v91 = vrot.slane %v41, %v90
  %v92 = vlaneseq
  %v93 = vshrl.u32 %v92, 7
  %v94 = vsub.s32 4, %v93
  %v95 = vrot.slane %v41, %v94
  %v96 = vlaneseq
  %v97 = vshrl.u32 %v96, 7
  %v98 = vsub.s32 5, %v97
  %v99 = vrot.slane %v41, %v98
  %v100 = vlaneseq
  %v101 = vshrl.u32 %v100, 7
  %v102 = vsub.s32 6, %v101
  %v103 = vrot.slane %v41, %v102
  %v104 = vlaneseq
  %v105 = vshrl.u32 %v104, 7
  %v106 = vsub.s32 7, %v105
  %v107 = vrot.slane %v41, %v106
  %v124 = vmul.f32 %v24, %v47
  %v125 = vmul.f32 %v25, %v51
  %v126 = vmul.f32 %v26, %v55
  %v127 = vmul.f32 %v27, %v59
  %v128 = vmul.f32 %v28, %v63
  %v129 = vmul.f32 %v29, %v67
  %v130 = vmul.f32 %v30, %v71
  %v131 = vmul.f32 %v31, %v75
  %v132 = vmul.f32 %v32, %v79
  %v133 = vmul.f32 %v33, %v83
  %v134 = vmul.f32 %v34, %v87
  %v135 = vmul.f32 %v35, %v91
  %v136 = vmul.f32 %v36, %v95
  %v137 = vmul.f32 %v37, %v99
  %v138 = vmul.f32 %v38, %v103
  %v139 = vmul.f32 %v39, %v107
  %v140 = vadd.f32 %v124, %v125
  %v141 = vadd.f32 %v140, %v126
  %v142 = vadd.f32 %v141, %v127
  %v143 = vadd.f32 %v142, %v128
  %v144 = vadd.f32 %v143, %v129
  %v145 = vadd.f32 %v144, %v130
  %v146 = vadd.f32 %v145, %v131
  %v147 = vadd.f32 %v146, %v132
  %v148 = vadd.f32 %v147, %v133
  %v149 = vadd.f32 %v148, %v134
  %v150 = vadd.f32 %v149, %v135
  %v151 = vadd.f32 %v150, %v136
  %v152 = vadd.f32 %v151, %v137
  %v153 = vadd.f32 %v152, %v138
  %v154 = vadd.f32 %v153, %v139
  %155 = vadd.xlane.f32.xlu0 %v154
  %v156 = vpop.xlane.xlu0 %155
  %v157 = vld [vmem:[#allocation2] sm:$0x1]
  %v159 = vlaneseq
  %v160 = vshrl.u32 %v159, 7
  %v161 = vsub.s32 0, %v160
  %v162 = vrot.slane %v157, %v161
  %v164 = vadd.f32 %v156, %v162
  %vm165 = vcmask 7168
  %166 = vst.msk [vmem:[%s3] sm:$0xff] %vm165, %v164
  // Predicated region
  $region14: #{critic_forward.9} parent=0 // pred_check
    _
  $region15: #{critic_forward.9} parent=0 // pred_check_branch
    %168 = sbr.rel (0) target = $region17
  $region16: #{critic_forward.9} parent=0 // pred_region
    _
  $region17: #{critic_forward.9} parent=0 // pred_fallthru
    _
  // Predicated region
  $region18: #{critic_forward.9} parent=0 // pred_check
    _
  $region19: #{critic_forward.9} parent=0 // pred_check_branch
    %170 = sbr.rel (0) target = $region21
  $region20: #{critic_forward.9} parent=0 // pred_region
    _
  $region21: #{critic_forward.9} parent=0 // pred_fallthru
    _

</llo_original>
